<compile_context>
chip_gen: v7x
topology: tpu7x:2x2x1
jax: 0.10.0
libtpu: 0.0.40
codegen_flags: <defaults>
</compile_context>

<pallas_src>
import functools

import jax
import jax.numpy as jnp
from jax import lax
from jax.experimental import pallas as pl
from jax.experimental.pallas import tpu as pltpu


def _round_up(x, m):
    return ((x + m - 1) // m) * m


def _encoder_gru_kernel(len_ref, embf_ref, embb_ref,
                        winf_ref, winb_ref, binf_ref, binb_ref,
                        whh_ref, bhnf_ref, bhnb_ref,
                        outf_ref, outb_ref, hid_ref,
                        gxf_ref, gxb_ref, hcat_ref,
                        *, tile_t, Bp, Hp, NT):
    i = pl.program_id(0)

    @pl.when(i == 0)
    def _():
        hcat_ref[...] = jnp.zeros_like(hcat_ref)

    # ---- Phase 1 (per time tile): input projections for BOTH directions on the MXU. ----
    # bf16 operands, f32 accumulation.  r/z biases are pre-folded (b_ih + b_hh); the n gate
    # carries only b_ih here (b_hn is applied inside the recurrence, multiplied by r).
    gxf_ref[...] = (jnp.dot(embf_ref[...], winf_ref[...],
                            preferred_element_type=jnp.float32) + binf_ref[...])
    gxb_ref[...] = (jnp.dot(embb_ref[...], winb_ref[...],
                            preferred_element_type=jnp.float32) + binb_ref[...])

    # ---- Loop-invariant loads (hoisted out of the serial recurrence). ----
    w_hh = whh_ref[...]                         # (2*Hp, 6*Hp) block-diagonal, bf16
    b_hn_f = bhnf_ref[...]                      # (1, Hp)
    b_hn_b = bhnb_ref[...]                      # (1, Hp)
    lengths = len_ref[...]                      # (Bp, 1) int32

    t0_f = i * tile_t                           # global time of local step 0 (fwd tile)
    t0_b = (NT - 1 - i) * tile_t                # global time of local step 0 (bwd tile)

    def gate(gx, gh, b_hn, h, t):
        # PyTorch GRU cell with the input projection precomputed in gx.
        r = jax.nn.sigmoid(gx[:, 0:Hp] + gh[:, 0:Hp])
        z = jax.nn.sigmoid(gx[:, Hp:2 * Hp] + gh[:, Hp:2 * Hp])
        n = jnp.tanh(gx[:, 2 * Hp:3 * Hp] + r * (gh[:, 2 * Hp:3 * Hp] + b_hn))
        h_new = n + z * (h - n)                 # == (1 - z) * n + z * h
        m = (t < lengths).astype(jnp.float32)   # packed-sequence validity mask
        # freeze state past length[b]; padded output positions become exact zeros
        return h + m * (h_new - h), m * h_new

    # ---- Phase 2: recurrence over the tile; one merged block-diagonal matmul per step. ----
    def body(j, carry):
        h_f, h_b = carry
        jb = tile_t - 1 - j                     # backward direction walks its tile in reverse
        row_f = pl.multiple_of(j * Bp, Bp)
        row_b = pl.multiple_of(jb * Bp, Bp)
        h_cat = jnp.concatenate([h_f, h_b], axis=1).astype(jnp.bfloat16)     # (Bp, 2*Hp)
        gh = jnp.dot(h_cat, w_hh, preferred_element_type=jnp.float32)        # (Bp, 6*Hp)
        gx_f = gxf_ref[pl.ds(row_f, Bp), :]
        gx_b = gxb_ref[pl.ds(row_b, Bp), :]
        h_f, o_f = gate(gx_f, gh[:, 0:3 * Hp], b_hn_f, h_f, t0_f + j)
        h_b, o_b = gate(gx_b, gh[:, 3 * Hp:6 * Hp], b_hn_b, h_b, t0_b + jb)
        outf_ref[pl.ds(row_f, Bp), :] = o_f
        outb_ref[pl.ds(row_b, Bp), :] = o_b
        return (h_f, h_b)

    h_f0 = hcat_ref[:, 0:Hp]
    h_b0 = hcat_ref[:, Hp:2 * Hp]
    h_f, h_b = lax.fori_loop(0, tile_t, body, (h_f0, h_b0), unroll=4)

    # Carry the hidden states to the next time tile.
    hcat_ref[:, 0:Hp] = h_f
    hcat_ref[:, Hp:2 * Hp] = h_b

    @pl.when(i == NT - 1)
    def _():
        hid_ref[0] = h_f        # forward final state (after last valid element)
        hid_ref[1] = h_b        # backward final state (after t = 0)


def _pack_in_w(w, H, Hp):
    """PyTorch (3H, H) gate-stacked input weight -> (Hp, 3*Hp) bf16, gates 128-lane aligned."""
    wt = jnp.asarray(w, jnp.float32).T                      # (H, 3H), gate order [r | z | n]
    out = jnp.zeros((Hp, 3 * Hp), jnp.float32)
    for g in range(3):
        out = out.at[:H, g * Hp:g * Hp + H].set(wt[:, g * H:(g + 1) * H])
    return out.astype(jnp.bfloat16)


def _pack_in_b(b_ih, b_hh, H, Hp):
    """Folded input-side bias -> (1, 3*Hp) f32.  r/z carry b_ih+b_hh; n carries only b_ih."""
    b_ih = jnp.asarray(b_ih, jnp.float32)
    b_hh = jnp.asarray(b_hh, jnp.float32)
    out = jnp.zeros((3 * Hp,), jnp.float32)
    out = out.at[0 * Hp:0 * Hp + H].set(b_ih[0:H] + b_hh[0:H])
    out = out.at[1 * Hp:1 * Hp + H].set(b_ih[H:2 * H] + b_hh[H:2 * H])
    out = out.at[2 * Hp:2 * Hp + H].set(b_ih[2 * H:3 * H])
    return out.reshape(1, 3 * Hp)


def _pack_hh_blockdiag(w_f, w_b, H, Hp):
    """Both directions' (3H, H) recurrent weights -> one block-diagonal (2*Hp, 6*Hp) bf16 rhs."""
    wtf = jnp.asarray(w_f, jnp.float32).T
    wtb = jnp.asarray(w_b, jnp.float32).T
    out = jnp.zeros((2 * Hp, 6 * Hp), jnp.float32)
    for g in range(3):
        out = out.at[0:H, g * Hp:g * Hp + H].set(wtf[:, g * H:(g + 1) * H])
        out = out.at[Hp:Hp + H, 3 * Hp + g * Hp:3 * Hp + g * Hp + H].set(
            wtb[:, g * H:(g + 1) * H])
    return out.astype(jnp.bfloat16)


def _pack_bhn(b_hh, H, Hp):
    out = jnp.zeros((Hp,), jnp.float32).at[:H].set(
        jnp.asarray(b_hh, jnp.float32)[2 * H:3 * H])
    return out.reshape(1, Hp)


def encoder_gru_forward(input_seqs, input_lengths, params, *, tile_t=None):
    """input_seqs: (T, B) int32 token ids; input_lengths: (B,) int32 (sorted descending)."""
    T, B = input_seqs.shape
    H = params["embedding"].shape[1]
    Bp = _round_up(max(B, 8), 8)        # sublane-aligned batch
    Hp = _round_up(max(H, 128), 128)    # lane-aligned hidden; gate boundaries at multiples of Hp
    if tile_t is None:
        tile_t = min(T, 32)             # time-tile length (pipeline granularity)
    NT = -(-T // tile_t)
    T_pad = NT * tile_t
    rows = tile_t * Bp

    # Embedding lookup (gather) stays in XLA glue; stored bf16 (MXU operand dtype, halves DMA).
    emb = params["embedding"][input_seqs].astype(jnp.float32)                 # (T, B, H)
    emb = jnp.pad(emb, ((0, T_pad - T), (0, Bp - B), (0, Hp - H)))
    emb = emb.reshape(T_pad * Bp, Hp).astype(jnp.bfloat16)

    lengths = jnp.pad(input_lengths.astype(jnp.int32), (0, Bp - B)).reshape(Bp, 1)

    w_in_f = _pack_in_w(params["w_ih_f"], H, Hp)
    w_in_b = _pack_in_w(params["w_ih_b"], H, Hp)
    b_in_f = _pack_in_b(params["b_ih_f"], params["b_hh_f"], H, Hp)
    b_in_b = _pack_in_b(params["b_ih_b"], params["b_hh_b"], H, Hp)
    w_hh = _pack_hh_blockdiag(params["w_hh_f"], params["w_hh_b"], H, Hp)
    b_hn_f = _pack_bhn(params["b_hh_f"], H, Hp)
    b_hn_b = _pack_bhn(params["b_hh_b"], H, Hp)

    # VMEM budget is now constant in T (time-tiled streaming).  Generation-aware cap.
    vmem_needed = (
        2 * 2 * rows * Hp * 2                                        # emb tiles (bf16, 2 dirs, dbl-buf)
        + 2 * 2 * rows * Hp * 4                                      # output tiles (f32, 2 dirs, dbl-buf)
        + 2 * (w_in_f.size + w_in_b.size + w_hh.size) * 2            # bf16 weights
        + 2 * (b_in_f.size + b_in_b.size + b_hn_f.size + b_hn_b.size + lengths.size) * 4
        + 2 * 2 * Bp * Hp * 4                                        # hidden output
        + 2 * rows * 3 * Hp * 4                                      # gx scratches (f32)
        + Bp * 2 * Hp * 4)                                           # h carry scratch
    try:
        phys = int(pltpu.get_tpu_info().vmem_capacity_bytes)
    except Exception:
        phys = 64 * 1024 * 1024
    if not phys or phys <= 0:
        phys = 64 * 1024 * 1024
    vmem_limit = int(min(max(2 * vmem_needed, 16 * 1024 * 1024), (phys * 3) // 4))

    kernel = functools.partial(_encoder_gru_kernel, tile_t=tile_t, Bp=Bp, Hp=Hp, NT=NT)

    def const(shape):
        nd = len(shape)
        return pl.BlockSpec(shape, lambda i, _nd=nd: (0,) * _nd)

    out_f, out_b, hid = pl.pallas_call(
        kernel,
        out_shape=(jax.ShapeDtypeStruct((T_pad * Bp, Hp), jnp.float32),
                   jax.ShapeDtypeStruct((T_pad * Bp, Hp), jnp.float32),
                   jax.ShapeDtypeStruct((2, Bp, Hp), jnp.float32)),
        grid_spec=pltpu.PrefetchScalarGridSpec(
            num_scalar_prefetch=0,
            grid=(NT,),
            in_specs=[
                const((Bp, 1)),                                       # lengths
                pl.BlockSpec((rows, Hp), lambda i: (i, 0)),           # emb, forward time stream
                pl.BlockSpec((rows, Hp), lambda i: (NT - 1 - i, 0)),  # emb, reverse time stream
                const((Hp, 3 * Hp)),                                  # w_in fwd
                const((Hp, 3 * Hp)),                                  # w_in bwd
                const((1, 3 * Hp)),                                   # b_in fwd (r/z folded)
                const((1, 3 * Hp)),                                   # b_in bwd
                const((2 * Hp, 6 * Hp)),                              # w_hh block-diagonal
                const((1, Hp)),                                       # b_hn fwd
                const((1, Hp)),                                       # b_hn bwd
            ],
            out_specs=(
                pl.BlockSpec((rows, Hp), lambda i: (i, 0)),           # fwd outputs
                pl.BlockSpec((rows, Hp), lambda i: (NT - 1 - i, 0)),  # bwd outputs
                pl.BlockSpec((2, Bp, Hp), lambda i: (0, 0, 0)),       # final hidden (last step)
            ),
            scratch_shapes=[
                pltpu.VMEM((rows, 3 * Hp), jnp.float32),              # gx fwd (per tile)
                pltpu.VMEM((rows, 3 * Hp), jnp.float32),              # gx bwd (per tile)
                pltpu.VMEM((Bp, 2 * Hp), jnp.float32),                # h carry [h_f | h_b]
            ]),
        compiler_params=pltpu.CompilerParams(
            dimension_semantics=("arbitrary",),
            vmem_limit_bytes=vmem_limit),
    )(lengths, emb, emb, w_in_f, w_in_b, b_in_f, b_in_b, w_hh, b_hn_f, b_hn_b)

    outputs = (out_f + out_b).reshape(T_pad, Bp, Hp)[:T, :B, :H]   # fwd+bwd sum (cheap XLA add)
    hidden = hid[:, :B, :H]
    return outputs, hidden


def init_params(key, input_size, hidden_size):
    H = hidden_size
    bound = 1.0 / (H ** 0.5)
    ks = jax.random.split(key, 9)

    def u(k, shape):
        return jax.random.uniform(k, shape, jnp.float32, -bound, bound)

    return {
        "embedding": jax.random.normal(ks[0], (input_size, H), jnp.float32),
        "w_ih_f": u(ks[1], (3 * H, H)), "w_hh_f": u(ks[2], (3 * H, H)),
        "b_ih_f": u(ks[3], (3 * H,)),   "b_hh_f": u(ks[4], (3 * H,)),
        "w_ih_b": u(ks[5], (3 * H, H)), "w_hh_b": u(ks[6], (3 * H, H)),
        "b_ih_b": u(ks[7], (3 * H,)),   "b_hh_b": u(ks[8], (3 * H,)),
    }


def reference_forward(input_seqs, input_lengths, params):
    """Pure-JAX f32 reference with identical packed-sequence semantics."""
    T, B = input_seqs.shape
    H = params["embedding"].shape[1]
    emb = params["embedding"][input_seqs].astype(jnp.float32)
    lengths = input_lengths.astype(jnp.int32).reshape(B, 1)

    def cell(x, h, wih, whh, bih, bhh):
        gx = jnp.dot(x, wih.T) + bih
        gh = jnp.dot(h, whh.T) + bhh
        r = jax.nn.sigmoid(gx[:, :H] + gh[:, :H])
        z = jax.nn.sigmoid(gx[:, H:2 * H] + gh[:, H:2 * H])
        n = jnp.tanh(gx[:, 2 * H:] + r * gh[:, 2 * H:])
        return (1.0 - z) * n + z * h

    h = jnp.zeros((B, H), jnp.float32)
    outs_f = []
    for t in range(T):
        h_new = cell(emb[t], h, params["w_ih_f"], params["w_hh_f"],
                     params["b_ih_f"], params["b_hh_f"])
        valid = t < lengths
        outs_f.append(jnp.where(valid, h_new, 0.0))
        h = jnp.where(valid, h_new, h)
    h_f = h

    h = jnp.zeros((B, H), jnp.float32)
    outs_b = [None] * T
    for t in range(T - 1, -1, -1):
        h_new = cell(emb[t], h, params["w_ih_b"], params["w_hh_b"],
                     params["b_ih_b"], params["b_hh_b"])
        valid = t < lengths
        outs_b[t] = jnp.where(valid, h_new, 0.0)
        h = jnp.where(valid, h_new, h)
    h_b = h

    outputs = jnp.stack(outs_f) + jnp.stack(outs_b)
    hidden = jnp.stack([h_f, h_b])
    return outputs, hidden


if __name__ == "__main__":
    key = jax.random.PRNGKey(0)
    input_size = 16    # vocabulary size
    hidden_size = 32
    T, B = 8, 4

    k_params, k_seq = jax.random.split(key)
    params = init_params(k_params, input_size, hidden_size)

    input_seqs = jax.random.randint(k_seq, (T, B), 0, input_size, dtype=jnp.int32)
    # pack_padded_sequence requires lengths sorted in decreasing order.
    input_lengths = jnp.array([8, 6, 5, 3], dtype=jnp.int32)

    ref_out, ref_hid = reference_forward(input_seqs, input_lengths, params)

    # Multi-tile path (NT=2): exercises the streamed fwd/bwd pipelines and cross-tile h carry.
    outputs, hidden = encoder_gru_forward(input_seqs, input_lengths, params, tile_t=4)
    jax.block_until_ready((outputs, hidden))
    assert outputs.shape == (T, B, hidden_size)
    assert hidden.shape == (2, B, hidden_size)
    # bf16 MXU operands vs f32 reference -> bf16-appropriate tolerance.
    assert jnp.allclose(outputs, ref_out, atol=2e-2, rtol=2e-2)
    assert jnp.allclose(hidden, ref_hid, atol=2e-2, rtol=2e-2)

    # Default single-tile path (tile_t = min(T, 32)).
    outputs2, hidden2 = encoder_gru_forward(input_seqs, input_lengths, params)
    jax.block_until_ready((outputs2, hidden2))
    assert jnp.allclose(outputs2, ref_out, atol=2e-2, rtol=2e-2)
    assert jnp.allclose(hidden2, ref_hid, atol=2e-2, rtol=2e-2)

    print("KERNEL_OK")
</pallas_src>

<mosaic_0001>
module attributes {stable_mosaic.version = 11 : i64} {
  func.func @_encoder_gru_kernel(%arg0: i32, %arg1: memref<8x1xi32, #tpu.memory_space<vmem>>, %arg2: memref<32x128xbf16, #tpu.memory_space<vmem>>, %arg3: memref<32x128xbf16, #tpu.memory_space<vmem>>, %arg4: memref<128x384xbf16, #tpu.memory_space<vmem>>, %arg5: memref<128x384xbf16, #tpu.memory_space<vmem>>, %arg6: memref<1x384xf32, #tpu.memory_space<vmem>>, %arg7: memref<1x384xf32, #tpu.memory_space<vmem>>, %arg8: memref<256x768xbf16, #tpu.memory_space<vmem>>, %arg9: memref<1x128xf32, #tpu.memory_space<vmem>>, %arg10: memref<1x128xf32, #tpu.memory_space<vmem>>, %arg11: memref<32x128xf32, #tpu.memory_space<vmem>>, %arg12: memref<32x128xf32, #tpu.memory_space<vmem>>, %arg13: memref<2x8x128xf32, #tpu.memory_space<vmem>>, %arg14: memref<32x384xf32, #tpu.memory_space<vmem>>, %arg15: memref<32x384xf32, #tpu.memory_space<vmem>>, %arg16: memref<8x256xf32, #tpu.memory_space<vmem>>) attributes {dimension_semantics = [#tpu.dimension_semantics<arbitrary>], iteration_bounds = array<i64: 2>, scalar_prefetch = 0 : i64, scratch_operands = 3 : i64, tpu.core_type = #tpu.core_type<tc>, window_params = [{pipeline_mode = #tpu.pipeline_mode<synchronous>, transform_indices = @transform_0, window_bounds = array<i64: 8, 1>}, {transform_indices = @transform_1, window_bounds = array<i64: 32, 128>}, {transform_indices = @transform_2, window_bounds = array<i64: 32, 128>}, {pipeline_mode = #tpu.pipeline_mode<synchronous>, transform_indices = @transform_3, window_bounds = array<i64: 128, 384>}, {pipeline_mode = #tpu.pipeline_mode<synchronous>, transform_indices = @transform_4, window_bounds = array<i64: 128, 384>}, {pipeline_mode = #tpu.pipeline_mode<synchronous>, transform_indices = @transform_5, window_bounds = array<i64: 1, 384>}, {pipeline_mode = #tpu.pipeline_mode<synchronous>, transform_indices = @transform_6, window_bounds = array<i64: 1, 384>}, {pipeline_mode = #tpu.pipeline_mode<synchronous>, transform_indices = @transform_7, window_bounds = array<i64: 256, 768>}, {pipeline_mode = #tpu.pipeline_mode<synchronous>, transform_indices = @transform_8, window_bounds = array<i64: 1, 128>}, {pipeline_mode = #tpu.pipeline_mode<synchronous>, transform_indices = @transform_9, window_bounds = array<i64: 1, 128>}, {transform_indices = @transform_10, window_bounds = array<i64: 32, 128>}, {transform_indices = @transform_11, window_bounds = array<i64: 32, 128>}, {pipeline_mode = #tpu.pipeline_mode<synchronous>, transform_indices = @transform_12, window_bounds = array<i64: 2, 8, 128>}]} {
    %c0_i32 = arith.constant 0 : i32
    %0 = arith.cmpi eq, %arg0, %c0_i32 : i32
    %1 = arith.extui %0 : i1 to i32
    %c0_i32_0 = arith.constant 0 : i32
    %2 = arith.cmpi ne, %1, %c0_i32_0 : i32
    scf.if %2 {
      %cst_85 = arith.constant 0.000000e+00 : f32
      %399 = vector.broadcast %cst_85 : f32 to vector<8x256xf32>
      %c0_86 = arith.constant 0 : index
      %c0_87 = arith.constant 0 : index
      %400 = vector.load %arg16[%c0_86, %c0_87] : memref<8x256xf32, #tpu.memory_space<vmem>>, vector<8x256xf32>
      tpu.vector_store %arg16[%c0_86, %c0_87], %399 {strides = array<i32>} : memref<8x256xf32, #tpu.memory_space<vmem>>, vector<8x256xf32>,
    } else {
    }
    %c0 = arith.constant 0 : index
    %c0_1 = arith.constant 0 : index
    %3 = vector.load %arg2[%c0, %c0_1] : memref<32x128xbf16, #tpu.memory_space<vmem>>, vector<32x128xbf16>
    %c0_2 = arith.constant 0 : index
    %c0_3 = arith.constant 0 : index
    %4 = vector.load %arg4[%c0_2, %c0_3] : memref<128x384xbf16, #tpu.memory_space<vmem>>, vector<128x384xbf16>
    %cst = arith.constant dense<0.000000e+00> : vector<32x384xf32>
    %5 = tpu.matmul %3, %4, %cst {dimension_numbers = #tpu.dot_dimension_numbers<[1], [0], [0], [1], [0, 0, 1, 1], [], []>} : vector<32x128xbf16>, vector<128x384xbf16>, vector<32x384xf32> -> vector<32x384xf32>
    %c0_4 = arith.constant 0 : index
    %c0_5 = arith.constant 0 : index
    %6 = vector.load %arg6[%c0_4, %c0_5] : memref<1x384xf32, #tpu.memory_space<vmem>>, vector<1x384xf32>
    %7 = vector.broadcast %6 : vector<1x384xf32> to vector<32x384xf32>
    %8 = arith.addf %5, %7 : vector<32x384xf32>
    %c0_6 = arith.constant 0 : index
    %c0_7 = arith.constant 0 : index
    %9 = vector.load %arg14[%c0_6, %c0_7] : memref<32x384xf32, #tpu.memory_space<vmem>>, vector<32x384xf32>
    tpu.vector_store %arg14[%c0_6, %c0_7], %8 {strides = array<i32>} : memref<32x384xf32, #tpu.memory_space<vmem>>, vector<32x384xf32>,
    %c0_8 = arith.constant 0 : index
    %c0_9 = arith.constant 0 : index
    %10 = vector.load %arg3[%c0_8, %c0_9] : memref<32x128xbf16, #tpu.memory_space<vmem>>, vector<32x128xbf16>
    %c0_10 = arith.constant 0 : index
    %c0_11 = arith.constant 0 : index
    %11 = vector.load %arg5[%c0_10, %c0_11] : memref<128x384xbf16, #tpu.memory_space<vmem>>, vector<128x384xbf16>
    %cst_12 = arith.constant dense<0.000000e+00> : vector<32x384xf32>
    %12 = tpu.matmul %10, %11, %cst_12 {dimension_numbers = #tpu.dot_dimension_numbers<[1], [0], [0], [1], [0, 0, 1, 1], [], []>} : vector<32x128xbf16>, vector<128x384xbf16>, vector<32x384xf32> -> vector<32x384xf32>
    %c0_13 = arith.constant 0 : index
    %c0_14 = arith.constant 0 : index
    %13 = vector.load %arg7[%c0_13, %c0_14] : memref<1x384xf32, #tpu.memory_space<vmem>>, vector<1x384xf32>
    %14 = vector.broadcast %13 : vector<1x384xf32> to vector<32x384xf32>
    %15 = arith.addf %12, %14 : vector<32x384xf32>
    %c0_15 = arith.constant 0 : index
    %c0_16 = arith.constant 0 : index
    %16 = vector.load %arg15[%c0_15, %c0_16] : memref<32x384xf32, #tpu.memory_space<vmem>>, vector<32x384xf32>
    tpu.vector_store %arg15[%c0_15, %c0_16], %15 {strides = array<i32>} : memref<32x384xf32, #tpu.memory_space<vmem>>, vector<32x384xf32>,
    %c0_17 = arith.constant 0 : index
    %c0_18 = arith.constant 0 : index
    %17 = vector.load %arg8[%c0_17, %c0_18] : memref<256x768xbf16, #tpu.memory_space<vmem>>, vector<256x768xbf16>
    %c0_19 = arith.constant 0 : index
    %c0_20 = arith.constant 0 : index
    %18 = vector.load %arg9[%c0_19, %c0_20] : memref<1x128xf32, #tpu.memory_space<vmem>>, vector<1x128xf32>
    %c0_21 = arith.constant 0 : index
    %c0_22 = arith.constant 0 : index
    %19 = vector.load %arg10[%c0_21, %c0_22] : memref<1x128xf32, #tpu.memory_space<vmem>>, vector<1x128xf32>
    %c0_23 = arith.constant 0 : index
    %c0_24 = arith.constant 0 : index
    %20 = vector.load %arg1[%c0_23, %c0_24] : memref<8x1xi32, #tpu.memory_space<vmem>>, vector<8x1xi32>
    %c4_i32 = arith.constant 4 : i32
    %21 = arith.muli %arg0, %c4_i32 : i32
    %c1_i32 = arith.constant 1 : i32
    %22 = arith.subi %c1_i32, %arg0 : i32
    %c4_i32_25 = arith.constant 4 : i32
    %23 = arith.muli %22, %c4_i32_25 : i32
    %c0_26 = arith.constant 0 : index
    %c0_27 = arith.constant 0 : index
    %24 = vector.load %arg16[%c0_26, %c0_27] : memref<8x256xf32, #tpu.memory_space<vmem>>, vector<8x128xf32>
    %c0_28 = arith.constant 0 : index
    %c128 = arith.constant 128 : index
    %25 = vector.load %arg16[%c0_28, %c128] : memref<8x256xf32, #tpu.memory_space<vmem>>, vector<8x128xf32>
    %c0_i32_29 = arith.constant 0 : i32
    %c3_i32 = arith.constant 3 : i32
    %26 = arith.subi %c3_i32, %c0_i32_29 : i32
    %c8_i32 = arith.constant 8 : i32
    %27 = arith.muli %c0_i32_29, %c8_i32 : i32
    %28 = tpu.assume_multiple %27, 8 : i32
    %c8_i32_30 = arith.constant 8 : i32
    %29 = arith.muli %26, %c8_i32_30 : i32
    %30 = tpu.assume_multiple %29, 8 : i32
    %31 = tpu.concatenate %24, %25 in 1 : vector<8x128xf32>, vector<8x128xf32> -> vector<8x256xf32>
    %32 = arith.truncf %31 : vector<8x256xf32> to vector<8x256xbf16>
    %cst_31 = arith.constant dense<0.000000e+00> : vector<8x768xf32>
    %33 = tpu.matmul %32, %17, %cst_31 {dimension_numbers = #tpu.dot_dimension_numbers<[1], [0], [0], [1], [0, 0, 1, 1], [], []>} : vector<8x256xbf16>, vector<256x768xbf16>, vector<8x768xf32> -> vector<8x768xf32>
    %34 = arith.index_cast %28 : i32 to index
    %c0_32 = arith.constant 0 : index
    %35 = vector.load %arg14[%34, %c0_32] : memref<32x384xf32, #tpu.memory_space<vmem>>, vector<8x384xf32>
    %36 = arith.index_cast %30 : i32 to index
    %c0_33 = arith.constant 0 : index
    %37 = vector.load %arg15[%36, %c0_33] : memref<32x384xf32, #tpu.memory_space<vmem>>, vector<8x384xf32>
    %38 = vector.extract_strided_slice %33 {offsets = [0, 0], sizes = [8, 384], strides = [1, 1]} : vector<8x768xf32> to vector<8x384xf32>
    %39 = arith.addi %21, %c0_i32_29 : i32
    %40 = vector.extract_strided_slice %35 {offsets = [0, 0], sizes = [8, 128], strides = [1, 1]} : vector<8x384xf32> to vector<8x128xf32>
    %41 = vector.extract_strided_slice %38 {offsets = [0, 0], sizes = [8, 128], strides = [1, 1]} : vector<8x384xf32> to vector<8x128xf32>
    %42 = arith.addf %40, %41 : vector<8x128xf32>
    %43 = arith.negf %42 : vector<8x128xf32>
    %44 = math.exp %43 : vector<8x128xf32>
    %cst_34 = arith.constant 1.000000e+00 : f32
    %45 = vector.broadcast %cst_34 : f32 to vector<8x128xf32>
    %46 = arith.addf %45, %44 : vector<8x128xf32>
    %47 = arith.divf %45, %46 : vector<8x128xf32>
    %48 = vector.extract_strided_slice %35 {offsets = [0, 128], sizes = [8, 128], strides = [1, 1]} : vector<8x384xf32> to vector<8x128xf32>
    %49 = vector.extract_strided_slice %38 {offsets = [0, 128], sizes = [8, 128], strides = [1, 1]} : vector<8x384xf32> to vector<8x128xf32>
    %50 = arith.addf %48, %49 : vector<8x128xf32>
    %51 = arith.negf %50 : vector<8x128xf32>
    %52 = math.exp %51 : vector<8x128xf32>
    %cst_35 = arith.constant 1.000000e+00 : f32
    %53 = vector.broadcast %cst_35 : f32 to vector<8x128xf32>
    %54 = arith.addf %53, %52 : vector<8x128xf32>
    %55 = arith.divf %53, %54 : vector<8x128xf32>
    %56 = vector.extract_strided_slice %35 {offsets = [0, 256], sizes = [8, 128], strides = [1, 1]} : vector<8x384xf32> to vector<8x128xf32>
    %57 = vector.extract_strided_slice %38 {offsets = [0, 256], sizes = [8, 128], strides = [1, 1]} : vector<8x384xf32> to vector<8x128xf32>
    %58 = vector.broadcast %18 : vector<1x128xf32> to vector<8x128xf32>
    %59 = arith.addf %57, %58 : vector<8x128xf32>
    %60 = arith.mulf %47, %59 : vector<8x128xf32>
    %61 = arith.addf %56, %60 : vector<8x128xf32>
    %62 = math.tanh %61 : vector<8x128xf32>
    %63 = arith.subf %24, %62 : vector<8x128xf32>
    %64 = arith.mulf %55, %63 : vector<8x128xf32>
    %65 = arith.addf %62, %64 : vector<8x128xf32>
    %66 = vector.broadcast %39 : i32 to vector<8x1xi32>
    %67 = arith.cmpi slt, %66, %20 : vector<8x1xi32>
    %68 = arith.extui %67 : vector<8x1xi1> to vector<8x1xi32>
    %69 = arith.sitofp %68 : vector<8x1xi32> to vector<8x1xf32>
    %70 = arith.subf %65, %24 : vector<8x128xf32>
    %71 = vector.broadcast %69 : vector<8x1xf32> to vector<8x128xf32>
    %72 = arith.mulf %71, %70 : vector<8x128xf32>
    %73 = arith.addf %24, %72 : vector<8x128xf32>
    %74 = vector.broadcast %69 : vector<8x1xf32> to vector<8x128xf32>
    %75 = arith.mulf %74, %65 : vector<8x128xf32>
    %76 = vector.extract_strided_slice %33 {offsets = [0, 384], sizes = [8, 384], strides = [1, 1]} : vector<8x768xf32> to vector<8x384xf32>
    %77 = arith.addi %23, %26 : i32
    %78 = vector.extract_strided_slice %37 {offsets = [0, 0], sizes = [8, 128], strides = [1, 1]} : vector<8x384xf32> to vector<8x128xf32>
    %79 = vector.extract_strided_slice %76 {offsets = [0, 0], sizes = [8, 128], strides = [1, 1]} : vector<8x384xf32> to vector<8x128xf32>
    %80 = arith.addf %78, %79 : vector<8x128xf32>
    %81 = arith.negf %80 : vector<8x128xf32>
    %82 = math.exp %81 : vector<8x128xf32>
    %cst_36 = arith.constant 1.000000e+00 : f32
    %83 = vector.broadcast %cst_36 : f32 to vector<8x128xf32>
    %84 = arith.addf %83, %82 : vector<8x128xf32>
    %85 = arith.divf %83, %84 : vector<8x128xf32>
    %86 = vector.extract_strided_slice %37 {offsets = [0, 128], sizes = [8, 128], strides = [1, 1]} : vector<8x384xf32> to vector<8x128xf32>
    %87 = vector.extract_strided_slice %76 {offsets = [0, 128], sizes = [8, 128], strides = [1, 1]} : vector<8x384xf32> to vector<8x128xf32>
    %88 = arith.addf %86, %87 : vector<8x128xf32>
    %89 = arith.negf %88 : vector<8x128xf32>
    %90 = math.exp %89 : vector<8x128xf32>
    %cst_37 = arith.constant 1.000000e+00 : f32
    %91 = vector.broadcast %cst_37 : f32 to vector<8x128xf32>
    %92 = arith.addf %91, %90 : vector<8x128xf32>
    %93 = arith.divf %91, %92 : vector<8x128xf32>
    %94 = vector.extract_strided_slice %37 {offsets = [0, 256], sizes = [8, 128], strides = [1, 1]} : vector<8x384xf32> to vector<8x128xf32>
    %95 = vector.extract_strided_slice %76 {offsets = [0, 256], sizes = [8, 128], strides = [1, 1]} : vector<8x384xf32> to vector<8x128xf32>
    %96 = vector.broadcast %19 : vector<1x128xf32> to vector<8x128xf32>
    %97 = arith.addf %95, %96 : vector<8x128xf32>
    %98 = arith.mulf %85, %97 : vector<8x128xf32>
    %99 = arith.addf %94, %98 : vector<8x128xf32>
    %100 = math.tanh %99 : vector<8x128xf32>
    %101 = arith.subf %25, %100 : vector<8x128xf32>
    %102 = arith.mulf %93, %101 : vector<8x128xf32>
    %103 = arith.addf %100, %102 : vector<8x128xf32>
    %104 = vector.broadcast %77 : i32 to vector<8x1xi32>
    %105 = arith.cmpi slt, %104, %20 : vector<8x1xi32>
    %106 = arith.extui %105 : vector<8x1xi1> to vector<8x1xi32>
    %107 = arith.sitofp %106 : vector<8x1xi32> to vector<8x1xf32>
    %108 = arith.subf %103, %25 : vector<8x128xf32>
    %109 = vector.broadcast %107 : vector<8x1xf32> to vector<8x128xf32>
    %110 = arith.mulf %109, %108 : vector<8x128xf32>
    %111 = arith.addf %25, %110 : vector<8x128xf32>
    %112 = vector.broadcast %107 : vector<8x1xf32> to vector<8x128xf32>
    %113 = arith.mulf %112, %103 : vector<8x128xf32>
    %114 = arith.index_cast %28 : i32 to index
    %c0_38 = arith.constant 0 : index
    %115 = vector.load %arg11[%114, %c0_38] : memref<32x128xf32, #tpu.memory_space<vmem>>, vector<8x128xf32>
    tpu.vector_store %arg11[%114, %c0_38], %75 {strides = array<i32>} : memref<32x128xf32, #tpu.memory_space<vmem>>, vector<8x128xf32>,
    %116 = arith.index_cast %30 : i32 to index
    %c0_39 = arith.constant 0 : index
    %117 = vector.load %arg12[%116, %c0_39] : memref<32x128xf32, #tpu.memory_space<vmem>>, vector<8x128xf32>
    tpu.vector_store %arg12[%116, %c0_39], %113 {strides = array<i32>} : memref<32x128xf32, #tpu.memory_space<vmem>>, vector<8x128xf32>,
    %c1_i32_40 = arith.constant 1 : i32
    %c3_i32_41 = arith.constant 3 : i32
    %118 = arith.subi %c3_i32_41, %c1_i32_40 : i32
    %c8_i32_42 = arith.constant 8 : i32
    %119 = arith.muli %c1_i32_40, %c8_i32_42 : i32
    %120 = tpu.assume_multiple %119, 8 : i32
    %c8_i32_43 = arith.constant 8 : i32
    %121 = arith.muli %118, %c8_i32_43 : i32
    %122 = tpu.assume_multiple %121, 8 : i32
    %123 = tpu.concatenate %73, %111 in 1 : vector<8x128xf32>, vector<8x128xf32> -> vector<8x256xf32>
    %124 = arith.truncf %123 : vector<8x256xf32> to vector<8x256xbf16>
    %cst_44 = arith.constant dense<0.000000e+00> : vector<8x768xf32>
    %125 = tpu.matmul %124, %17, %cst_44 {dimension_numbers = #tpu.dot_dimension_numbers<[1], [0], [0], [1], [0, 0, 1, 1], [], []>} : vector<8x256xbf16>, vector<256x768xbf16>, vector<8x768xf32> -> vector<8x768xf32>
    %126 = arith.index_cast %120 : i32 to index
    %c0_45 = arith.constant 0 : index
    %127 = vector.load %arg14[%126, %c0_45] : memref<32x384xf32, #tpu.memory_space<vmem>>, vector<8x384xf32>
    %128 = arith.index_cast %122 : i32 to index
    %c0_46 = arith.constant 0 : index
    %129 = vector.load %arg15[%128, %c0_46] : memref<32x384xf32, #tpu.memory_space<vmem>>, vector<8x384xf32>
    %130 = vector.extract_strided_slice %125 {offsets = [0, 0], sizes = [8, 384], strides = [1, 1]} : vector<8x768xf32> to vector<8x384xf32>
    %131 = arith.addi %21, %c1_i32_40 : i32
    %132 = vector.extract_strided_slice %127 {offsets = [0, 0], sizes = [8, 128], strides = [1, 1]} : vector<8x384xf32> to vector<8x128xf32>
    %133 = vector.extract_strided_slice %130 {offsets = [0, 0], sizes = [8, 128], strides = [1, 1]} : vector<8x384xf32> to vector<8x128xf32>
    %134 = arith.addf %132, %133 : vector<8x128xf32>
    %135 = arith.negf %134 : vector<8x128xf32>
    %136 = math.exp %135 : vector<8x128xf32>
    %cst_47 = arith.constant 1.000000e+00 : f32
    %137 = vector.broadcast %cst_47 : f32 to vector<8x128xf32>
    %138 = arith.addf %137, %136 : vector<8x128xf32>
    %139 = arith.divf %137, %138 : vector<8x128xf32>
    %140 = vector.extract_strided_slice %127 {offsets = [0, 128], sizes = [8, 128], strides = [1, 1]} : vector<8x384xf32> to vector<8x128xf32>
    %141 = vector.extract_strided_slice %130 {offsets = [0, 128], sizes = [8, 128], strides = [1, 1]} : vector<8x384xf32> to vector<8x128xf32>
    %142 = arith.addf %140, %141 : vector<8x128xf32>
    %143 = arith.negf %142 : vector<8x128xf32>
    %144 = math.exp %143 : vector<8x128xf32>
    %cst_48 = arith.constant 1.000000e+00 : f32
    %145 = vector.broadcast %cst_48 : f32 to vector<8x128xf32>
    %146 = arith.addf %145, %144 : vector<8x128xf32>
    %147 = arith.divf %145, %146 : vector<8x128xf32>
    %148 = vector.extract_strided_slice %127 {offsets = [0, 256], sizes = [8, 128], strides = [1, 1]} : vector<8x384xf32> to vector<8x128xf32>
    %149 = vector.extract_strided_slice %130 {offsets = [0, 256], sizes = [8, 128], strides = [1, 1]} : vector<8x384xf32> to vector<8x128xf32>
    %150 = vector.broadcast %18 : vector<1x128xf32> to vector<8x128xf32>
    %151 = arith.addf %149, %150 : vector<8x128xf32>
    %152 = arith.mulf %139, %151 : vector<8x128xf32>
    %153 = arith.addf %148, %152 : vector<8x128xf32>
    %154 = math.tanh %153 : vector<8x128xf32>
    %155 = arith.subf %73, %154 : vector<8x128xf32>
    %156 = arith.mulf %147, %155 : vector<8x128xf32>
    %157 = arith.addf %154, %156 : vector<8x128xf32>
    %158 = vector.broadcast %131 : i32 to vector<8x1xi32>
    %159 = arith.cmpi slt, %158, %20 : vector<8x1xi32>
    %160 = arith.extui %159 : vector<8x1xi1> to vector<8x1xi32>
    %161 = arith.sitofp %160 : vector<8x1xi32> to vector<8x1xf32>
    %162 = arith.subf %157, %73 : vector<8x128xf32>
    %163 = vector.broadcast %161 : vector<8x1xf32> to vector<8x128xf32>
    %164 = arith.mulf %163, %162 : vector<8x128xf32>
    %165 = arith.addf %73, %164 : vector<8x128xf32>
    %166 = vector.broadcast %161 : vector<8x1xf32> to vector<8x128xf32>
    %167 = arith.mulf %166, %157 : vector<8x128xf32>
    %168 = vector.extract_strided_slice %125 {offsets = [0, 384], sizes = [8, 384], strides = [1, 1]} : vector<8x768xf32> to vector<8x384xf32>
    %169 = arith.addi %23, %118 : i32
    %170 = vector.extract_strided_slice %129 {offsets = [0, 0], sizes = [8, 128], strides = [1, 1]} : vector<8x384xf32> to vector<8x128xf32>
    %171 = vector.extract_strided_slice %168 {offsets = [0, 0], sizes = [8, 128], strides = [1, 1]} : vector<8x384xf32> to vector<8x128xf32>
    %172 = arith.addf %170, %171 : vector<8x128xf32>
    %173 = arith.negf %172 : vector<8x128xf32>
    %174 = math.exp %173 : vector<8x128xf32>
    %cst_49 = arith.constant 1.000000e+00 : f32
    %175 = vector.broadcast %cst_49 : f32 to vector<8x128xf32>
    %176 = arith.addf %175, %174 : vector<8x128xf32>
    %177 = arith.divf %175, %176 : vector<8x128xf32>
    %178 = vector.extract_strided_slice %129 {offsets = [0, 128], sizes = [8, 128], strides = [1, 1]} : vector<8x384xf32> to vector<8x128xf32>
    %179 = vector.extract_strided_slice %168 {offsets = [0, 128], sizes = [8, 128], strides = [1, 1]} : vector<8x384xf32> to vector<8x128xf32>
    %180 = arith.addf %178, %179 : vector<8x128xf32>
    %181 = arith.negf %180 : vector<8x128xf32>
    %182 = math.exp %181 : vector<8x128xf32>
    %cst_50 = arith.constant 1.000000e+00 : f32
    %183 = vector.broadcast %cst_50 : f32 to vector<8x128xf32>
    %184 = arith.addf %183, %182 : vector<8x128xf32>
    %185 = arith.divf %183, %184 : vector<8x128xf32>
    %186 = vector.extract_strided_slice %129 {offsets = [0, 256], sizes = [8, 128], strides = [1, 1]} : vector<8x384xf32> to vector<8x128xf32>
    %187 = vector.extract_strided_slice %168 {offsets = [0, 256], sizes = [8, 128], strides = [1, 1]} : vector<8x384xf32> to vector<8x128xf32>
    %188 = vector.broadcast %19 : vector<1x128xf32> to vector<8x128xf32>
    %189 = arith.addf %187, %188 : vector<8x128xf32>
    %190 = arith.mulf %177, %189 : vector<8x128xf32>
    %191 = arith.addf %186, %190 : vector<8x128xf32>
    %192 = math.tanh %191 : vector<8x128xf32>
    %193 = arith.subf %111, %192 : vector<8x128xf32>
    %194 = arith.mulf %185, %193 : vector<8x128xf32>
    %195 = arith.addf %192, %194 : vector<8x128xf32>
    %196 = vector.broadcast %169 : i32 to vector<8x1xi32>
    %197 = arith.cmpi slt, %196, %20 : vector<8x1xi32>
    %198 = arith.extui %197 : vector<8x1xi1> to vector<8x1xi32>
    %199 = arith.sitofp %198 : vector<8x1xi32> to vector<8x1xf32>
    %200 = arith.subf %195, %111 : vector<8x128xf32>
    %201 = vector.broadcast %199 : vector<8x1xf32> to vector<8x128xf32>
    %202 = arith.mulf %201, %200 : vector<8x128xf32>
    %203 = arith.addf %111, %202 : vector<8x128xf32>
    %204 = vector.broadcast %199 : vector<8x1xf32> to vector<8x128xf32>
    %205 = arith.mulf %204, %195 : vector<8x128xf32>
    %206 = arith.index_cast %120 : i32 to index
    %c0_51 = arith.constant 0 : index
    %207 = vector.load %arg11[%206, %c0_51] : memref<32x128xf32, #tpu.memory_space<vmem>>, vector<8x128xf32>
    tpu.vector_store %arg11[%206, %c0_51], %167 {strides = array<i32>} : memref<32x128xf32, #tpu.memory_space<vmem>>, vector<8x128xf32>,
    %208 = arith.index_cast %122 : i32 to index
    %c0_52 = arith.constant 0 : index
    %209 = vector.load %arg12[%208, %c0_52] : memref<32x128xf32, #tpu.memory_space<vmem>>, vector<8x128xf32>
    tpu.vector_store %arg12[%208, %c0_52], %205 {strides = array<i32>} : memref<32x128xf32, #tpu.memory_space<vmem>>, vector<8x128xf32>,
    %c2_i32 = arith.constant 2 : i32
    %c3_i32_53 = arith.constant 3 : i32
    %210 = arith.subi %c3_i32_53, %c2_i32 : i32
    %c8_i32_54 = arith.constant 8 : i32
    %211 = arith.muli %c2_i32, %c8_i32_54 : i32
    %212 = tpu.assume_multiple %211, 8 : i32
    %c8_i32_55 = arith.constant 8 : i32
    %213 = arith.muli %210, %c8_i32_55 : i32
    %214 = tpu.assume_multiple %213, 8 : i32
    %215 = tpu.concatenate %165, %203 in 1 : vector<8x128xf32>, vector<8x128xf32> -> vector<8x256xf32>
    %216 = arith.truncf %215 : vector<8x256xf32> to vector<8x256xbf16>
    %cst_56 = arith.constant dense<0.000000e+00> : vector<8x768xf32>
    %217 = tpu.matmul %216, %17, %cst_56 {dimension_numbers = #tpu.dot_dimension_numbers<[1], [0], [0], [1], [0, 0, 1, 1], [], []>} : vector<8x256xbf16>, vector<256x768xbf16>, vector<8x768xf32> -> vector<8x768xf32>
    %218 = arith.index_cast %212 : i32 to index
    %c0_57 = arith.constant 0 : index
    %219 = vector.load %arg14[%218, %c0_57] : memref<32x384xf32, #tpu.memory_space<vmem>>, vector<8x384xf32>
    %220 = arith.index_cast %214 : i32 to index
    %c0_58 = arith.constant 0 : index
    %221 = vector.load %arg15[%220, %c0_58] : memref<32x384xf32, #tpu.memory_space<vmem>>, vector<8x384xf32>
    %222 = vector.extract_strided_slice %217 {offsets = [0, 0], sizes = [8, 384], strides = [1, 1]} : vector<8x768xf32> to vector<8x384xf32>
    %223 = arith.addi %21, %c2_i32 : i32
    %224 = vector.extract_strided_slice %219 {offsets = [0, 0], sizes = [8, 128], strides = [1, 1]} : vector<8x384xf32> to vector<8x128xf32>
    %225 = vector.extract_strided_slice %222 {offsets = [0, 0], sizes = [8, 128], strides = [1, 1]} : vector<8x384xf32> to vector<8x128xf32>
    %226 = arith.addf %224, %225 : vector<8x128xf32>
    %227 = arith.negf %226 : vector<8x128xf32>
    %228 = math.exp %227 : vector<8x128xf32>
    %cst_59 = arith.constant 1.000000e+00 : f32
    %229 = vector.broadcast %cst_59 : f32 to vector<8x128xf32>
    %230 = arith.addf %229, %228 : vector<8x128xf32>
    %231 = arith.divf %229, %230 : vector<8x128xf32>
    %232 = vector.extract_strided_slice %219 {offsets = [0, 128], sizes = [8, 128], strides = [1, 1]} : vector<8x384xf32> to vector<8x128xf32>
    %233 = vector.extract_strided_slice %222 {offsets = [0, 128], sizes = [8, 128], strides = [1, 1]} : vector<8x384xf32> to vector<8x128xf32>
    %234 = arith.addf %232, %233 : vector<8x128xf32>
    %235 = arith.negf %234 : vector<8x128xf32>
    %236 = math.exp %235 : vector<8x128xf32>
    %cst_60 = arith.constant 1.000000e+00 : f32
    %237 = vector.broadcast %cst_60 : f32 to vector<8x128xf32>
    %238 = arith.addf %237, %236 : vector<8x128xf32>
    %239 = arith.divf %237, %238 : vector<8x128xf32>
    %240 = vector.extract_strided_slice %219 {offsets = [0, 256], sizes = [8, 128], strides = [1, 1]} : vector<8x384xf32> to vector<8x128xf32>
    %241 = vector.extract_strided_slice %222 {offsets = [0, 256], sizes = [8, 128], strides = [1, 1]} : vector<8x384xf32> to vector<8x128xf32>
    %242 = vector.broadcast %18 : vector<1x128xf32> to vector<8x128xf32>
    %243 = arith.addf %241, %242 : vector<8x128xf32>
    %244 = arith.mulf %231, %243 : vector<8x128xf32>
    %245 = arith.addf %240, %244 : vector<8x128xf32>
    %246 = math.tanh %245 : vector<8x128xf32>
    %247 = arith.subf %165, %246 : vector<8x128xf32>
    %248 = arith.mulf %239, %247 : vector<8x128xf32>
    %249 = arith.addf %246, %248 : vector<8x128xf32>
    %250 = vector.broadcast %223 : i32 to vector<8x1xi32>
    %251 = arith.cmpi slt, %250, %20 : vector<8x1xi32>
    %252 = arith.extui %251 : vector<8x1xi1> to vector<8x1xi32>
    %253 = arith.sitofp %252 : vector<8x1xi32> to vector<8x1xf32>
    %254 = arith.subf %249, %165 : vector<8x128xf32>
    %255 = vector.broadcast %253 : vector<8x1xf32> to vector<8x128xf32>
    %256 = arith.mulf %255, %254 : vector<8x128xf32>
    %257 = arith.addf %165, %256 : vector<8x128xf32>
    %258 = vector.broadcast %253 : vector<8x1xf32> to vector<8x128xf32>
    %259 = arith.mulf %258, %249 : vector<8x128xf32>
    %260 = vector.extract_strided_slice %217 {offsets = [0, 384], sizes = [8, 384], strides = [1, 1]} : vector<8x768xf32> to vector<8x384xf32>
    %261 = arith.addi %23, %210 : i32
    %262 = vector.extract_strided_slice %221 {offsets = [0, 0], sizes = [8, 128], strides = [1, 1]} : vector<8x384xf32> to vector<8x128xf32>
    %263 = vector.extract_strided_slice %260 {offsets = [0, 0], sizes = [8, 128], strides = [1, 1]} : vector<8x384xf32> to vector<8x128xf32>
    %264 = arith.addf %262, %263 : vector<8x128xf32>
    %265 = arith.negf %264 : vector<8x128xf32>
    %266 = math.exp %265 : vector<8x128xf32>
    %cst_61 = arith.constant 1.000000e+00 : f32
    %267 = vector.broadcast %cst_61 : f32 to vector<8x128xf32>
    %268 = arith.addf %267, %266 : vector<8x128xf32>
    %269 = arith.divf %267, %268 : vector<8x128xf32>
    %270 = vector.extract_strided_slice %221 {offsets = [0, 128], sizes = [8, 128], strides = [1, 1]} : vector<8x384xf32> to vector<8x128xf32>
    %271 = vector.extract_strided_slice %260 {offsets = [0, 128], sizes = [8, 128], strides = [1, 1]} : vector<8x384xf32> to vector<8x128xf32>
    %272 = arith.addf %270, %271 : vector<8x128xf32>
    %273 = arith.negf %272 : vector<8x128xf32>
    %274 = math.exp %273 : vector<8x128xf32>
    %cst_62 = arith.constant 1.000000e+00 : f32
    %275 = vector.broadcast %cst_62 : f32 to vector<8x128xf32>
    %276 = arith.addf %275, %274 : vector<8x128xf32>
    %277 = arith.divf %275, %276 : vector<8x128xf32>
    %278 = vector.extract_strided_slice %221 {offsets = [0, 256], sizes = [8, 128], strides = [1, 1]} : vector<8x384xf32> to vector<8x128xf32>
    %279 = vector.extract_strided_slice %260 {offsets = [0, 256], sizes = [8, 128], strides = [1, 1]} : vector<8x384xf32> to vector<8x128xf32>
    %280 = vector.broadcast %19 : vector<1x128xf32> to vector<8x128xf32>
    %281 = arith.addf %279, %280 : vector<8x128xf32>
    %282 = arith.mulf %269, %281 : vector<8x128xf32>
    %283 = arith.addf %278, %282 : vector<8x128xf32>
    %284 = math.tanh %283 : vector<8x128xf32>
    %285 = arith.subf %203, %284 : vector<8x128xf32>
    %286 = arith.mulf %277, %285 : vector<8x128xf32>
    %287 = arith.addf %284, %286 : vector<8x128xf32>
    %288 = vector.broadcast %261 : i32 to vector<8x1xi32>
    %289 = arith.cmpi slt, %288, %20 : vector<8x1xi32>
    %290 = arith.extui %289 : vector<8x1xi1> to vector<8x1xi32>
    %291 = arith.sitofp %290 : vector<8x1xi32> to vector<8x1xf32>
    %292 = arith.subf %287, %203 : vector<8x128xf32>
    %293 = vector.broadcast %291 : vector<8x1xf32> to vector<8x128xf32>
    %294 = arith.mulf %293, %292 : vector<8x128xf32>
    %295 = arith.addf %203, %294 : vector<8x128xf32>
    %296 = vector.broadcast %291 : vector<8x1xf32> to vector<8x128xf32>
    %297 = arith.mulf %296, %287 : vector<8x128xf32>
    %298 = arith.index_cast %212 : i32 to index
    %c0_63 = arith.constant 0 : index
    %299 = vector.load %arg11[%298, %c0_63] : memref<32x128xf32, #tpu.memory_space<vmem>>, vector<8x128xf32>
    tpu.vector_store %arg11[%298, %c0_63], %259 {strides = array<i32>} : memref<32x128xf32, #tpu.memory_space<vmem>>, vector<8x128xf32>,
    %300 = arith.index_cast %214 : i32 to index
    %c0_64 = arith.constant 0 : index
    %301 = vector.load %arg12[%300, %c0_64] : memref<32x128xf32, #tpu.memory_space<vmem>>, vector<8x128xf32>
    tpu.vector_store %arg12[%300, %c0_64], %297 {strides = array<i32>} : memref<32x128xf32, #tpu.memory_space<vmem>>, vector<8x128xf32>,
    %c3_i32_65 = arith.constant 3 : i32
    %c3_i32_66 = arith.constant 3 : i32
    %302 = arith.subi %c3_i32_66, %c3_i32_65 : i32
    %c8_i32_67 = arith.constant 8 : i32
    %303 = arith.muli %c3_i32_65, %c8_i32_67 : i32
    %304 = tpu.assume_multiple %303, 8 : i32
    %c8_i32_68 = arith.constant 8 : i32
    %305 = arith.muli %302, %c8_i32_68 : i32
    %306 = tpu.assume_multiple %305, 8 : i32
    %307 = tpu.concatenate %257, %295 in 1 : vector<8x128xf32>, vector<8x128xf32> -> vector<8x256xf32>
    %308 = arith.truncf %307 : vector<8x256xf32> to vector<8x256xbf16>
    %cst_69 = arith.constant dense<0.000000e+00> : vector<8x768xf32>
    %309 = tpu.matmul %308, %17, %cst_69 {dimension_numbers = #tpu.dot_dimension_numbers<[1], [0], [0], [1], [0, 0, 1, 1], [], []>} : vector<8x256xbf16>, vector<256x768xbf16>, vector<8x768xf32> -> vector<8x768xf32>
    %310 = arith.index_cast %304 : i32 to index
    %c0_70 = arith.constant 0 : index
    %311 = vector.load %arg14[%310, %c0_70] : memref<32x384xf32, #tpu.memory_space<vmem>>, vector<8x384xf32>
    %312 = arith.index_cast %306 : i32 to index
    %c0_71 = arith.constant 0 : index
    %313 = vector.load %arg15[%312, %c0_71] : memref<32x384xf32, #tpu.memory_space<vmem>>, vector<8x384xf32>
    %314 = vector.extract_strided_slice %309 {offsets = [0, 0], sizes = [8, 384], strides = [1, 1]} : vector<8x768xf32> to vector<8x384xf32>
    %315 = arith.addi %21, %c3_i32_65 : i32
    %316 = vector.extract_strided_slice %311 {offsets = [0, 0], sizes = [8, 128], strides = [1, 1]} : vector<8x384xf32> to vector<8x128xf32>
    %317 = vector.extract_strided_slice %314 {offsets = [0, 0], sizes = [8, 128], strides = [1, 1]} : vector<8x384xf32> to vector<8x128xf32>
    %318 = arith.addf %316, %317 : vector<8x128xf32>
    %319 = arith.negf %318 : vector<8x128xf32>
    %320 = math.exp %319 : vector<8x128xf32>
    %cst_72 = arith.constant 1.000000e+00 : f32
    %321 = vector.broadcast %cst_72 : f32 to vector<8x128xf32>
    %322 = arith.addf %321, %320 : vector<8x128xf32>
    %323 = arith.divf %321, %322 : vector<8x128xf32>
    %324 = vector.extract_strided_slice %311 {offsets = [0, 128], sizes = [8, 128], strides = [1, 1]} : vector<8x384xf32> to vector<8x128xf32>
    %325 = vector.extract_strided_slice %314 {offsets = [0, 128], sizes = [8, 128], strides = [1, 1]} : vector<8x384xf32> to vector<8x128xf32>
    %326 = arith.addf %324, %325 : vector<8x128xf32>
    %327 = arith.negf %326 : vector<8x128xf32>
    %328 = math.exp %327 : vector<8x128xf32>
    %cst_73 = arith.constant 1.000000e+00 : f32
    %329 = vector.broadcast %cst_73 : f32 to vector<8x128xf32>
    %330 = arith.addf %329, %328 : vector<8x128xf32>
    %331 = arith.divf %329, %330 : vector<8x128xf32>
    %332 = vector.extract_strided_slice %311 {offsets = [0, 256], sizes = [8, 128], strides = [1, 1]} : vector<8x384xf32> to vector<8x128xf32>
    %333 = vector.extract_strided_slice %314 {offsets = [0, 256], sizes = [8, 128], strides = [1, 1]} : vector<8x384xf32> to vector<8x128xf32>
    %334 = vector.broadcast %18 : vector<1x128xf32> to vector<8x128xf32>
    %335 = arith.addf %333, %334 : vector<8x128xf32>
    %336 = arith.mulf %323, %335 : vector<8x128xf32>
    %337 = arith.addf %332, %336 : vector<8x128xf32>
    %338 = math.tanh %337 : vector<8x128xf32>
    %339 = arith.subf %257, %338 : vector<8x128xf32>
    %340 = arith.mulf %331, %339 : vector<8x128xf32>
    %341 = arith.addf %338, %340 : vector<8x128xf32>
    %342 = vector.broadcast %315 : i32 to vector<8x1xi32>
    %343 = arith.cmpi slt, %342, %20 : vector<8x1xi32>
    %344 = arith.extui %343 : vector<8x1xi1> to vector<8x1xi32>
    %345 = arith.sitofp %344 : vector<8x1xi32> to vector<8x1xf32>
    %346 = arith.subf %341, %257 : vector<8x128xf32>
    %347 = vector.broadcast %345 : vector<8x1xf32> to vector<8x128xf32>
    %348 = arith.mulf %347, %346 : vector<8x128xf32>
    %349 = arith.addf %257, %348 : vector<8x128xf32>
    %350 = vector.broadcast %345 : vector<8x1xf32> to vector<8x128xf32>
    %351 = arith.mulf %350, %341 : vector<8x128xf32>
    %352 = vector.extract_strided_slice %309 {offsets = [0, 384], sizes = [8, 384], strides = [1, 1]} : vector<8x768xf32> to vector<8x384xf32>
    %353 = arith.addi %23, %302 : i32
    %354 = vector.extract_strided_slice %313 {offsets = [0, 0], sizes = [8, 128], strides = [1, 1]} : vector<8x384xf32> to vector<8x128xf32>
    %355 = vector.extract_strided_slice %352 {offsets = [0, 0], sizes = [8, 128], strides = [1, 1]} : vector<8x384xf32> to vector<8x128xf32>
    %356 = arith.addf %354, %355 : vector<8x128xf32>
    %357 = arith.negf %356 : vector<8x128xf32>
    %358 = math.exp %357 : vector<8x128xf32>
    %cst_74 = arith.constant 1.000000e+00 : f32
    %359 = vector.broadcast %cst_74 : f32 to vector<8x128xf32>
    %360 = arith.addf %359, %358 : vector<8x128xf32>
    %361 = arith.divf %359, %360 : vector<8x128xf32>
    %362 = vector.extract_strided_slice %313 {offsets = [0, 128], sizes = [8, 128], strides = [1, 1]} : vector<8x384xf32> to vector<8x128xf32>
    %363 = vector.extract_strided_slice %352 {offsets = [0, 128], sizes = [8, 128], strides = [1, 1]} : vector<8x384xf32> to vector<8x128xf32>
    %364 = arith.addf %362, %363 : vector<8x128xf32>
    %365 = arith.negf %364 : vector<8x128xf32>
    %366 = math.exp %365 : vector<8x128xf32>
    %cst_75 = arith.constant 1.000000e+00 : f32
    %367 = vector.broadcast %cst_75 : f32 to vector<8x128xf32>
    %368 = arith.addf %367, %366 : vector<8x128xf32>
    %369 = arith.divf %367, %368 : vector<8x128xf32>
    %370 = vector.extract_strided_slice %313 {offsets = [0, 256], sizes = [8, 128], strides = [1, 1]} : vector<8x384xf32> to vector<8x128xf32>
    %371 = vector.extract_strided_slice %352 {offsets = [0, 256], sizes = [8, 128], strides = [1, 1]} : vector<8x384xf32> to vector<8x128xf32>
    %372 = vector.broadcast %19 : vector<1x128xf32> to vector<8x128xf32>
    %373 = arith.addf %371, %372 : vector<8x128xf32>
    %374 = arith.mulf %361, %373 : vector<8x128xf32>
    %375 = arith.addf %370, %374 : vector<8x128xf32>
    %376 = math.tanh %375 : vector<8x128xf32>
    %377 = arith.subf %295, %376 : vector<8x128xf32>
    %378 = arith.mulf %369, %377 : vector<8x128xf32>
    %379 = arith.addf %376, %378 : vector<8x128xf32>
    %380 = vector.broadcast %353 : i32 to vector<8x1xi32>
    %381 = arith.cmpi slt, %380, %20 : vector<8x1xi32>
    %382 = arith.extui %381 : vector<8x1xi1> to vector<8x1xi32>
    %383 = arith.sitofp %382 : vector<8x1xi32> to vector<8x1xf32>
    %384 = arith.subf %379, %295 : vector<8x128xf32>
    %385 = vector.broadcast %383 : vector<8x1xf32> to vector<8x128xf32>
    %386 = arith.mulf %385, %384 : vector<8x128xf32>
    %387 = arith.addf %295, %386 : vector<8x128xf32>
    %388 = vector.broadcast %383 : vector<8x1xf32> to vector<8x128xf32>
    %389 = arith.mulf %388, %379 : vector<8x128xf32>
    %390 = arith.index_cast %304 : i32 to index
    %c0_76 = arith.constant 0 : index
    %391 = vector.load %arg11[%390, %c0_76] : memref<32x128xf32, #tpu.memory_space<vmem>>, vector<8x128xf32>
    tpu.vector_store %arg11[%390, %c0_76], %351 {strides = array<i32>} : memref<32x128xf32, #tpu.memory_space<vmem>>, vector<8x128xf32>,
    %392 = arith.index_cast %306 : i32 to index
    %c0_77 = arith.constant 0 : index
    %393 = vector.load %arg12[%392, %c0_77] : memref<32x128xf32, #tpu.memory_space<vmem>>, vector<8x128xf32>
    tpu.vector_store %arg12[%392, %c0_77], %389 {strides = array<i32>} : memref<32x128xf32, #tpu.memory_space<vmem>>, vector<8x128xf32>,
    %c4_i32_78 = arith.constant 4 : i32
    %c0_79 = arith.constant 0 : index
    %c0_80 = arith.constant 0 : index
    %394 = vector.load %arg16[%c0_79, %c0_80] : memref<8x256xf32, #tpu.memory_space<vmem>>, vector<8x128xf32>
    tpu.vector_store %arg16[%c0_79, %c0_80], %349 {strides = array<i32>} : memref<8x256xf32, #tpu.memory_space<vmem>>, vector<8x128xf32>,
    %c0_81 = arith.constant 0 : index
    %c128_82 = arith.constant 128 : index
    %395 = vector.load %arg16[%c0_81, %c128_82] : memref<8x256xf32, #tpu.memory_space<vmem>>, vector<8x128xf32>
    tpu.vector_store %arg16[%c0_81, %c128_82], %387 {strides = array<i32>} : memref<8x256xf32, #tpu.memory_space<vmem>>, vector<8x128xf32>,
    %c1_i32_83 = arith.constant 1 : i32
    %396 = arith.cmpi eq, %arg0, %c1_i32_83 : i32
    %397 = arith.extui %396 : i1 to i32
    %c0_i32_84 = arith.constant 0 : i32
    %398 = arith.cmpi ne, %397, %c0_i32_84 : i32
    scf.if %398 {
      %c0_85 = arith.constant 0 : index
      %c0_86 = arith.constant 0 : index
      %c0_87 = arith.constant 0 : index
      %399 = vector.load %arg13[%c0_85, %c0_86, %c0_87] : memref<2x8x128xf32, #tpu.memory_space<vmem>>, vector<1x8x128xf32>
      %400 = vector.shape_cast %399 : vector<1x8x128xf32> to vector<8x128xf32>
      %401 = vector.shape_cast %349 : vector<8x128xf32> to vector<1x8x128xf32>
      tpu.vector_store %arg13[%c0_85, %c0_86, %c0_87], %401 {strides = array<i32>} : memref<2x8x128xf32, #tpu.memory_space<vmem>>, vector<1x8x128xf32>,
      %c1 = arith.constant 1 : index
      %c0_88 = arith.constant 0 : index
      %c0_89 = arith.constant 0 : index
      %402 = vector.load %arg13[%c1, %c0_88, %c0_89] : memref<2x8x128xf32, #tpu.memory_space<vmem>>, vector<1x8x128xf32>
      %403 = vector.shape_cast %402 : vector<1x8x128xf32> to vector<8x128xf32>
      %404 = vector.shape_cast %387 : vector<8x128xf32> to vector<1x8x128xf32>
      tpu.vector_store %arg13[%c1, %c0_88, %c0_89], %404 {strides = array<i32>} : memref<2x8x128xf32, #tpu.memory_space<vmem>>, vector<1x8x128xf32>,
    } else {
    }
    return
  }
  func.func @transform_0(%arg0: i32) -> (i32, i32) {
    %c0_i32 = arith.constant 0 : i32
    %c0_i32_0 = arith.constant 0 : i32
    %c0_i32_1 = arith.constant 0 : i32
    return %c0_i32, %c0_i32_0 : i32, i32
  }
  func.func @transform_1(%arg0: i32) -> (i32, i32) {
    %c0_i32 = arith.constant 0 : i32
    %c0_i32_0 = arith.constant 0 : i32
    return %arg0, %c0_i32 : i32, i32
  }
  func.func @transform_2(%arg0: i32) -> (i32, i32) {
    %c1_i32 = arith.constant 1 : i32
    %0 = arith.subi %c1_i32, %arg0 : i32
    %c0_i32 = arith.constant 0 : i32
    %c0_i32_0 = arith.constant 0 : i32
    return %0, %c0_i32 : i32, i32
  }
  func.func @transform_3(%arg0: i32) -> (i32, i32) {
    %c0_i32 = arith.constant 0 : i32
    %c0_i32_0 = arith.constant 0 : i32
    %c0_i32_1 = arith.constant 0 : i32
    return %c0_i32, %c0_i32_0 : i32, i32
  }
  func.func @transform_4(%arg0: i32) -> (i32, i32) {
    %c0_i32 = arith.constant 0 : i32
    %c0_i32_0 = arith.constant 0 : i32
    %c0_i32_1 = arith.constant 0 : i32
    return %c0_i32, %c0_i32_0 : i32, i32
  }
  func.func @transform_5(%arg0: i32) -> (i32, i32) {
    %c0_i32 = arith.constant 0 : i32
    %c0_i32_0 = arith.constant 0 : i32
    %c0_i32_1 = arith.constant 0 : i32
    return %c0_i32, %c0_i32_0 : i32, i32
  }
  func.func @transform_6(%arg0: i32) -> (i32, i32) {
    %c0_i32 = arith.constant 0 : i32
    %c0_i32_0 = arith.constant 0 : i32
    %c0_i32_1 = arith.constant 0 : i32
    return %c0_i32, %c0_i32_0 : i32, i32
  }
  func.func @transform_7(%arg0: i32) -> (i32, i32) {
    %c0_i32 = arith.constant 0 : i32
    %c0_i32_0 = arith.constant 0 : i32
    %c0_i32_1 = arith.constant 0 : i32
    return %c0_i32, %c0_i32_0 : i32, i32
  }
  func.func @transform_8(%arg0: i32) -> (i32, i32) {
    %c0_i32 = arith.constant 0 : i32
    %c0_i32_0 = arith.constant 0 : i32
    %c0_i32_1 = arith.constant 0 : i32
    return %c0_i32, %c0_i32_0 : i32, i32
  }
  func.func @transform_9(%arg0: i32) -> (i32, i32) {
    %c0_i32 = arith.constant 0 : i32
    %c0_i32_0 = arith.constant 0 : i32
    %c0_i32_1 = arith.constant 0 : i32
    return %c0_i32, %c0_i32_0 : i32, i32
  }
  func.func @transform_10(%arg0: i32) -> (i32, i32) {
    %c0_i32 = arith.constant 0 : i32
    %c0_i32_0 = arith.constant 0 : i32
    return %arg0, %c0_i32 : i32, i32
  }
  func.func @transform_11(%arg0: i32) -> (i32, i32) {
    %c1_i32 = arith.constant 1 : i32
    %0 = arith.subi %c1_i32, %arg0 : i32
    %c0_i32 = arith.constant 0 : i32
    %c0_i32_0 = arith.constant 0 : i32
    return %0, %c0_i32 : i32, i32
  }
  func.func @transform_12(%arg0: i32) -> (i32, i32, i32) {
    %c0_i32 = arith.constant 0 : i32
    %c0_i32_0 = arith.constant 0 : i32
    %c0_i32_1 = arith.constant 0 : i32
    %c0_i32_2 = arith.constant 0 : i32
    return %c0_i32, %c0_i32_0, %c0_i32_1 : i32, i32, i32
  }
}

</mosaic_0001>

<llo_original>
// kernel: tpu_custom_call.1
$region0: #{tpu_custom_call.1}
  #allocation0 [shape = 'u32[]', space=smem, size = 0x4, offset = 0x4, fixed_abs, tag = 'smem constant byte address 0x4 - core index']
  #allocation1 [shape = 'u32[144,128]{1,0:T(1,128)}', space=vmem, size = 0x12000, scoped, tag = 'internal scratch']
  #allocation2 [shape = 'f32[32,384]{1,0:T(8,128)}', space=vmem, size = 0xc000, scoped, tag = 'scratch operand']
  #allocation3 [shape = 'f32[32,384]{1,0:T(8,128)}', space=vmem, size = 0xc000, scoped, tag = 'scratch operand']
  #allocation4 [shape = 'f32[8,256]{1,0:T(8,128)}', space=vmem, size = 0x2000, scoped, tag = 'scratch operand']
  %s0 = inlined_call_operand.vmem [shape: s32[8,1], index: 0, kind: input, shape index: {}]
  %s1 = inlined_call_operand.hbm [shape: bf16[64,128], index: 1, kind: input, shape index: {}]
  %s2 = inlined_call_operand.hbm [shape: bf16[64,128], index: 2, kind: input, shape index: {}]
  %s3 = inlined_call_operand.hbm [shape: bf16[128,384], index: 3, kind: input, shape index: {}]
  %s4 = inlined_call_operand.hbm [shape: bf16[128,384], index: 4, kind: input, shape index: {}]
  %s5 = inlined_call_operand.vmem [shape: f32[1,384], index: 5, kind: input, shape index: {}]
  %s6 = inlined_call_operand.vmem [shape: f32[1,384], index: 6, kind: input, shape index: {}]
  %s7 = inlined_call_operand.hbm [shape: bf16[256,768], index: 7, kind: input, shape index: {}]
  %s8 = inlined_call_operand.vmem [shape: f32[1,128], index: 8, kind: input, shape index: {}]
  %s9 = inlined_call_operand.vmem [shape: f32[1,128], index: 9, kind: input, shape index: {}]
  %s10 = inlined_call_operand.hbm [shape: f32[64,128], index: 10, kind: output, shape index: {0}]
  %s11 = inlined_call_operand.hbm [shape: f32[64,128], index: 11, kind: output, shape index: {1}]
  %s12 = inlined_call_operand.hbm [shape: f32[2,8,128], index: 12, kind: output, shape index: {2}]
  %13 = xla_tuple %s10, %s11, %s12
  %s14 = sld [smem:[#allocation0]]
  $region117: #{tpu_custom_call.1} parent=0
    _
  %s16 = ssub.s32 1, %s14
  %s17 = scalar_select 0, %s16, %s14
  $region1: #{tpu_custom_call.1} parent=0
    #allocation5 [shape = 'u8[16384]{0}', space=vmem, size = 0x4000, scoped, tag = 'input window, operand 1']
    #allocation6 [shape = 's32[2]{0}', space=sflag, size = 0x8, scoped, tag = 'scoped memory for tpu_custom_call.1']
    #allocation7 [shape = 's32[2]{0}', space=sflag, size = 0x8, scoped, tag = 'scoped memory for tpu_custom_call.1']
    #allocation8 [shape = 'u8[16384]{0}', space=vmem, size = 0x4000, scoped, tag = 'input window, operand 2']
    #allocation9 [shape = 's32[2]{0}', space=sflag, size = 0x8, scoped, tag = 'scoped memory for tpu_custom_call.1']
    #allocation10 [shape = 'u8[98304]{0}', space=vmem, size = 0x18000, scoped, tag = 'input window, operand 3, single buffered']
    #allocation11 [shape = 'u8[98304]{0}', space=vmem, size = 0x18000, scoped, tag = 'input window, operand 4, single buffered']
    #allocation12 [shape = 's32[1]{0}', space=sflag, size = 0x4, scoped, tag = 'scoped memory for tpu_custom_call.1']
    #allocation13 [shape = 'u8[393216]{0}', space=vmem, size = 0x60000, scoped, tag = 'input window, operand 7, single buffered']
    #allocation14 [shape = 'u8[32768]{0}', space=vmem, size = 0x8000, scoped, tag = 'output window, operand 0']
    #allocation15 [shape = 'u8[32768]{0}', space=vmem, size = 0x8000, scoped, tag = 'output window, operand 1']
    #allocation16 [shape = 's32[2]{0}', space=sflag, size = 0x8, scoped, tag = 'scoped memory for tpu_custom_call.1']
    #allocation17 [shape = 'u8[8192]{0}', space=vmem, size = 0x2000, scoped, tag = 'output window, operand 2, single buffered']
    %18 = vsyncpa [#allocation6], 0
    %s19 = scalar_lea.sflag [#allocation6], 1
    %20 = vsyncpa %s19, 0
    %21 = vsyncpa [#allocation9], 0
    %s22 = scalar_lea.sflag [#allocation9], 1
    %23 = vsyncpa %s22, 0
    %24 = vsyncpa [#allocation12], 0
    %25 = vsyncpa [#allocation7], 0
    %s26 = scalar_lea.sflag [#allocation7], 1
    %27 = vsyncpa %s26, 0
    %28 = vsyncpa [#allocation16], 0
    %s29 = scalar_lea.sflag [#allocation16], 1
    %30 = vsyncpa %s29, 0
    loop: start=0, step=1, limit=4
    $region2: #{tpu_custom_call.1} parent=1 // loop_pre_header
      _
    $region3: #{tpu_custom_call.1} parent=1 // loop_header
      %s32 = sphi 0, %s36
      %p33 = scmp.ge.s32.totalorder %s32, 4
      %s40 = sphi 0, %s40
      %s42 = sphi 0, %s40
      %s43 = sphi 0, %s42
      %s57 = sphi 0, %s43
      %s63 = sphi 0, %s65
      %s66 = sphi 0, %s63
      %s67 = sphi 0, %s66
      %s83 = sphi 0, %s67
      %s91 = sphi 0, %s93
      %s94 = sphi 0, %s91
      %s95 = sphi 0, %s94
      %s111 = sphi 0, %s95
      %s115 = sphi 0, %s115
      %s117 = sphi 0, %s115
      %s118 = sphi 0, %s117
      %s132 = sphi 0, %s118
      %s136 = sphi 0, %s136
      %s138 = sphi 0, %s136
      %s139 = sphi 0, %s138
      %s153 = sphi 0, %s139
      %s157 = sphi 0, %s157
      %s159 = sphi 0, %s157
      %s160 = sphi 0, %s159
      %s174 = sphi 0, %s160
      %s178 = sphi 0, %s178
      %s180 = sphi 0, %s178
      %s181 = sphi 0, %s180
      %s195 = sphi 0, %s181
      %s199 = sphi 0, %s199
      %s201 = sphi 0, %s199
      %s202 = sphi 0, %s201
      %s216 = sphi 0, %s202
      %s220 = sphi 0, %s220
      %s222 = sphi 0, %s220
      %s223 = sphi 0, %s222
      %s237 = sphi 0, %s223
      %s241 = sphi 0, %s241
      %s243 = sphi 0, %s241
      %s244 = sphi 0, %s243
      %s258 = sphi 0, %s244
      %s264 = sphi 0, %s266
      %s267 = sphi 0, %s264
      %s268 = sphi 0, %s267
      %s284 = sphi 0, %s268
      %s292 = sphi 0, %s294
      %s295 = sphi 0, %s292
      %s296 = sphi 0, %s295
      %s312 = sphi 0, %s296
      %s316 = sphi 0, %s316
      %s318 = sphi 0, %s316
      %s319 = sphi 0, %s318
      %s333 = sphi 0, %s319
    $region4: #{tpu_custom_call.1} parent=1 // loop_header_branch
      %35 = sbr.rel (%p33) target = $region8
    $region5: #{tpu_custom_call.1} parent=1 // loop_body
      %s37 = ssub.s32 %s32, 1
      %s38 = ssub.s32 %s32, 2
      %s39 = sadd.s32 %s32, 1
      %s41 = sadd.s32 %s40, 1
      %p44 = scmp.eq.s32.totalorder %s32, 1
      %p45 = scmp.ne.s32.totalorder %s40, %s42
      %p46 = scmp.eq.s32.totalorder %s32, 0
      %p47 = por %p45, %p46
      %p48 = scmp.ne.s32.totalorder %s40, %s42
      %p49 = scmp.eq.s32.totalorder %s37, 1
      %p50 = por %p48, %p49
      %p51 = scmp.ne.s32.totalorder %s42, %s43
      %p52 = scmp.eq.s32.totalorder %s37, 0
      %p53 = por %p51, %p52
      %p54 = scmp.ne.s32.totalorder %s42, %s43
      %p55 = scmp.eq.s32.totalorder %s38, 1
      %p56 = por %p54, %p55
      %p58 = scmp.ne.s32.totalorder %s43, %s57
      %p59 = scmp.eq.s32.totalorder %s38, 0
      %p60 = por %p58, %p59
      %s61 = ssub.s32 %s32, %s39
      %p62 = scmp.eq.s32.totalorder %s61, 0
      %s64 = sadd.s32 %s63, 1
      %s65 = scalar_select %p62, %s63, %s64
      %p68 = pneg %p62
      %p69 = scmp.eq.s32.totalorder %s32, 1
      %p70 = por %p68, %p69
      %p71 = scmp.ne.s32.totalorder %s63, %s66
      %p72 = scmp.eq.s32.totalorder %s32, 0
      %p73 = por %p71, %p72
      %p74 = scmp.ne.s32.totalorder %s63, %s66
      %p75 = scmp.eq.s32.totalorder %s37, 1
      %p76 = por %p74, %p75
      %p77 = scmp.ne.s32.totalorder %s66, %s67
      %p78 = scmp.eq.s32.totalorder %s37, 0
      %p79 = por %p77, %p78
      %p80 = scmp.ne.s32.totalorder %s66, %s67
      %p81 = scmp.eq.s32.totalorder %s38, 1
      %p82 = por %p80, %p81
      %p84 = scmp.ne.s32.totalorder %s67, %s83
      %p85 = scmp.eq.s32.totalorder %s38, 0
      %p86 = por %p84, %p85
      %s87 = ssub.s32 1, %s32
      %s88 = ssub.s32 1, %s39
      %s89 = ssub.s32 %s87, %s88
      %p90 = scmp.eq.s32.totalorder %s89, 0
      %s92 = sadd.s32 %s91, 1
      %s93 = scalar_select %p90, %s91, %s92
      %p96 = pneg %p90
      %p97 = scmp.eq.s32.totalorder %s32, 1
      %p98 = por %p96, %p97
      %p99 = scmp.ne.s32.totalorder %s91, %s94
      %p100 = scmp.eq.s32.totalorder %s32, 0
      %p101 = por %p99, %p100
      %p102 = scmp.ne.s32.totalorder %s91, %s94
      %p103 = scmp.eq.s32.totalorder %s37, 1
      %p104 = por %p102, %p103
      %p105 = scmp.ne.s32.totalorder %s94, %s95
      %p106 = scmp.eq.s32.totalorder %s37, 0
      %p107 = por %p105, %p106
      %p108 = scmp.ne.s32.totalorder %s94, %s95
      %p109 = scmp.eq.s32.totalorder %s38, 1
      %p110 = por %p108, %p109
      %p112 = scmp.ne.s32.totalorder %s95, %s111
      %p113 = scmp.eq.s32.totalorder %s38, 0
      %p114 = por %p112, %p113
      %s116 = sadd.s32 %s115, 1
      %p119 = scmp.eq.s32.totalorder %s32, 1
      %p120 = scmp.ne.s32.totalorder %s115, %s117
      %p121 = scmp.eq.s32.totalorder %s32, 0
      %p122 = por %p120, %p121
      %p123 = scmp.ne.s32.totalorder %s115, %s117
      %p124 = scmp.eq.s32.totalorder %s37, 1
      %p125 = por %p123, %p124
      %p126 = scmp.ne.s32.totalorder %s117, %s118
      %p127 = scmp.eq.s32.totalorder %s37, 0
      %p128 = por %p126, %p127
      %p129 = scmp.ne.s32.totalorder %s117, %s118
      %p130 = scmp.eq.s32.totalorder %s38, 1
      %p131 = por %p129, %p130
      %p133 = scmp.ne.s32.totalorder %s118, %s132
      %p134 = scmp.eq.s32.totalorder %s38, 0
      %p135 = por %p133, %p134
      %s137 = sadd.s32 %s136, 1
      %p140 = scmp.eq.s32.totalorder %s32, 1
      %p141 = scmp.ne.s32.totalorder %s136, %s138
      %p142 = scmp.eq.s32.totalorder %s32, 0
      %p143 = por %p141, %p142
      %p144 = scmp.ne.s32.totalorder %s136, %s138
      %p145 = scmp.eq.s32.totalorder %s37, 1
      %p146 = por %p144, %p145
      %p147 = scmp.ne.s32.totalorder %s138, %s139
      %p148 = scmp.eq.s32.totalorder %s37, 0
      %p149 = por %p147, %p148
      %p150 = scmp.ne.s32.totalorder %s138, %s139
      %p151 = scmp.eq.s32.totalorder %s38, 1
      %p152 = por %p150, %p151
      %p154 = scmp.ne.s32.totalorder %s139, %s153
      %p155 = scmp.eq.s32.totalorder %s38, 0
      %p156 = por %p154, %p155
      %s158 = sadd.s32 %s157, 1
      %p161 = scmp.eq.s32.totalorder %s32, 1
      %p162 = scmp.ne.s32.totalorder %s157, %s159
      %p163 = scmp.eq.s32.totalorder %s32, 0
      %p164 = por %p162, %p163
      %p165 = scmp.ne.s32.totalorder %s157, %s159
      %p166 = scmp.eq.s32.totalorder %s37, 1
      %p167 = por %p165, %p166
      %p168 = scmp.ne.s32.totalorder %s159, %s160
      %p169 = scmp.eq.s32.totalorder %s37, 0
      %p170 = por %p168, %p169
      %p171 = scmp.ne.s32.totalorder %s159, %s160
      %p172 = scmp.eq.s32.totalorder %s38, 1
      %p173 = por %p171, %p172
      %p175 = scmp.ne.s32.totalorder %s160, %s174
      %p176 = scmp.eq.s32.totalorder %s38, 0
      %p177 = por %p175, %p176
      %s179 = sadd.s32 %s178, 1
      %p182 = scmp.eq.s32.totalorder %s32, 1
      %p183 = scmp.ne.s32.totalorder %s178, %s180
      %p184 = scmp.eq.s32.totalorder %s32, 0
      %p185 = por %p183, %p184
      %p186 = scmp.ne.s32.totalorder %s178, %s180
      %p187 = scmp.eq.s32.totalorder %s37, 1
      %p188 = por %p186, %p187
      %p189 = scmp.ne.s32.totalorder %s180, %s181
      %p190 = scmp.eq.s32.totalorder %s37, 0
      %p191 = por %p189, %p190
      %p192 = scmp.ne.s32.totalorder %s180, %s181
      %p193 = scmp.eq.s32.totalorder %s38, 1
      %p194 = por %p192, %p193
      %p196 = scmp.ne.s32.totalorder %s181, %s195
      %p197 = scmp.eq.s32.totalorder %s38, 0
      %p198 = por %p196, %p197
      %s200 = sadd.s32 %s199, 1
      %p203 = scmp.eq.s32.totalorder %s32, 1
      %p204 = scmp.ne.s32.totalorder %s199, %s201
      %p205 = scmp.eq.s32.totalorder %s32, 0
      %p206 = por %p204, %p205
      %p207 = scmp.ne.s32.totalorder %s199, %s201
      %p208 = scmp.eq.s32.totalorder %s37, 1
      %p209 = por %p207, %p208
      %p210 = scmp.ne.s32.totalorder %s201, %s202
      %p211 = scmp.eq.s32.totalorder %s37, 0
      %p212 = por %p210, %p211
      %p213 = scmp.ne.s32.totalorder %s201, %s202
      %p214 = scmp.eq.s32.totalorder %s38, 1
      %p215 = por %p213, %p214
      %p217 = scmp.ne.s32.totalorder %s202, %s216
      %p218 = scmp.eq.s32.totalorder %s38, 0
      %p219 = por %p217, %p218
      %s221 = sadd.s32 %s220, 1
      %p224 = scmp.eq.s32.totalorder %s32, 1
      %p225 = scmp.ne.s32.totalorder %s220, %s222
      %p226 = scmp.eq.s32.totalorder %s32, 0
      %p227 = por %p225, %p226
      %p228 = scmp.ne.s32.totalorder %s220, %s222
      %p229 = scmp.eq.s32.totalorder %s37, 1
      %p230 = por %p228, %p229
      %p231 = scmp.ne.s32.totalorder %s222, %s223
      %p232 = scmp.eq.s32.totalorder %s37, 0
      %p233 = por %p231, %p232
      %p234 = scmp.ne.s32.totalorder %s222, %s223
      %p235 = scmp.eq.s32.totalorder %s38, 1
      %p236 = por %p234, %p235
      %p238 = scmp.ne.s32.totalorder %s223, %s237
      %p239 = scmp.eq.s32.totalorder %s38, 0
      %p240 = por %p238, %p239
      %s242 = sadd.s32 %s241, 1
      %p245 = scmp.eq.s32.totalorder %s32, 1
      %p246 = scmp.ne.s32.totalorder %s241, %s243
      %p247 = scmp.eq.s32.totalorder %s32, 0
      %p248 = por %p246, %p247
      %p249 = scmp.ne.s32.totalorder %s241, %s243
      %p250 = scmp.eq.s32.totalorder %s37, 1
      %p251 = por %p249, %p250
      %p252 = scmp.ne.s32.totalorder %s243, %s244
      %p253 = scmp.eq.s32.totalorder %s37, 0
      %p254 = por %p252, %p253
      %p255 = scmp.ne.s32.totalorder %s243, %s244
      %p256 = scmp.eq.s32.totalorder %s38, 1
      %p257 = por %p255, %p256
      %p259 = scmp.ne.s32.totalorder %s244, %s258
      %p260 = scmp.eq.s32.totalorder %s38, 0
      %p261 = por %p259, %p260
      %s262 = ssub.s32 %s32, %s39
      %p263 = scmp.eq.s32.totalorder %s262, 0
      %s265 = sadd.s32 %s264, 1
      %s266 = scalar_select %p263, %s264, %s265
      %p269 = pneg %p263
      %p270 = scmp.eq.s32.totalorder %s32, 1
      %p271 = por %p269, %p270
      %p272 = scmp.ne.s32.totalorder %s264, %s267
      %p273 = scmp.eq.s32.totalorder %s32, 0
      %p274 = por %p272, %p273
      %p275 = scmp.ne.s32.totalorder %s264, %s267
      %p276 = scmp.eq.s32.totalorder %s37, 1
      %p277 = por %p275, %p276
      %p278 = scmp.ne.s32.totalorder %s267, %s268
      %p279 = scmp.eq.s32.totalorder %s37, 0
      %p280 = por %p278, %p279
      %p281 = scmp.ne.s32.totalorder %s267, %s268
      %p282 = scmp.eq.s32.totalorder %s38, 1
      %p283 = por %p281, %p282
      %p285 = scmp.ne.s32.totalorder %s268, %s284
      %p286 = scmp.eq.s32.totalorder %s38, 0
      %p287 = por %p285, %p286
      %s288 = ssub.s32 1, %s32
      %s289 = ssub.s32 1, %s39
      %s290 = ssub.s32 %s288, %s289
      %p291 = scmp.eq.s32.totalorder %s290, 0
      %s293 = sadd.s32 %s292, 1
      %s294 = scalar_select %p291, %s292, %s293
      %p297 = pneg %p291
      %p298 = scmp.eq.s32.totalorder %s32, 1
      %p299 = por %p297, %p298
      %p300 = scmp.ne.s32.totalorder %s292, %s295
      %p301 = scmp.eq.s32.totalorder %s32, 0
      %p302 = por %p300, %p301
      %p303 = scmp.ne.s32.totalorder %s292, %s295
      %p304 = scmp.eq.s32.totalorder %s37, 1
      %p305 = por %p303, %p304
      %p306 = scmp.ne.s32.totalorder %s295, %s296
      %p307 = scmp.eq.s32.totalorder %s37, 0
      %p308 = por %p306, %p307
      %p309 = scmp.ne.s32.totalorder %s295, %s296
      %p310 = scmp.eq.s32.totalorder %s38, 1
      %p311 = por %p309, %p310
      %p313 = scmp.ne.s32.totalorder %s296, %s312
      %p314 = scmp.eq.s32.totalorder %s38, 0
      %p315 = por %p313, %p314
      %s317 = sadd.s32 %s316, 1
      %p320 = scmp.eq.s32.totalorder %s32, 1
      %p321 = scmp.ne.s32.totalorder %s316, %s318
      %p322 = scmp.eq.s32.totalorder %s32, 0
      %p323 = por %p321, %p322
      %p324 = scmp.ne.s32.totalorder %s316, %s318
      %p325 = scmp.eq.s32.totalorder %s37, 1
      %p326 = por %p324, %p325
      %p327 = scmp.ne.s32.totalorder %s318, %s319
      %p328 = scmp.eq.s32.totalorder %s37, 0
      %p329 = por %p327, %p328
      %p330 = scmp.ne.s32.totalorder %s318, %s319
      %p331 = scmp.eq.s32.totalorder %s38, 1
      %p332 = por %p330, %p331
      %p334 = scmp.ne.s32.totalorder %s319, %s333
      %p335 = scmp.eq.s32.totalorder %s38, 0
      %p336 = por %p334, %p335
      %p337 = scmp.le.s32.totalorder 1, %s32
      %p338 = scmp.lt.s32.totalorder %s32, 3
      %p339 = pnand %p337, %p338
      %p340 = pneg %p339
      // Predicated region
      $region9: #{tpu_custom_call.1} parent=5 // pred_check
        _
      $region10: #{tpu_custom_call.1} parent=5 // pred_check_branch
        %342 = sbr.rel (%p339) target = $region12
      $region11: #{tpu_custom_call.1} parent=5 // pred_region
        %s343 = ssub.s32 %s32, 1
        // Predicated region
        $region13: #{tpu_custom_call.1} parent=11 // pred_check
          %p344 = pneg %p53
        $region14: #{tpu_custom_call.1} parent=11 // pred_check_branch
          %346 = sbr.rel (%p344) target = $region16
        $region15: #{tpu_custom_call.1} parent=11 // pred_region
          _
        $region16: #{tpu_custom_call.1} parent=11 // pred_fallthru
          _
        // Predicated region
        $region17: #{tpu_custom_call.1} parent=11 // pred_check
          %p347 = pneg %p128
        $region18: #{tpu_custom_call.1} parent=11 // pred_check_branch
          %349 = sbr.rel (%p347) target = $region20
        $region19: #{tpu_custom_call.1} parent=11 // pred_region
          %s351 = ssub.s32 3072, 3072
          %352 = vsyncadd [#allocation9], %s351
          %s353 = sshll.u32 [#allocation10], 4
          %s354 = int_to_ptr.vmem [resolvable:$true] %s353
          %359 = dma.hbm_to_vmem [thread:$0]  %s3, 3072, %s354, [#allocation9], 192, 192, 12
        $region20: #{tpu_custom_call.1} parent=11 // pred_fallthru
          _
        // Predicated region
        $region21: #{tpu_custom_call.1} parent=11 // pred_check
          %p360 = pneg %p149
        $region22: #{tpu_custom_call.1} parent=11 // pred_check_branch
          %362 = sbr.rel (%p360) target = $region24
        $region23: #{tpu_custom_call.1} parent=11 // pred_region
          %s364 = ssub.s32 3072, 3072
          %365 = vsyncadd [#allocation12], %s364
          %s366 = sshll.u32 [#allocation11], 4
          %s367 = int_to_ptr.vmem [resolvable:$true] %s366
          %372 = dma.hbm_to_vmem [thread:$0]  %s4, 3072, %s367, [#allocation12], 192, 192, 12
        $region24: #{tpu_custom_call.1} parent=11 // pred_fallthru
          _
        // Predicated region
        $region25: #{tpu_custom_call.1} parent=11 // pred_check
          %p373 = pneg %p170
        $region26: #{tpu_custom_call.1} parent=11 // pred_check_branch
          %375 = sbr.rel (%p373) target = $region28
        $region27: #{tpu_custom_call.1} parent=11 // pred_region
          _
        $region28: #{tpu_custom_call.1} parent=11 // pred_fallthru
          _
        // Predicated region
        $region29: #{tpu_custom_call.1} parent=11 // pred_check
          %p376 = pneg %p191
        $region30: #{tpu_custom_call.1} parent=11 // pred_check_branch
          %378 = sbr.rel (%p376) target = $region32
        $region31: #{tpu_custom_call.1} parent=11 // pred_region
          _
        $region32: #{tpu_custom_call.1} parent=11 // pred_fallthru
          _
        // Predicated region
        $region33: #{tpu_custom_call.1} parent=11 // pred_check
          %p379 = pneg %p212
        $region34: #{tpu_custom_call.1} parent=11 // pred_check_branch
          %381 = sbr.rel (%p379) target = $region36
        $region35: #{tpu_custom_call.1} parent=11 // pred_region
          %s383 = ssub.s32 12288, 12288
          %384 = vsyncadd [#allocation12], %s383
          %s385 = sshll.u32 [#allocation13], 4
          %s386 = int_to_ptr.vmem [resolvable:$true] %s385
          %391 = dma.hbm_to_vmem [thread:$0]  %s7, 12288, %s386, [#allocation12], 384, 384, 24
        $region36: #{tpu_custom_call.1} parent=11 // pred_fallthru
          _
        // Predicated region
        $region37: #{tpu_custom_call.1} parent=11 // pred_check
          %p392 = pneg %p233
        $region38: #{tpu_custom_call.1} parent=11 // pred_check_branch
          %394 = sbr.rel (%p392) target = $region40
        $region39: #{tpu_custom_call.1} parent=11 // pred_region
          _
        $region40: #{tpu_custom_call.1} parent=11 // pred_fallthru
          _
        // Predicated region
        $region41: #{tpu_custom_call.1} parent=11 // pred_check
          %p395 = pneg %p254
        $region42: #{tpu_custom_call.1} parent=11 // pred_check_branch
          %397 = sbr.rel (%p395) target = $region44
        $region43: #{tpu_custom_call.1} parent=11 // pred_region
          _
        $region44: #{tpu_custom_call.1} parent=11 // pred_fallthru
          _
      $region12: #{tpu_custom_call.1} parent=5 // pred_fallthru
        _
      %p398 = scmp.lt.s32.totalorder %s32, 2
      // Predicated region
      $region45: #{tpu_custom_call.1} parent=5 // pred_check
        %p399 = pneg %p398
      $region46: #{tpu_custom_call.1} parent=5 // pred_check_branch
        %401 = sbr.rel (%p399) target = $region48
      $region47: #{tpu_custom_call.1} parent=5 // pred_region
        // Predicated region
        $region49: #{tpu_custom_call.1} parent=47 // pred_check
          %p402 = pneg %p73
        $region50: #{tpu_custom_call.1} parent=47 // pred_check_branch
          %404 = sbr.rel (%p402) target = $region52
        $region51: #{tpu_custom_call.1} parent=47 // pred_region
          %s405 = sand.u32 %s63, 1
          %s406 = scalar_lea.sflag [#allocation6], %s405
          %s407 = sand.u32 %s63, 1
          %s408 = smul.addr %s407, 16
          %s409 = scalar_lea.vmem [#allocation5], %s408
          %s410 = smul.u32 4, %s32
          %s412 = ssub.s32 256, 256
          %413 = vsyncadd %s406, %s412
          %s414 = smul.addr %s410, 64
          %s415 = scalar_lea.hbm %s1, %s414
          %s416 = sshll.u32 %s409, 4
          %s417 = int_to_ptr.vmem [resolvable:$true] %s416
          %422 = dma.hbm_to_vmem [thread:$0]  %s415, 256, %s417, %s406, 64, 64, 4
        $region52: #{tpu_custom_call.1} parent=47 // pred_fallthru
          _
        // Predicated region
        $region53: #{tpu_custom_call.1} parent=47 // pred_check
          %p423 = pneg %p101
        $region54: #{tpu_custom_call.1} parent=47 // pred_check_branch
          %425 = sbr.rel (%p423) target = $region56
        $region55: #{tpu_custom_call.1} parent=47 // pred_region
          %s426 = sand.u32 %s32, 1
          %s427 = scalar_lea.sflag [#allocation9], %s426
          %s428 = sand.u32 %s91, 1
          %s429 = smul.addr %s428, 16
          %s430 = scalar_lea.vmem [#allocation8], %s429
          %s431 = ssub.s32 1, %s32
          %s432 = smul.u32 4, %s431
          %s434 = ssub.s32 256, 256
          %435 = vsyncadd %s427, %s434
          %s436 = smul.addr %s432, 64
          %s437 = scalar_lea.hbm %s2, %s436
          %s438 = sshll.u32 %s430, 4
          %s439 = int_to_ptr.vmem [resolvable:$true] %s438
          %444 = dma.hbm_to_vmem [thread:$0]  %s437, 256, %s439, %s427, 64, 64, 4
        $region56: #{tpu_custom_call.1} parent=47 // pred_fallthru
          _
      $region48: #{tpu_custom_call.1} parent=5 // pred_fallthru
        _
      %p445 = scmp.le.s32.totalorder 1, %s32
      %p446 = scmp.lt.s32.totalorder %s32, 3
      %p447 = pnand %p445, %p446
      %p448 = pneg %p447
      // Predicated region
      $region57: #{tpu_custom_call.1} parent=5 // pred_check
        _
      $region58: #{tpu_custom_call.1} parent=5 // pred_check_branch
        %450 = sbr.rel (%p447) target = $region60
      $region59: #{tpu_custom_call.1} parent=5 // pred_region
        %s451 = ssub.s32 %s32, 1
        %s452 = sand.u32 %s66, 1
        %s453 = scalar_lea.sflag [#allocation6], %s452
        %s454 = sand.u32 %s66, 1
        %s455 = smul.addr %s454, 16
        %s456 = scalar_lea.vmem [#allocation5], %s455
        // Predicated region
        $region61: #{tpu_custom_call.1} parent=59 // pred_check
          %p457 = pneg %p79
        $region62: #{tpu_custom_call.1} parent=59 // pred_check_branch
          %459 = sbr.rel (%p457) target = $region64
        $region63: #{tpu_custom_call.1} parent=59 // pred_region
          %460 = dma.done %s453, 256
        $region64: #{tpu_custom_call.1} parent=59 // pred_fallthru
          _
        %s461 = sand.u32 %s37, 1
        %s462 = scalar_lea.sflag [#allocation9], %s461
        %s463 = sand.u32 %s94, 1
        %s464 = smul.addr %s463, 16
        %s465 = scalar_lea.vmem [#allocation8], %s464
        // Predicated region
        $region65: #{tpu_custom_call.1} parent=59 // pred_check
          %p466 = pneg %p107
        $region66: #{tpu_custom_call.1} parent=59 // pred_check_branch
          %468 = sbr.rel (%p466) target = $region68
        $region67: #{tpu_custom_call.1} parent=59 // pred_region
          %469 = dma.done %s462, 256
        $region68: #{tpu_custom_call.1} parent=59 // pred_fallthru
          _
        // Predicated region
        $region69: #{tpu_custom_call.1} parent=59 // pred_check
          %p470 = pneg %p128
        $region70: #{tpu_custom_call.1} parent=59 // pred_check_branch
          %472 = sbr.rel (%p470) target = $region72
        $region71: #{tpu_custom_call.1} parent=59 // pred_region
          %473 = dma.done [#allocation9], 3072
        $region72: #{tpu_custom_call.1} parent=59 // pred_fallthru
          _
        // Predicated region
        $region73: #{tpu_custom_call.1} parent=59 // pred_check
          %p474 = pneg %p149
        $region74: #{tpu_custom_call.1} parent=59 // pred_check_branch
          %476 = sbr.rel (%p474) target = $region76
        $region75: #{tpu_custom_call.1} parent=59 // pred_region
          %477 = dma.done [#allocation12], 3072
        $region76: #{tpu_custom_call.1} parent=59 // pred_fallthru
          _
        // Predicated region
        $region77: #{tpu_custom_call.1} parent=59 // pred_check
          %p478 = pneg %p212
        $region78: #{tpu_custom_call.1} parent=59 // pred_check_branch
          %480 = sbr.rel (%p478) target = $region80
        $region79: #{tpu_custom_call.1} parent=59 // pred_region
          %481 = dma.done [#allocation12], 12288
        $region80: #{tpu_custom_call.1} parent=59 // pred_fallthru
          _
        %p482 = pneg %p53
        %p483 = pneg %p50
        %s484 = sand.u32 %s66, 1
        %s485 = scalar_lea.sflag [#allocation6], %s484
        %s486 = sand.u32 %s66, 1
        %s487 = smul.addr %s486, 16
        %s488 = scalar_lea.vmem [#allocation5], %s487
        %p489 = pneg %p79
        %p490 = pneg %p76
        %s491 = sand.u32 %s37, 1
        %s492 = scalar_lea.sflag [#allocation9], %s491
        %s493 = sand.u32 %s94, 1
        %s494 = smul.addr %s493, 16
        %s495 = scalar_lea.vmem [#allocation8], %s494
        %p496 = pneg %p107
        %p497 = pneg %p104
        %p498 = pneg %p128
        %p499 = pneg %p125
        %p500 = pneg %p149
        %p501 = pneg %p146
        %p502 = pneg %p170
        %p503 = pneg %p167
        %p504 = pneg %p191
        %p505 = pneg %p188
        %p506 = pneg %p212
        %p507 = pneg %p209
        %p508 = pneg %p233
        %p509 = pneg %p230
        %p510 = pneg %p254
        %p511 = pneg %p251
        %p512 = pneg %p280
        %p513 = pneg %p277
        %s514 = sand.u32 %s267, 1
        %s515 = scalar_lea.sflag [#allocation7], %s514
        %s516 = sand.u32 %s267, 1
        %s517 = smul.addr %s516, 32
        %s518 = scalar_lea.vmem [#allocation14], %s517
        %p519 = pneg %p308
        %p520 = pneg %p305
        %s521 = sand.u32 %s37, 1
        %s522 = scalar_lea.sflag [#allocation16], %s521
        %s523 = sand.u32 %s295, 1
        %s524 = smul.addr %s523, 32
        %s525 = scalar_lea.vmem [#allocation15], %s524
        %p526 = pneg %p329
        %p527 = pneg %p326
        %s528 = smul.u32 4, %s37
        %s529 = ssub.s32 1, %s37
        %s530 = smul.u32 4, %s529
        %s531 = smul.u32 4, %s37
        %s532 = ssub.s32 1, %s37
        %s533 = smul.u32 4, %s532
        %p535 = scmp.eq.s32.totalorder %s37, 0
        // Predicated region
        $region81: #{tpu_custom_call.1} parent=59 // pred_check
          %p536 = pneg %p535
        $region82: #{tpu_custom_call.1} parent=59 // pred_check_branch
          %538 = sbr.rel (%p536) target = $region84
        $region83: #{tpu_custom_call.1} parent=59 // pred_region
          %539 = vst [vmem:[#allocation4] sm:$0xff] 0.0
          %540 = vst [vmem:[#allocation4 + $0x8] sm:$0xff] 0.0
        $region84: #{tpu_custom_call.1} parent=59 // pred_fallthru
          _
        %v541 = vld [vmem:[%s456] sm:$0xf]
        %v542 = vld [vmem:[%s456 + $0x4] sm:$0xf]
        %v543 = vld [vmem:[%s456 + $0x8] sm:$0xf]
        %v544 = vld [vmem:[%s456 + $0xc] sm:$0xf]
        %v545 = vld [vmem:[#allocation10] sm:$0xff]
        %v546 = vld [vmem:[#allocation10 + $0x8] sm:$0xf]
        %v547 = vld [vmem:[#allocation10 + $0xc] sm:$0xff]
        %v548 = vld [vmem:[#allocation10 + $0x14] sm:$0xf]
        %v549 = vld [vmem:[#allocation10 + $0x18] sm:$0xff]
        %v550 = vld [vmem:[#allocation10 + $0x20] sm:$0xf]
        %v551 = vld [vmem:[#allocation10 + $0x24] sm:$0xff]
        %v552 = vld [vmem:[#allocation10 + $0x2c] sm:$0xf]
        %v553 = vld [vmem:[#allocation10 + $0x30] sm:$0xff]
        %v554 = vld [vmem:[#allocation10 + $0x38] sm:$0xf]
        %v555 = vld [vmem:[#allocation10 + $0x3c] sm:$0xff]
        %v556 = vld [vmem:[#allocation10 + $0x44] sm:$0xf]
        %v557 = vld [vmem:[#allocation10 + $0x48] sm:$0xff]
        %v558 = vld [vmem:[#allocation10 + $0x50] sm:$0xf]
        %v559 = vld [vmem:[#allocation10 + $0x54] sm:$0xff]
        %v560 = vld [vmem:[#allocation10 + $0x5c] sm:$0xf]
        %v561 = vld [vmem:[#allocation10 + $0x60] sm:$0xff]
        %v562 = vld [vmem:[#allocation10 + $0x68] sm:$0xf]
        %v563 = vld [vmem:[#allocation10 + $0x6c] sm:$0xff]
        %v564 = vld [vmem:[#allocation10 + $0x74] sm:$0xf]
        %v565 = vld [vmem:[#allocation10 + $0x78] sm:$0xff]
        %v566 = vld [vmem:[#allocation10 + $0x80] sm:$0xf]
        %v567 = vld [vmem:[#allocation10 + $0x84] sm:$0xff]
        %v568 = vld [vmem:[#allocation10 + $0x8c] sm:$0xf]
        %v569 = vld [vmem:[#allocation10 + $0x90] sm:$0xff]
        %v570 = vld [vmem:[#allocation10 + $0x98] sm:$0xf]
        %v571 = vld [vmem:[#allocation10 + $0x9c] sm:$0xff]
        %v572 = vld [vmem:[#allocation10 + $0xa4] sm:$0xf]
        %v573 = vld [vmem:[#allocation10 + $0xa8] sm:$0xff]
        %v574 = vld [vmem:[#allocation10 + $0xb0] sm:$0xf]
        %v575 = vld [vmem:[#allocation10 + $0xb4] sm:$0xff]
        %v576 = vld [vmem:[#allocation10 + $0xbc] sm:$0xf]
        %v577 = vld [vmem:[%s5] sm:$0x7]
        %v579 = vlaneseq
        %v580 = vshrl.u32 %v579, 7
        %v581 = vsub.s32 0, %v580
        %v582 = vrot.slane %v577, %v581
        %v583 = vlaneseq
        %v584 = vshrl.u32 %v583, 7
        %v585 = vsub.s32 1, %v584
        %v586 = vrot.slane %v577, %v585
        %v587 = vlaneseq
        %v588 = vshrl.u32 %v587, 7
        %v589 = vsub.s32 2, %v588
        %v590 = vrot.slane %v577, %v589
        %v598 = vunpack.c.l.b16 %v541
        %v599 = vunpack.c.l.b16 %v542
        %v600 = vunpack.c.l.b16 %v543
        %v601 = vunpack.c.l.b16 %v544
        %v602 = vpack.c.b16 %v599, %v598
        %v603 = vpack.c.b16 %v601, %v600
        %v638 = vunpack.c.l.b16 %v545
        %v639 = vunpack.c.h.b16 %v545
        %v640 = vunpack.c.l.b16 %v546
        %v641 = vunpack.c.l.b16 %v547
        %v642 = vunpack.c.h.b16 %v547
        %v643 = vunpack.c.l.b16 %v548
        %v644 = vunpack.c.l.b16 %v549
        %v645 = vunpack.c.h.b16 %v549
        %v646 = vunpack.c.l.b16 %v550
        %v647 = vunpack.c.l.b16 %v551
        %v648 = vunpack.c.h.b16 %v551
        %v649 = vunpack.c.l.b16 %v552
        %v650 = vunpack.c.l.b16 %v553
        %v651 = vunpack.c.h.b16 %v553
        %v652 = vunpack.c.l.b16 %v554
        %v653 = vunpack.c.l.b16 %v555
        %v654 = vunpack.c.h.b16 %v555
        %v655 = vunpack.c.l.b16 %v556
        %v656 = vunpack.c.l.b16 %v557
        %v657 = vunpack.c.h.b16 %v557
        %v658 = vunpack.c.l.b16 %v558
        %v659 = vunpack.c.l.b16 %v559
        %v660 = vunpack.c.h.b16 %v559
        %v661 = vunpack.c.l.b16 %v560
        %v662 = vunpack.c.l.b16 %v561
        %v663 = vunpack.c.h.b16 %v561
        %v664 = vunpack.c.l.b16 %v562
        %v665 = vunpack.c.l.b16 %v563
        %v666 = vunpack.c.h.b16 %v563
        %v667 = vunpack.c.l.b16 %v564
        %v668 = vunpack.c.l.b16 %v565
        %v669 = vunpack.c.h.b16 %v565
        %v670 = vunpack.c.l.b16 %v566
        %v671 = vunpack.c.l.b16 %v567
        %v672 = vunpack.c.h.b16 %v567
        %v673 = vunpack.c.l.b16 %v568
        %v674 = vunpack.c.l.b16 %v569
        %v675 = vunpack.c.h.b16 %v569
        %v676 = vunpack.c.l.b16 %v570
        %v677 = vunpack.c.l.b16 %v571
        %v678 = vunpack.c.h.b16 %v571
        %v679 = vunpack.c.l.b16 %v572
        %v680 = vunpack.c.l.b16 %v573
        %v681 = vunpack.c.h.b16 %v573
        %v682 = vunpack.c.l.b16 %v574
        %v683 = vunpack.c.l.b16 %v575
        %v684 = vunpack.c.h.b16 %v575
        %v685 = vunpack.c.l.b16 %v576
        %v686 = vpack.c.b16 %v641, %v638
        %v687 = vpack.c.b16 %v642, %v639
        %v688 = vpack.c.b16 %v643, %v640
        %v689 = vpack.c.b16 %v647, %v644
        %v690 = vpack.c.b16 %v648, %v645
        %v691 = vpack.c.b16 %v649, %v646
        %v692 = vpack.c.b16 %v653, %v650
        %v693 = vpack.c.b16 %v654, %v651
        %v694 = vpack.c.b16 %v655, %v652
        %v695 = vpack.c.b16 %v659, %v656
        %v696 = vpack.c.b16 %v660, %v657
        %v697 = vpack.c.b16 %v661, %v658
        %v698 = vpack.c.b16 %v665, %v662
        %v699 = vpack.c.b16 %v666, %v663
        %v700 = vpack.c.b16 %v667, %v664
        %v701 = vpack.c.b16 %v671, %v668
        %v702 = vpack.c.b16 %v672, %v669
        %v703 = vpack.c.b16 %v673, %v670
        %v704 = vpack.c.b16 %v677, %v674
        %v705 = vpack.c.b16 %v678, %v675
        %v706 = vpack.c.b16 %v679, %v676
        %v707 = vpack.c.b16 %v683, %v680
        %v708 = vpack.c.b16 %v684, %v681
        %v709 = vpack.c.b16 %v685, %v682
        %734 = vmatprep.subr.bf16.mxu0 %v687
        %735 = vmatpush1.bf16.msra.mxu0 %v686
        %736 = vmatprep.subr.bf16.mxu0 %v690
        %737 = vmatpush1.bf16.msra.mxu0 %v689
        %738 = vmatprep.subr.bf16.mxu0 %v693
        %739 = vmatpush1.bf16.msra.mxu0 %v692
        %740 = vmatprep.subr.bf16.mxu0 %v696
        %741 = vmatpush1.bf16.msra.mxu0 %v695
        %742 = vmatprep.subr.bf16.mxu0 %v699
        %743 = vmatpush1.bf16.msra.mxu0 %v698
        %744 = vmatprep.subr.bf16.mxu0 %v702
        %745 = vmatpush1.bf16.msra.mxu0 %v701
        %746 = vmatprep.subr.bf16.mxu0 %v705
        %747 = vmatpush1.bf16.msra.mxu0 %v704
        %748 = vmatprep.subr.bf16.mxu0 %v708
        %749 = vmatpush1.bf16.msra.mxu0 %v707
        %750 = vmatprep.subr.bf16.mxu0 0
        %751 = vmatpush1.bf16.msra.mxu0 0
        %752 = vmatprep.subr.bf16.mxu0 0
        %753 = vmatpush1.bf16.msra.mxu0 0
        %754 = vmatprep.subr.bf16.mxu0 0
        %755 = vmatpush1.bf16.msra.mxu0 0
        %756 = vmatprep.subr.bf16.mxu0 0
        %757 = vmatpush1.bf16.msra.mxu0 0
        %758 = vmatprep.subr.bf16.mxu0 0
        %759 = vmatpush1.bf16.msra.mxu0 0
        %760 = vmatprep.subr.bf16.mxu0 0
        %761 = vmatpush1.bf16.msra.mxu0 0
        %762 = vmatprep.subr.bf16.mxu0 0
        %763 = vmatpush1.bf16.msra.mxu0 0
        %764 = vmatprep.subr.bf16.mxu0 0
        %765 = vmatpush1.bf16.msra.mxu0 0
        %766 = vmatprep.mubr.bf16.mxu0 0
        %767 = vmatmul.mubr.bf16.gmra.mrb[0].mxu0 %v602
        %v768 = vpop.f32.mrb[0].mxu0
        %v769 = vadd.f32 %v582, %v768
        %v770 = vpop.f32.mrb[0].mxu0
        %v771 = vadd.f32 %v586, %v770
        %v772 = vpop.f32.mrb[0].mxu0
        %v773 = vadd.f32 %v582, %v772
        %v774 = vpop.f32.mrb[0].mxu0
        %v775 = vadd.f32 %v586, %v774
        %776 = vmatprep.mubr.bf16.mxu0 0
        %777 = vmatmul.mubr.bf16.gmra.mrb[0].mxu0 %v603
        %v778 = vpop.f32.mrb[0].mxu0
        %v779 = vadd.f32 %v582, %v778
        %v780 = vpop.f32.mrb[0].mxu0
        %v781 = vadd.f32 %v586, %v780
        %v782 = vpop.f32.mrb[0].mxu0
        %v783 = vadd.f32 %v582, %v782
        %v784 = vpop.f32.mrb[0].mxu0
        %v785 = vadd.f32 %v586, %v784
        %786 = vdwg.mxu0
        %787 = vmatprep.subr.bf16.mxu0 0
        %788 = vmatpush1.bf16.msra.mxu0 %v688
        %789 = vmatprep.subr.bf16.mxu0 0
        %790 = vmatpush1.bf16.msra.mxu0 %v691
        %791 = vmatprep.subr.bf16.mxu0 0
        %792 = vmatpush1.bf16.msra.mxu0 %v694
        %793 = vmatprep.subr.bf16.mxu0 0
        %794 = vmatpush1.bf16.msra.mxu0 %v697
        %795 = vmatprep.subr.bf16.mxu0 0
        %796 = vmatpush1.bf16.msra.mxu0 %v700
        %797 = vmatprep.subr.bf16.mxu0 0
        %798 = vmatpush1.bf16.msra.mxu0 %v703
        %799 = vmatprep.subr.bf16.mxu0 0
        %800 = vmatpush1.bf16.msra.mxu0 %v706
        %801 = vmatprep.subr.bf16.mxu0 0
        %802 = vmatpush1.bf16.msra.mxu0 %v709
        %803 = vmatprep.subr.bf16.mxu0 0
        %804 = vmatpush1.bf16.msra.mxu0 0
        %805 = vmatprep.subr.bf16.mxu0 0
        %806 = vmatpush1.bf16.msra.mxu0 0
        %807 = vmatprep.subr.bf16.mxu0 0
        %808 = vmatpush1.bf16.msra.mxu0 0
        %809 = vmatprep.subr.bf16.mxu0 0
        %810 = vmatpush1.bf16.msra.mxu0 0
        %811 = vmatprep.subr.bf16.mxu0 0
        %812 = vmatpush1.bf16.msra.mxu0 0
        %813 = vmatprep.subr.bf16.mxu0 0
        %814 = vmatpush1.bf16.msra.mxu0 0
        %815 = vmatprep.subr.bf16.mxu0 0
        %816 = vmatpush1.bf16.msra.mxu0 0
        %817 = vmatprep.subr.bf16.mxu0 0
        %818 = vmatpush1.bf16.msra.mxu0 0
        %819 = vmatprep.mubr.bf16.mxu0 0
        %820 = vmatmul.mubr.bf16.gmra.mrb[0].mxu0 %v602
        %v821 = vpop.f32.mrb[0].mxu0
        %v822 = vadd.f32 %v590, %v821
        %v823 = vpop.f32.mrb[0].mxu0
        %v824 = vpop.f32.mrb[0].mxu0
        %v825 = vadd.f32 %v590, %v824
        %v826 = vpop.f32.mrb[0].mxu0
        %827 = vmatprep.mubr.bf16.mxu0 0
        %828 = vmatmul.mubr.bf16.gmra.mrb[0].mxu0 %v603
        %v829 = vpop.f32.mrb[0].mxu0
        %v830 = vadd.f32 %v590, %v829
        %v831 = vpop.f32.mrb[0].mxu0
        %v832 = vpop.f32.mrb[0].mxu0
        %v833 = vadd.f32 %v590, %v832
        %v834 = vpop.f32.mrb[0].mxu0
        %835 = vdwg.mxu0
        %836 = vst [vmem:[#allocation2] sm:$0xff] %v769
        %837 = vst [vmem:[#allocation2 + $0x8] sm:$0xff] %v771
        %838 = vst [vmem:[#allocation2 + $0x10] sm:$0xff] %v822
        %839 = vst [vmem:[#allocation2 + $0x18] sm:$0xff] %v773
        %840 = vst [vmem:[#allocation2 + $0x20] sm:$0xff] %v775
        %841 = vst [vmem:[#allocation2 + $0x28] sm:$0xff] %v825
        %842 = vst [vmem:[#allocation2 + $0x30] sm:$0xff] %v779
        %843 = vst [vmem:[#allocation2 + $0x38] sm:$0xff] %v781
        %844 = vst [vmem:[#allocation2 + $0x40] sm:$0xff] %v830
        %845 = vst [vmem:[#allocation2 + $0x48] sm:$0xff] %v783
        %846 = vst [vmem:[#allocation2 + $0x50] sm:$0xff] %v785
        %847 = vst [vmem:[#allocation2 + $0x58] sm:$0xff] %v833
        %v848 = vld [vmem:[%s465] sm:$0xf]
        %v849 = vld [vmem:[%s465 + $0x4] sm:$0xf]
        %v850 = vld [vmem:[%s465 + $0x8] sm:$0xf]
        %v851 = vld [vmem:[%s465 + $0xc] sm:$0xf]
        %v852 = vld [vmem:[#allocation11] sm:$0xff]
        %v853 = vld [vmem:[#allocation11 + $0x8] sm:$0xf]
        %v854 = vld [vmem:[#allocation11 + $0xc] sm:$0xff]
        %v855 = vld [vmem:[#allocation11 + $0x14] sm:$0xf]
        %v856 = vld [vmem:[#allocation11 + $0x18] sm:$0xff]
        %v857 = vld [vmem:[#allocation11 + $0x20] sm:$0xf]
        %v858 = vld [vmem:[#allocation11 + $0x24] sm:$0xff]
        %v859 = vld [vmem:[#allocation11 + $0x2c] sm:$0xf]
        %v860 = vld [vmem:[#allocation11 + $0x30] sm:$0xff]
        %v861 = vld [vmem:[#allocation11 + $0x38] sm:$0xf]
        %v862 = vld [vmem:[#allocation11 + $0x3c] sm:$0xff]
        %v863 = vld [vmem:[#allocation11 + $0x44] sm:$0xf]
        %v864 = vld [vmem:[#allocation11 + $0x48] sm:$0xff]
        %v865 = vld [vmem:[#allocation11 + $0x50] sm:$0xf]
        %v866 = vld [vmem:[#allocation11 + $0x54] sm:$0xff]
        %v867 = vld [vmem:[#allocation11 + $0x5c] sm:$0xf]
        %v868 = vld [vmem:[#allocation11 + $0x60] sm:$0xff]
        %v869 = vld [vmem:[#allocation11 + $0x68] sm:$0xf]
        %v870 = vld [vmem:[#allocation11 + $0x6c] sm:$0xff]
        %v871 = vld [vmem:[#allocation11 + $0x74] sm:$0xf]
        %v872 = vld [vmem:[#allocation11 + $0x78] sm:$0xff]
        %v873 = vld [vmem:[#allocation11 + $0x80] sm:$0xf]
        %v874 = vld [vmem:[#allocation11 + $0x84] sm:$0xff]
        %v875 = vld [vmem:[#allocation11 + $0x8c] sm:$0xf]
        %v876 = vld [vmem:[#allocation11 + $0x90] sm:$0xff]
        %v877 = vld [vmem:[#allocation11 + $0x98] sm:$0xf]
        %v878 = vld [vmem:[#allocation11 + $0x9c] sm:$0xff]
        %v879 = vld [vmem:[#allocation11 + $0xa4] sm:$0xf]
        %v880 = vld [vmem:[#allocation11 + $0xa8] sm:$0xff]
        %v881 = vld [vmem:[#allocation11 + $0xb0] sm:$0xf]
        %v882 = vld [vmem:[#allocation11 + $0xb4] sm:$0xff]
        %v883 = vld [vmem:[#allocation11 + $0xbc] sm:$0xf]
        %v884 = vld [vmem:[%s6] sm:$0x7]
        %v886 = vlaneseq
        %v887 = vshrl.u32 %v886, 7
        %v888 = vsub.s32 0, %v887
        %v889 = vrot.slane %v884, %v888
        %v890 = vlaneseq
        %v891 = vshrl.u32 %v890, 7
        %v892 = vsub.s32 1, %v891
        %v893 = vrot.slane %v884, %v892
        %v894 = vlaneseq
        %v895 = vshrl.u32 %v894, 7
        %v896 = vsub.s32 2, %v895
        %v897 = vrot.slane %v884, %v896
        %v905 = vunpack.c.l.b16 %v848
        %v906 = vunpack.c.l.b16 %v849
        %v907 = vunpack.c.l.b16 %v850
        %v908 = vunpack.c.l.b16 %v851
        %v909 = vpack.c.b16 %v906, %v905
        %v910 = vpack.c.b16 %v908, %v907
        %v945 = vunpack.c.l.b16 %v852
        %v946 = vunpack.c.h.b16 %v852
        %v947 = vunpack.c.l.b16 %v853
        %v948 = vunpack.c.l.b16 %v854
        %v949 = vunpack.c.h.b16 %v854
        %v950 = vunpack.c.l.b16 %v855
        %v951 = vunpack.c.l.b16 %v856
        %v952 = vunpack.c.h.b16 %v856
        %v953 = vunpack.c.l.b16 %v857
        %v954 = vunpack.c.l.b16 %v858
        %v955 = vunpack.c.h.b16 %v858
        %v956 = vunpack.c.l.b16 %v859
        %v957 = vunpack.c.l.b16 %v860
        %v958 = vunpack.c.h.b16 %v860
        %v959 = vunpack.c.l.b16 %v861
        %v960 = vunpack.c.l.b16 %v862
        %v961 = vunpack.c.h.b16 %v862
        %v962 = vunpack.c.l.b16 %v863
        %v963 = vunpack.c.l.b16 %v864
        %v964 = vunpack.c.h.b16 %v864
        %v965 = vunpack.c.l.b16 %v865
        %v966 = vunpack.c.l.b16 %v866
        %v967 = vunpack.c.h.b16 %v866
        %v968 = vunpack.c.l.b16 %v867
        %v969 = vunpack.c.l.b16 %v868
        %v970 = vunpack.c.h.b16 %v868
        %v971 = vunpack.c.l.b16 %v869
        %v972 = vunpack.c.l.b16 %v870
        %v973 = vunpack.c.h.b16 %v870
        %v974 = vunpack.c.l.b16 %v871
        %v975 = vunpack.c.l.b16 %v872
        %v976 = vunpack.c.h.b16 %v872
        %v977 = vunpack.c.l.b16 %v873
        %v978 = vunpack.c.l.b16 %v874
        %v979 = vunpack.c.h.b16 %v874
        %v980 = vunpack.c.l.b16 %v875
        %v981 = vunpack.c.l.b16 %v876
        %v982 = vunpack.c.h.b16 %v876
        %v983 = vunpack.c.l.b16 %v877
        %v984 = vunpack.c.l.b16 %v878
        %v985 = vunpack.c.h.b16 %v878
        %v986 = vunpack.c.l.b16 %v879
        %v987 = vunpack.c.l.b16 %v880
        %v988 = vunpack.c.h.b16 %v880
        %v989 = vunpack.c.l.b16 %v881
        %v990 = vunpack.c.l.b16 %v882
        %v991 = vunpack.c.h.b16 %v882
        %v992 = vunpack.c.l.b16 %v883
        %v993 = vpack.c.b16 %v948, %v945
        %v994 = vpack.c.b16 %v949, %v946
        %v995 = vpack.c.b16 %v950, %v947
        %v996 = vpack.c.b16 %v954, %v951
        %v997 = vpack.c.b16 %v955, %v952
        %v998 = vpack.c.b16 %v956, %v953
        %v999 = vpack.c.b16 %v960, %v957
        %v1000 = vpack.c.b16 %v961, %v958
        %v1001 = vpack.c.b16 %v962, %v959
        %v1002 = vpack.c.b16 %v966, %v963
        %v1003 = vpack.c.b16 %v967, %v964
        %v1004 = vpack.c.b16 %v968, %v965
        %v1005 = vpack.c.b16 %v972, %v969
        %v1006 = vpack.c.b16 %v973, %v970
        %v1007 = vpack.c.b16 %v974, %v971
        %v1008 = vpack.c.b16 %v978, %v975
        %v1009 = vpack.c.b16 %v979, %v976
        %v1010 = vpack.c.b16 %v980, %v977
        %v1011 = vpack.c.b16 %v984, %v981
        %v1012 = vpack.c.b16 %v985, %v982
        %v1013 = vpack.c.b16 %v986, %v983
        %v1014 = vpack.c.b16 %v990, %v987
        %v1015 = vpack.c.b16 %v991, %v988
        %v1016 = vpack.c.b16 %v992, %v989
        %1041 = vmatprep.subr.bf16.mxu0 %v994
        %1042 = vmatpush1.bf16.msra.mxu0 %v993
        %1043 = vmatprep.subr.bf16.mxu0 %v997
        %1044 = vmatpush1.bf16.msra.mxu0 %v996
        %1045 = vmatprep.subr.bf16.mxu0 %v1000
        %1046 = vmatpush1.bf16.msra.mxu0 %v999
        %1047 = vmatprep.subr.bf16.mxu0 %v1003
        %1048 = vmatpush1.bf16.msra.mxu0 %v1002
        %1049 = vmatprep.subr.bf16.mxu0 %v1006
        %1050 = vmatpush1.bf16.msra.mxu0 %v1005
        %1051 = vmatprep.subr.bf16.mxu0 %v1009
        %1052 = vmatpush1.bf16.msra.mxu0 %v1008
        %1053 = vmatprep.subr.bf16.mxu0 %v1012
        %1054 = vmatpush1.bf16.msra.mxu0 %v1011
        %1055 = vmatprep.subr.bf16.mxu0 %v1015
        %1056 = vmatpush1.bf16.msra.mxu0 %v1014
        %1057 = vmatprep.subr.bf16.mxu0 0
        %1058 = vmatpush1.bf16.msra.mxu0 0
        %1059 = vmatprep.subr.bf16.mxu0 0
        %1060 = vmatpush1.bf16.msra.mxu0 0
        %1061 = vmatprep.subr.bf16.mxu0 0
        %1062 = vmatpush1.bf16.msra.mxu0 0
        %1063 = vmatprep.subr.bf16.mxu0 0
        %1064 = vmatpush1.bf16.msra.mxu0 0
        %1065 = vmatprep.subr.bf16.mxu0 0
        %1066 = vmatpush1.bf16.msra.mxu0 0
        %1067 = vmatprep.subr.bf16.mxu0 0
        %1068 = vmatpush1.bf16.msra.mxu0 0
        %1069 = vmatprep.subr.bf16.mxu0 0
        %1070 = vmatpush1.bf16.msra.mxu0 0
        %1071 = vmatprep.subr.bf16.mxu0 0
        %1072 = vmatpush1.bf16.msra.mxu0 0
        %1073 = vmatprep.mubr.bf16.mxu0 0
        %1074 = vmatmul.mubr.bf16.gmra.mrb[0].mxu0 %v909
        %v1075 = vpop.f32.mrb[0].mxu0
        %v1076 = vadd.f32 %v889, %v1075
        %v1077 = vpop.f32.mrb[0].mxu0
        %v1078 = vadd.f32 %v893, %v1077
        %v1079 = vpop.f32.mrb[0].mxu0
        %v1080 = vadd.f32 %v889, %v1079
        %v1081 = vpop.f32.mrb[0].mxu0
        %v1082 = vadd.f32 %v893, %v1081
        %1083 = vmatprep.mubr.bf16.mxu0 0
        %1084 = vmatmul.mubr.bf16.gmra.mrb[0].mxu0 %v910
        %v1085 = vpop.f32.mrb[0].mxu0
        %v1086 = vadd.f32 %v889, %v1085
        %v1087 = vpop.f32.mrb[0].mxu0
        %v1088 = vadd.f32 %v893, %v1087
        %v1089 = vpop.f32.mrb[0].mxu0
        %v1090 = vadd.f32 %v889, %v1089
        %v1091 = vpop.f32.mrb[0].mxu0
        %v1092 = vadd.f32 %v893, %v1091
        %1093 = vdwg.mxu0
        %1094 = vmatprep.subr.bf16.mxu0 0
        %1095 = vmatpush1.bf16.msra.mxu0 %v995
        %1096 = vmatprep.subr.bf16.mxu0 0
        %1097 = vmatpush1.bf16.msra.mxu0 %v998
        %1098 = vmatprep.subr.bf16.mxu0 0
        %1099 = vmatpush1.bf16.msra.mxu0 %v1001
        %1100 = vmatprep.subr.bf16.mxu0 0
        %1101 = vmatpush1.bf16.msra.mxu0 %v1004
        %1102 = vmatprep.subr.bf16.mxu0 0
        %1103 = vmatpush1.bf16.msra.mxu0 %v1007
        %1104 = vmatprep.subr.bf16.mxu0 0
        %1105 = vmatpush1.bf16.msra.mxu0 %v1010
        %1106 = vmatprep.subr.bf16.mxu0 0
        %1107 = vmatpush1.bf16.msra.mxu0 %v1013
        %1108 = vmatprep.subr.bf16.mxu0 0
        %1109 = vmatpush1.bf16.msra.mxu0 %v1016
        %1110 = vmatprep.subr.bf16.mxu0 0
        %1111 = vmatpush1.bf16.msra.mxu0 0
        %1112 = vmatprep.subr.bf16.mxu0 0
        %1113 = vmatpush1.bf16.msra.mxu0 0
        %1114 = vmatprep.subr.bf16.mxu0 0
        %1115 = vmatpush1.bf16.msra.mxu0 0
        %1116 = vmatprep.subr.bf16.mxu0 0
        %1117 = vmatpush1.bf16.msra.mxu0 0
        %1118 = vmatprep.subr.bf16.mxu0 0
        %1119 = vmatpush1.bf16.msra.mxu0 0
        %1120 = vmatprep.subr.bf16.mxu0 0
        %1121 = vmatpush1.bf16.msra.mxu0 0
        %1122 = vmatprep.subr.bf16.mxu0 0
        %1123 = vmatpush1.bf16.msra.mxu0 0
        %1124 = vmatprep.subr.bf16.mxu0 0
        %1125 = vmatpush1.bf16.msra.mxu0 0
        %1126 = vmatprep.mubr.bf16.mxu0 0
        %1127 = vmatmul.mubr.bf16.gmra.mrb[0].mxu0 %v909
        %v1128 = vpop.f32.mrb[0].mxu0
        %v1129 = vadd.f32 %v897, %v1128
        %v1130 = vpop.f32.mrb[0].mxu0
        %v1131 = vpop.f32.mrb[0].mxu0
        %v1132 = vadd.f32 %v897, %v1131
        %v1133 = vpop.f32.mrb[0].mxu0
        %1134 = vmatprep.mubr.bf16.mxu0 0
        %1135 = vmatmul.mubr.bf16.gmra.mrb[0].mxu0 %v910
        %v1136 = vpop.f32.mrb[0].mxu0
        %v1137 = vadd.f32 %v897, %v1136
        %v1138 = vpop.f32.mrb[0].mxu0
        %v1139 = vpop.f32.mrb[0].mxu0
        %v1140 = vadd.f32 %v897, %v1139
        %v1141 = vpop.f32.mrb[0].mxu0
        %1142 = vdwg.mxu0
        %1143 = vst [vmem:[#allocation3] sm:$0xff] %v1076
        %1144 = vst [vmem:[#allocation3 + $0x8] sm:$0xff] %v1078
        %1145 = vst [vmem:[#allocation3 + $0x10] sm:$0xff] %v1129
        %1146 = vst [vmem:[#allocation3 + $0x18] sm:$0xff] %v1080
        %1147 = vst [vmem:[#allocation3 + $0x20] sm:$0xff] %v1082
        %1148 = vst [vmem:[#allocation3 + $0x28] sm:$0xff] %v1132
        %1149 = vst [vmem:[#allocation3 + $0x30] sm:$0xff] %v1086
        %1150 = vst [vmem:[#allocation3 + $0x38] sm:$0xff] %v1088
        %1151 = vst [vmem:[#allocation3 + $0x40] sm:$0xff] %v1137
        %1152 = vst [vmem:[#allocation3 + $0x48] sm:$0xff] %v1090
        %1153 = vst [vmem:[#allocation3 + $0x50] sm:$0xff] %v1092
        %1154 = vst [vmem:[#allocation3 + $0x58] sm:$0xff] %v1140
        %v1155 = vld [vmem:[#allocation13] sm:$0xff]
        %v1156 = vld [vmem:[#allocation13 + $0x8] sm:$0xff]
        %v1157 = vld [vmem:[#allocation13 + $0x10] sm:$0xff]
        %v1158 = vld [vmem:[#allocation13 + $0x18] sm:$0xff]
        %v1159 = vld [vmem:[#allocation13 + $0x20] sm:$0xff]
        %v1160 = vld [vmem:[#allocation13 + $0x28] sm:$0xff]
        %v1161 = vld [vmem:[#allocation13 + $0x30] sm:$0xff]
        %v1162 = vld [vmem:[#allocation13 + $0x38] sm:$0xff]
        %v1163 = vld [vmem:[#allocation13 + $0x40] sm:$0xff]
        %v1164 = vld [vmem:[#allocation13 + $0x48] sm:$0xff]
        %v1165 = vld [vmem:[#allocation13 + $0x50] sm:$0xff]
        %v1166 = vld [vmem:[#allocation13 + $0x58] sm:$0xff]
        %v1167 = vld [vmem:[#allocation13 + $0x60] sm:$0xff]
        %v1168 = vld [vmem:[#allocation13 + $0x68] sm:$0xff]
        %v1169 = vld [vmem:[#allocation13 + $0x70] sm:$0xff]
        %v1170 = vld [vmem:[#allocation13 + $0x78] sm:$0xff]
        %v1171 = vld [vmem:[#allocation13 + $0x80] sm:$0xff]
        %v1172 = vld [vmem:[#allocation13 + $0x88] sm:$0xff]
        %v1173 = vld [vmem:[#allocation13 + $0x90] sm:$0xff]
        %v1174 = vld [vmem:[#allocation13 + $0x98] sm:$0xff]
        %v1175 = vld [vmem:[#allocation13 + $0xa0] sm:$0xff]
        %v1176 = vld [vmem:[#allocation13 + $0xa8] sm:$0xff]
        %v1177 = vld [vmem:[#allocation13 + $0xb0] sm:$0xff]
        %v1178 = vld [vmem:[#allocation13 + $0xb8] sm:$0xff]
        %v1179 = vld [vmem:[#allocation13 + $0xc0] sm:$0xff]
        %v1180 = vld [vmem:[#allocation13 + $0xc8] sm:$0xff]
        %v1181 = vld [vmem:[#allocation13 + $0xd0] sm:$0xff]
        %v1182 = vld [vmem:[#allocation13 + $0xd8] sm:$0xff]
        %v1183 = vld [vmem:[#allocation13 + $0xe0] sm:$0xff]
        %v1184 = vld [vmem:[#allocation13 + $0xe8] sm:$0xff]
        %v1185 = vld [vmem:[#allocation13 + $0xf0] sm:$0xff]
        %v1186 = vld [vmem:[#allocation13 + $0xf8] sm:$0xff]
        %v1187 = vld [vmem:[#allocation13 + $0x100] sm:$0xff]
        %v1188 = vld [vmem:[#allocation13 + $0x108] sm:$0xff]
        %v1189 = vld [vmem:[#allocation13 + $0x110] sm:$0xff]
        %v1190 = vld [vmem:[#allocation13 + $0x118] sm:$0xff]
        %v1191 = vld [vmem:[#allocation13 + $0x120] sm:$0xff]
        %v1192 = vld [vmem:[#allocation13 + $0x128] sm:$0xff]
        %v1193 = vld [vmem:[#allocation13 + $0x130] sm:$0xff]
        %v1194 = vld [vmem:[#allocation13 + $0x138] sm:$0xff]
        %v1195 = vld [vmem:[#allocation13 + $0x140] sm:$0xff]
        %v1196 = vld [vmem:[#allocation13 + $0x148] sm:$0xff]
        %v1197 = vld [vmem:[#allocation13 + $0x150] sm:$0xff]
        %v1198 = vld [vmem:[#allocation13 + $0x158] sm:$0xff]
        %v1199 = vld [vmem:[#allocation13 + $0x160] sm:$0xff]
        %v1200 = vld [vmem:[#allocation13 + $0x168] sm:$0xff]
        %v1201 = vld [vmem:[#allocation13 + $0x170] sm:$0xff]
        %v1202 = vld [vmem:[#allocation13 + $0x178] sm:$0xff]
        %v1203 = vld [vmem:[#allocation13 + $0x180] sm:$0xff]
        %v1204 = vld [vmem:[#allocation13 + $0x188] sm:$0xff]
        %v1205 = vld [vmem:[#allocation13 + $0x190] sm:$0xff]
        %v1206 = vld [vmem:[#allocation13 + $0x198] sm:$0xff]
        %v1207 = vld [vmem:[#allocation13 + $0x1a0] sm:$0xff]
        %v1208 = vld [vmem:[#allocation13 + $0x1a8] sm:$0xff]
        %v1209 = vld [vmem:[#allocation13 + $0x1b0] sm:$0xff]
        %v1210 = vld [vmem:[#allocation13 + $0x1b8] sm:$0xff]
        %v1211 = vld [vmem:[#allocation13 + $0x1c0] sm:$0xff]
        %v1212 = vld [vmem:[#allocation13 + $0x1c8] sm:$0xff]
        %v1213 = vld [vmem:[#allocation13 + $0x1d0] sm:$0xff]
        %v1214 = vld [vmem:[#allocation13 + $0x1d8] sm:$0xff]
        %v1215 = vld [vmem:[#allocation13 + $0x1e0] sm:$0xff]
        %v1216 = vld [vmem:[#allocation13 + $0x1e8] sm:$0xff]
        %v1217 = vld [vmem:[#allocation13 + $0x1f0] sm:$0xff]
        %v1218 = vld [vmem:[#allocation13 + $0x1f8] sm:$0xff]
        %v1219 = vld [vmem:[#allocation13 + $0x200] sm:$0xff]
        %v1220 = vld [vmem:[#allocation13 + $0x208] sm:$0xff]
        %v1221 = vld [vmem:[#allocation13 + $0x210] sm:$0xff]
        %v1222 = vld [vmem:[#allocation13 + $0x218] sm:$0xff]
        %v1223 = vld [vmem:[#allocation13 + $0x220] sm:$0xff]
        %v1224 = vld [vmem:[#allocation13 + $0x228] sm:$0xff]
        %v1225 = vld [vmem:[#allocation13 + $0x230] sm:$0xff]
        %v1226 = vld [vmem:[#allocation13 + $0x238] sm:$0xff]
        %v1227 = vld [vmem:[#allocation13 + $0x240] sm:$0xff]
        %v1228 = vld [vmem:[#allocation13 + $0x248] sm:$0xff]
        %v1229 = vld [vmem:[#allocation13 + $0x250] sm:$0xff]
        %v1230 = vld [vmem:[#allocation13 + $0x258] sm:$0xff]
        %v1231 = vld [vmem:[#allocation13 + $0x260] sm:$0xff]
        %v1232 = vld [vmem:[#allocation13 + $0x268] sm:$0xff]
        %v1233 = vld [vmem:[#allocation13 + $0x270] sm:$0xff]
        %v1234 = vld [vmem:[#allocation13 + $0x278] sm:$0xff]
        %v1235 = vld [vmem:[#allocation13 + $0x280] sm:$0xff]
        %v1236 = vld [vmem:[#allocation13 + $0x288] sm:$0xff]
        %v1237 = vld [vmem:[#allocation13 + $0x290] sm:$0xff]
        %v1238 = vld [vmem:[#allocation13 + $0x298] sm:$0xff]
        %v1239 = vld [vmem:[#allocation13 + $0x2a0] sm:$0xff]
        %v1240 = vld [vmem:[#allocation13 + $0x2a8] sm:$0xff]
        %v1241 = vld [vmem:[#allocation13 + $0x2b0] sm:$0xff]
        %v1242 = vld [vmem:[#allocation13 + $0x2b8] sm:$0xff]
        %v1243 = vld [vmem:[#allocation13 + $0x2c0] sm:$0xff]
        %v1244 = vld [vmem:[#allocation13 + $0x2c8] sm:$0xff]
        %v1245 = vld [vmem:[#allocation13 + $0x2d0] sm:$0xff]
        %v1246 = vld [vmem:[#allocation13 + $0x2d8] sm:$0xff]
        %v1247 = vld [vmem:[#allocation13 + $0x2e0] sm:$0xff]
        %v1248 = vld [vmem:[#allocation13 + $0x2e8] sm:$0xff]
        %v1249 = vld [vmem:[#allocation13 + $0x2f0] sm:$0xff]
        %v1250 = vld [vmem:[#allocation13 + $0x2f8] sm:$0xff]
        %v1251 = vld [vmem:[%s8] sm:$0x1]
        %v1252 = vld [vmem:[%s9] sm:$0x1]
        %v1253 = vld [vmem:[%s0] sm:$0xff]
        %s1254 = smul.u32 %s37, 4
        %s1255 = ssub.s32 1, %s37
        %s1256 = smul.u32 %s1255, 4
        %v1257 = vld [vmem:[#allocation4] sm:$0xff]
        %v1258 = vld [vmem:[#allocation4 + $0x8] sm:$0xff]
        %v1259 = vpack.c.bf16 %v1257, %v1257
        %v1260 = vpack.c.bf16 %v1258, %v1258
        %v1357 = vunpack.c.l.b16 %v1155
        %v1358 = vunpack.c.h.b16 %v1155
        %v1359 = vunpack.c.l.b16 %v1156
        %v1360 = vunpack.c.h.b16 %v1156
        %v1361 = vunpack.c.l.b16 %v1157
        %v1362 = vunpack.c.h.b16 %v1157
        %v1363 = vunpack.c.l.b16 %v1158
        %v1364 = vunpack.c.h.b16 %v1158
        %v1365 = vunpack.c.l.b16 %v1159
        %v1366 = vunpack.c.h.b16 %v1159
        %v1367 = vunpack.c.l.b16 %v1160
        %v1368 = vunpack.c.h.b16 %v1160
        %v1369 = vunpack.c.l.b16 %v1161
        %v1370 = vunpack.c.h.b16 %v1161
        %v1371 = vunpack.c.l.b16 %v1162
        %v1372 = vunpack.c.h.b16 %v1162
        %v1373 = vunpack.c.l.b16 %v1163
        %v1374 = vunpack.c.h.b16 %v1163
        %v1375 = vunpack.c.l.b16 %v1164
        %v1376 = vunpack.c.h.b16 %v1164
        %v1377 = vunpack.c.l.b16 %v1165
        %v1378 = vunpack.c.h.b16 %v1165
        %v1379 = vunpack.c.l.b16 %v1166
        %v1380 = vunpack.c.h.b16 %v1166
        %v1381 = vunpack.c.l.b16 %v1167
        %v1382 = vunpack.c.h.b16 %v1167
        %v1383 = vunpack.c.l.b16 %v1168
        %v1384 = vunpack.c.h.b16 %v1168
        %v1385 = vunpack.c.l.b16 %v1169
        %v1386 = vunpack.c.h.b16 %v1169
        %v1387 = vunpack.c.l.b16 %v1170
        %v1388 = vunpack.c.h.b16 %v1170
        %v1389 = vunpack.c.l.b16 %v1171
        %v1390 = vunpack.c.h.b16 %v1171
        %v1391 = vunpack.c.l.b16 %v1172
        %v1392 = vunpack.c.h.b16 %v1172
        %v1393 = vunpack.c.l.b16 %v1173
        %v1394 = vunpack.c.h.b16 %v1173
        %v1395 = vunpack.c.l.b16 %v1174
        %v1396 = vunpack.c.h.b16 %v1174
        %v1397 = vunpack.c.l.b16 %v1175
        %v1398 = vunpack.c.h.b16 %v1175
        %v1399 = vunpack.c.l.b16 %v1176
        %v1400 = vunpack.c.h.b16 %v1176
        %v1401 = vunpack.c.l.b16 %v1177
        %v1402 = vunpack.c.h.b16 %v1177
        %v1403 = vunpack.c.l.b16 %v1178
        %v1404 = vunpack.c.h.b16 %v1178
        %v1405 = vunpack.c.l.b16 %v1179
        %v1406 = vunpack.c.h.b16 %v1179
        %v1407 = vunpack.c.l.b16 %v1180
        %v1408 = vunpack.c.h.b16 %v1180
        %v1409 = vunpack.c.l.b16 %v1181
        %v1410 = vunpack.c.h.b16 %v1181
        %v1411 = vunpack.c.l.b16 %v1182
        %v1412 = vunpack.c.h.b16 %v1182
        %v1413 = vunpack.c.l.b16 %v1183
        %v1414 = vunpack.c.h.b16 %v1183
        %v1415 = vunpack.c.l.b16 %v1184
        %v1416 = vunpack.c.h.b16 %v1184
        %v1417 = vunpack.c.l.b16 %v1185
        %v1418 = vunpack.c.h.b16 %v1185
        %v1419 = vunpack.c.l.b16 %v1186
        %v1420 = vunpack.c.h.b16 %v1186
        %v1421 = vunpack.c.l.b16 %v1187
        %v1422 = vunpack.c.h.b16 %v1187
        %v1423 = vunpack.c.l.b16 %v1188
        %v1424 = vunpack.c.h.b16 %v1188
        %v1425 = vunpack.c.l.b16 %v1189
        %v1426 = vunpack.c.h.b16 %v1189
        %v1427 = vunpack.c.l.b16 %v1190
        %v1428 = vunpack.c.h.b16 %v1190
        %v1429 = vunpack.c.l.b16 %v1191
        %v1430 = vunpack.c.h.b16 %v1191
        %v1431 = vunpack.c.l.b16 %v1192
        %v1432 = vunpack.c.h.b16 %v1192
        %v1433 = vunpack.c.l.b16 %v1193
        %v1434 = vunpack.c.h.b16 %v1193
        %v1435 = vunpack.c.l.b16 %v1194
        %v1436 = vunpack.c.h.b16 %v1194
        %v1437 = vunpack.c.l.b16 %v1195
        %v1438 = vunpack.c.h.b16 %v1195
        %v1439 = vunpack.c.l.b16 %v1196
        %v1440 = vunpack.c.h.b16 %v1196
        %v1441 = vunpack.c.l.b16 %v1197
        %v1442 = vunpack.c.h.b16 %v1197
        %v1443 = vunpack.c.l.b16 %v1198
        %v1444 = vunpack.c.h.b16 %v1198
        %v1445 = vunpack.c.l.b16 %v1199
        %v1446 = vunpack.c.h.b16 %v1199
        %v1447 = vunpack.c.l.b16 %v1200
        %v1448 = vunpack.c.h.b16 %v1200
        %v1449 = vunpack.c.l.b16 %v1201
        %v1450 = vunpack.c.h.b16 %v1201
        %v1451 = vunpack.c.l.b16 %v1202
        %v1452 = vunpack.c.h.b16 %v1202
        %v1453 = vunpack.c.l.b16 %v1203
        %v1454 = vunpack.c.h.b16 %v1203
        %v1455 = vunpack.c.l.b16 %v1204
        %v1456 = vunpack.c.h.b16 %v1204
        %v1457 = vunpack.c.l.b16 %v1205
        %v1458 = vunpack.c.h.b16 %v1205
        %v1459 = vunpack.c.l.b16 %v1206
        %v1460 = vunpack.c.h.b16 %v1206
        %v1461 = vunpack.c.l.b16 %v1207
        %v1462 = vunpack.c.h.b16 %v1207
        %v1463 = vunpack.c.l.b16 %v1208
        %v1464 = vunpack.c.h.b16 %v1208
        %v1465 = vunpack.c.l.b16 %v1209
        %v1466 = vunpack.c.h.b16 %v1209
        %v1467 = vunpack.c.l.b16 %v1210
        %v1468 = vunpack.c.h.b16 %v1210
        %v1469 = vunpack.c.l.b16 %v1211
        %v1470 = vunpack.c.h.b16 %v1211
        %v1471 = vunpack.c.l.b16 %v1212
        %v1472 = vunpack.c.h.b16 %v1212
        %v1473 = vunpack.c.l.b16 %v1213
        %v1474 = vunpack.c.h.b16 %v1213
        %v1475 = vunpack.c.l.b16 %v1214
        %v1476 = vunpack.c.h.b16 %v1214
        %v1477 = vunpack.c.l.b16 %v1215
        %v1478 = vunpack.c.h.b16 %v1215
        %v1479 = vunpack.c.l.b16 %v1216
        %v1480 = vunpack.c.h.b16 %v1216
        %v1481 = vunpack.c.l.b16 %v1217
        %v1482 = vunpack.c.h.b16 %v1217
        %v1483 = vunpack.c.l.b16 %v1218
        %v1484 = vunpack.c.h.b16 %v1218
        %v1485 = vunpack.c.l.b16 %v1219
        %v1486 = vunpack.c.h.b16 %v1219
        %v1487 = vunpack.c.l.b16 %v1220
        %v1488 = vunpack.c.h.b16 %v1220
        %v1489 = vunpack.c.l.b16 %v1221
        %v1490 = vunpack.c.h.b16 %v1221
        %v1491 = vunpack.c.l.b16 %v1222
        %v1492 = vunpack.c.h.b16 %v1222
        %v1493 = vunpack.c.l.b16 %v1223
        %v1494 = vunpack.c.h.b16 %v1223
        %v1495 = vunpack.c.l.b16 %v1224
        %v1496 = vunpack.c.h.b16 %v1224
        %v1497 = vunpack.c.l.b16 %v1225
        %v1498 = vunpack.c.h.b16 %v1225
        %v1499 = vunpack.c.l.b16 %v1226
        %v1500 = vunpack.c.h.b16 %v1226
        %v1501 = vunpack.c.l.b16 %v1227
        %v1502 = vunpack.c.h.b16 %v1227
        %v1503 = vunpack.c.l.b16 %v1228
        %v1504 = vunpack.c.h.b16 %v1228
        %v1505 = vunpack.c.l.b16 %v1229
        %v1506 = vunpack.c.h.b16 %v1229
        %v1507 = vunpack.c.l.b16 %v1230
        %v1508 = vunpack.c.h.b16 %v1230
        %v1509 = vunpack.c.l.b16 %v1231
        %v1510 = vunpack.c.h.b16 %v1231
        %v1511 = vunpack.c.l.b16 %v1232
        %v1512 = vunpack.c.h.b16 %v1232
        %v1513 = vunpack.c.l.b16 %v1233
        %v1514 = vunpack.c.h.b16 %v1233
        %v1515 = vunpack.c.l.b16 %v1234
        %v1516 = vunpack.c.h.b16 %v1234
        %v1517 = vunpack.c.l.b16 %v1235
        %v1518 = vunpack.c.h.b16 %v1235
        %v1519 = vunpack.c.l.b16 %v1236
        %v1520 = vunpack.c.h.b16 %v1236
        %v1521 = vunpack.c.l.b16 %v1237
        %v1522 = vunpack.c.h.b16 %v1237
        %v1523 = vunpack.c.l.b16 %v1238
        %v1524 = vunpack.c.h.b16 %v1238
        %v1525 = vunpack.c.l.b16 %v1239
        %v1526 = vunpack.c.h.b16 %v1239
        %v1527 = vunpack.c.l.b16 %v1240
        %v1528 = vunpack.c.h.b16 %v1240
        %v1529 = vunpack.c.l.b16 %v1241
        %v1530 = vunpack.c.h.b16 %v1241
        %v1531 = vunpack.c.l.b16 %v1242
        %v1532 = vunpack.c.h.b16 %v1242
        %v1533 = vunpack.c.l.b16 %v1243
        %v1534 = vunpack.c.h.b16 %v1243
        %v1535 = vunpack.c.l.b16 %v1244
        %v1536 = vunpack.c.h.b16 %v1244
        %v1537 = vunpack.c.l.b16 %v1245
        %v1538 = vunpack.c.h.b16 %v1245
        %v1539 = vunpack.c.l.b16 %v1246
        %v1540 = vunpack.c.h.b16 %v1246
        %v1541 = vunpack.c.l.b16 %v1247
        %v1542 = vunpack.c.h.b16 %v1247
        %v1543 = vunpack.c.l.b16 %v1248
        %v1544 = vunpack.c.h.b16 %v1248
        %v1545 = vunpack.c.l.b16 %v1249
        %v1546 = vunpack.c.h.b16 %v1249
        %v1547 = vunpack.c.l.b16 %v1250
        %v1548 = vunpack.c.h.b16 %v1250
        %v1549 = vpack.c.b16 %v1363, %v1357
        %v1550 = vpack.c.b16 %v1364, %v1358
        %v1551 = vpack.c.b16 %v1365, %v1359
        %v1552 = vpack.c.b16 %v1366, %v1360
        %v1553 = vpack.c.b16 %v1367, %v1361
        %v1554 = vpack.c.b16 %v1368, %v1362
        %v1555 = vpack.c.b16 %v1375, %v1369
        %v1556 = vpack.c.b16 %v1376, %v1370
        %v1557 = vpack.c.b16 %v1377, %v1371
        %v1558 = vpack.c.b16 %v1378, %v1372
        %v1559 = vpack.c.b16 %v1379, %v1373
        %v1560 = vpack.c.b16 %v1380, %v1374
        %v1561 = vpack.c.b16 %v1387, %v1381
        %v1562 = vpack.c.b16 %v1388, %v1382
        %v1563 = vpack.c.b16 %v1389, %v1383
        %v1564 = vpack.c.b16 %v1390, %v1384
        %v1565 = vpack.c.b16 %v1391, %v1385
        %v1566 = vpack.c.b16 %v1392, %v1386
        %v1567 = vpack.c.b16 %v1399, %v1393
        %v1568 = vpack.c.b16 %v1400, %v1394
        %v1569 = vpack.c.b16 %v1401, %v1395
        %v1570 = vpack.c.b16 %v1402, %v1396
        %v1571 = vpack.c.b16 %v1403, %v1397
        %v1572 = vpack.c.b16 %v1404, %v1398
        %v1573 = vpack.c.b16 %v1411, %v1405
        %v1574 = vpack.c.b16 %v1412, %v1406
        %v1575 = vpack.c.b16 %v1413, %v1407
        %v1576 = vpack.c.b16 %v1414, %v1408
        %v1577 = vpack.c.b16 %v1415, %v1409
        %v1578 = vpack.c.b16 %v1416, %v1410
        %v1579 = vpack.c.b16 %v1423, %v1417
        %v1580 = vpack.c.b16 %v1424, %v1418
        %v1581 = vpack.c.b16 %v1425, %v1419
        %v1582 = vpack.c.b16 %v1426, %v1420
        %v1583 = vpack.c.b16 %v1427, %v1421
        %v1584 = vpack.c.b16 %v1428, %v1422
        %v1585 = vpack.c.b16 %v1435, %v1429
        %v1586 = vpack.c.b16 %v1436, %v1430
        %v1587 = vpack.c.b16 %v1437, %v1431
        %v1588 = vpack.c.b16 %v1438, %v1432
        %v1589 = vpack.c.b16 %v1439, %v1433
        %v1590 = vpack.c.b16 %v1440, %v1434
        %v1591 = vpack.c.b16 %v1447, %v1441
        %v1592 = vpack.c.b16 %v1448, %v1442
        %v1593 = vpack.c.b16 %v1449, %v1443
        %v1594 = vpack.c.b16 %v1450, %v1444
        %v1595 = vpack.c.b16 %v1451, %v1445
        %v1596 = vpack.c.b16 %v1452, %v1446
        %v1597 = vpack.c.b16 %v1459, %v1453
        %v1598 = vpack.c.b16 %v1460, %v1454
        %v1599 = vpack.c.b16 %v1461, %v1455
        %v1600 = vpack.c.b16 %v1462, %v1456
        %v1601 = vpack.c.b16 %v1463, %v1457
        %v1602 = vpack.c.b16 %v1464, %v1458
        %v1603 = vpack.c.b16 %v1471, %v1465
        %v1604 = vpack.c.b16 %v1472, %v1466
        %v1605 = vpack.c.b16 %v1473, %v1467
        %v1606 = vpack.c.b16 %v1474, %v1468
        %v1607 = vpack.c.b16 %v1475, %v1469
        %v1608 = vpack.c.b16 %v1476, %v1470
        %v1609 = vpack.c.b16 %v1483, %v1477
        %v1610 = vpack.c.b16 %v1484, %v1478
        %v1611 = vpack.c.b16 %v1485, %v1479
        %v1612 = vpack.c.b16 %v1486, %v1480
        %v1613 = vpack.c.b16 %v1487, %v1481
        %v1614 = vpack.c.b16 %v1488, %v1482
        %v1615 = vpack.c.b16 %v1495, %v1489
        %v1616 = vpack.c.b16 %v1496, %v1490
        %v1617 = vpack.c.b16 %v1497, %v1491
        %v1618 = vpack.c.b16 %v1498, %v1492
        %v1619 = vpack.c.b16 %v1499, %v1493
        %v1620 = vpack.c.b16 %v1500, %v1494
        %v1621 = vpack.c.b16 %v1507, %v1501
        %v1622 = vpack.c.b16 %v1508, %v1502
        %v1623 = vpack.c.b16 %v1509, %v1503
        %v1624 = vpack.c.b16 %v1510, %v1504
        %v1625 = vpack.c.b16 %v1511, %v1505
        %v1626 = vpack.c.b16 %v1512, %v1506
        %v1627 = vpack.c.b16 %v1519, %v1513
        %v1628 = vpack.c.b16 %v1520, %v1514
        %v1629 = vpack.c.b16 %v1521, %v1515
        %v1630 = vpack.c.b16 %v1522, %v1516
        %v1631 = vpack.c.b16 %v1523, %v1517
        %v1632 = vpack.c.b16 %v1524, %v1518
        %v1633 = vpack.c.b16 %v1531, %v1525
        %v1634 = vpack.c.b16 %v1532, %v1526
        %v1635 = vpack.c.b16 %v1533, %v1527
        %v1636 = vpack.c.b16 %v1534, %v1528
        %v1637 = vpack.c.b16 %v1535, %v1529
        %v1638 = vpack.c.b16 %v1536, %v1530
        %v1639 = vpack.c.b16 %v1543, %v1537
        %v1640 = vpack.c.b16 %v1544, %v1538
        %v1641 = vpack.c.b16 %v1545, %v1539
        %v1642 = vpack.c.b16 %v1546, %v1540
        %v1643 = vpack.c.b16 %v1547, %v1541
        %v1644 = vpack.c.b16 %v1548, %v1542
        %1741 = vmatprep.subr.bf16.mxu0 %v1550
        %1742 = vmatpush1.bf16.msra.mxu0 %v1549
        %1743 = vmatprep.subr.bf16.mxu0 %v1556
        %1744 = vmatpush1.bf16.msra.mxu0 %v1555
        %1745 = vmatprep.subr.bf16.mxu0 %v1562
        %1746 = vmatpush1.bf16.msra.mxu0 %v1561
        %1747 = vmatprep.subr.bf16.mxu0 %v1568
        %1748 = vmatpush1.bf16.msra.mxu0 %v1567
        %1749 = vmatprep.subr.bf16.mxu0 %v1574
        %1750 = vmatpush1.bf16.msra.mxu0 %v1573
        %1751 = vmatprep.subr.bf16.mxu0 %v1580
        %1752 = vmatpush1.bf16.msra.mxu0 %v1579
        %1753 = vmatprep.subr.bf16.mxu0 %v1586
        %1754 = vmatpush1.bf16.msra.mxu0 %v1585
        %1755 = vmatprep.subr.bf16.mxu0 %v1592
        %1756 = vmatpush1.bf16.msra.mxu0 %v1591
        %1757 = vmatprep.subr.bf16.mxu0 %v1598
        %1758 = vmatpush1.bf16.msra.mxu0 %v1597
        %1759 = vmatprep.subr.bf16.mxu0 %v1604
        %1760 = vmatpush1.bf16.msra.mxu0 %v1603
        %1761 = vmatprep.subr.bf16.mxu0 %v1610
        %1762 = vmatpush1.bf16.msra.mxu0 %v1609
        %1763 = vmatprep.subr.bf16.mxu0 %v1616
        %1764 = vmatpush1.bf16.msra.mxu0 %v1615
        %1765 = vmatprep.subr.bf16.mxu0 %v1622
        %1766 = vmatpush1.bf16.msra.mxu0 %v1621
        %1767 = vmatprep.subr.bf16.mxu0 %v1628
        %1768 = vmatpush1.bf16.msra.mxu0 %v1627
        %1769 = vmatprep.subr.bf16.mxu0 %v1634
        %1770 = vmatpush1.bf16.msra.mxu0 %v1633
        %1771 = vmatprep.subr.bf16.mxu0 %v1640
        %1772 = vmatpush1.bf16.msra.mxu0 %v1639
        %1773 = vmatprep.mubr.bf16.mxu0 %v1260
        %1774 = vmatmul.mubr.bf16.gmra.mrb[0].mxu0 %v1259
        %v1775 = vpop.f32.mrb[0].mxu0
        %v1776 = vadd.f32 0.0, %v1775
        %v1777 = vpop.f32.mrb[0].mxu0
        %v1778 = vadd.f32 0.0, %v1777
        %v1779 = vpop.f32.mrb[0].mxu0
        %v1780 = vpop.f32.mrb[0].mxu0
        %1781 = vdwg.mxu0
        %1782 = vmatprep.subr.bf16.mxu0 %v1552
        %1783 = vmatpush1.bf16.msra.mxu0 %v1551
        %1784 = vmatprep.subr.bf16.mxu0 %v1558
        %1785 = vmatpush1.bf16.msra.mxu0 %v1557
        %1786 = vmatprep.subr.bf16.mxu0 %v1564
        %1787 = vmatpush1.bf16.msra.mxu0 %v1563
        %1788 = vmatprep.subr.bf16.mxu0 %v1570
        %1789 = vmatpush1.bf16.msra.mxu0 %v1569
        %1790 = vmatprep.subr.bf16.mxu0 %v1576
        %1791 = vmatpush1.bf16.msra.mxu0 %v1575
        %1792 = vmatprep.subr.bf16.mxu0 %v1582
        %1793 = vmatpush1.bf16.msra.mxu0 %v1581
        %1794 = vmatprep.subr.bf16.mxu0 %v1588
        %1795 = vmatpush1.bf16.msra.mxu0 %v1587
        %1796 = vmatprep.subr.bf16.mxu0 %v1594
        %1797 = vmatpush1.bf16.msra.mxu0 %v1593
        %1798 = vmatprep.subr.bf16.mxu0 %v1600
        %1799 = vmatpush1.bf16.msra.mxu0 %v1599
        %1800 = vmatprep.subr.bf16.mxu0 %v1606
        %1801 = vmatpush1.bf16.msra.mxu0 %v1605
        %1802 = vmatprep.subr.bf16.mxu0 %v1612
        %1803 = vmatpush1.bf16.msra.mxu0 %v1611
        %1804 = vmatprep.subr.bf16.mxu0 %v1618
        %1805 = vmatpush1.bf16.msra.mxu0 %v1617
        %1806 = vmatprep.subr.bf16.mxu0 %v1624
        %1807 = vmatpush1.bf16.msra.mxu0 %v1623
        %1808 = vmatprep.subr.bf16.mxu0 %v1630
        %1809 = vmatpush1.bf16.msra.mxu0 %v1629
        %1810 = vmatprep.subr.bf16.mxu0 %v1636
        %1811 = vmatpush1.bf16.msra.mxu0 %v1635
        %1812 = vmatprep.subr.bf16.mxu0 %v1642
        %1813 = vmatpush1.bf16.msra.mxu0 %v1641
        %1814 = vmatprep.mubr.bf16.mxu0 %v1260
        %1815 = vmatmul.mubr.bf16.gmra.mrb[0].mxu0 %v1259
        %v1816 = vpop.f32.mrb[0].mxu0
        %v1817 = vadd.f32 0.0, %v1816
        %v1818 = vpop.f32.mrb[0].mxu0
        %v1819 = vadd.f32 0.0, %v1818
        %v1820 = vpop.f32.mrb[0].mxu0
        %v1821 = vpop.f32.mrb[0].mxu0
        %1822 = vdwg.mxu0
        %1823 = vmatprep.subr.bf16.mxu0 %v1554
        %1824 = vmatpush1.bf16.msra.mxu0 %v1553
        %1825 = vmatprep.subr.bf16.mxu0 %v1560
        %1826 = vmatpush1.bf16.msra.mxu0 %v1559
        %1827 = vmatprep.subr.bf16.mxu0 %v1566
        %1828 = vmatpush1.bf16.msra.mxu0 %v1565
        %1829 = vmatprep.subr.bf16.mxu0 %v1572
        %1830 = vmatpush1.bf16.msra.mxu0 %v1571
        %1831 = vmatprep.subr.bf16.mxu0 %v1578
        %1832 = vmatpush1.bf16.msra.mxu0 %v1577
        %1833 = vmatprep.subr.bf16.mxu0 %v1584
        %1834 = vmatpush1.bf16.msra.mxu0 %v1583
        %1835 = vmatprep.subr.bf16.mxu0 %v1590
        %1836 = vmatpush1.bf16.msra.mxu0 %v1589
        %1837 = vmatprep.subr.bf16.mxu0 %v1596
        %1838 = vmatpush1.bf16.msra.mxu0 %v1595
        %1839 = vmatprep.subr.bf16.mxu0 %v1602
        %1840 = vmatpush1.bf16.msra.mxu0 %v1601
        %1841 = vmatprep.subr.bf16.mxu0 %v1608
        %1842 = vmatpush1.bf16.msra.mxu0 %v1607
        %1843 = vmatprep.subr.bf16.mxu0 %v1614
        %1844 = vmatpush1.bf16.msra.mxu0 %v1613
        %1845 = vmatprep.subr.bf16.mxu0 %v1620
        %1846 = vmatpush1.bf16.msra.mxu0 %v1619
        %1847 = vmatprep.subr.bf16.mxu0 %v1626
        %1848 = vmatpush1.bf16.msra.mxu0 %v1625
        %1849 = vmatprep.subr.bf16.mxu0 %v1632
        %1850 = vmatpush1.bf16.msra.mxu0 %v1631
        %1851 = vmatprep.subr.bf16.mxu0 %v1638
        %1852 = vmatpush1.bf16.msra.mxu0 %v1637
        %1853 = vmatprep.subr.bf16.mxu0 %v1644
        %1854 = vmatpush1.bf16.msra.mxu0 %v1643
        %1855 = vmatprep.mubr.bf16.mxu0 %v1260
        %1856 = vmatmul.mubr.bf16.gmra.mrb[0].mxu0 %v1259
        %v1857 = vpop.f32.mrb[0].mxu0
        %v1858 = vadd.f32 0.0, %v1857
        %v1859 = vpop.f32.mrb[0].mxu0
        %v1860 = vadd.f32 0.0, %v1859
        %v1861 = vpop.f32.mrb[0].mxu0
        %v1862 = vpop.f32.mrb[0].mxu0
        %1863 = vdwg.mxu0
        %s1864 = smul.u32 0, 3
        %s1865 = smul.addr %s1864, 8
        %s1866 = scalar_lea.vmem [#allocation2], %s1865
        %v1867 = vld [vmem:[%s1866] sm:$0xff]
        %v1868 = vld [vmem:[%s1866 + $0x8] sm:$0xff]
        %v1869 = vld [vmem:[%s1866 + $0x10] sm:$0xff]
        %s1870 = smul.u32 3, 3
        %s1871 = smul.addr %s1870, 8
        %s1872 = scalar_lea.vmem [#allocation3], %s1871
        %v1873 = vld [vmem:[%s1872] sm:$0xff]
        %v1874 = vld [vmem:[%s1872 + $0x8] sm:$0xff]
        %v1875 = vld [vmem:[%s1872 + $0x10] sm:$0xff]
        %v1876 = vadd.f32 %v1867, %v1776
        %v1877 = vxor.u32 %v1876, 2147483648
        %v1878 = vmul.f32 %v1877, 1.442695
        %v1879 = vpow.pop %v1878
        %v1880 = vadd.f32 %v1879, 1.0
        %v1881 = vrcp.pop %v1880
        %v1882 = vmul.f32 1.0, %v1881
        %v1883 = vadd.f32 %v1868, %v1778
        %v1884 = vxor.u32 %v1883, 2147483648
        %v1885 = vmul.f32 %v1884, 1.442695
        %v1886 = vpow.pop %v1885
        %v1887 = vadd.f32 %v1886, 1.0
        %v1888 = vrcp.pop %v1887
        %v1889 = vmul.f32 1.0, %v1888
        %v1891 = vlaneseq
        %v1892 = vshrl.u32 %v1891, 7
        %v1893 = vsub.s32 0, %v1892
        %v1894 = vrot.slane %v1251, %v1893
        %v1896 = vadd.f32 %v1817, %v1894
        %v1897 = vmul.f32 %v1882, %v1896
        %v1898 = vadd.f32 %v1869, %v1897
        %v1899 = vtanh.pop %v1898
        %v1900 = vsub.f32 %v1257, %v1899
        %v1901 = vmul.f32 %v1889, %v1900
        %v1902 = vadd.f32 %v1899, %v1901
        %v1903 = vstv %s1254
        %vm1904 = vcmp.lt.s32.totalorder %v1903, %v1253
        %v1905 = vsel %vm1904, 1, 0
        %v1906 = vcvt.s32.f32 %v1905
        %v1907 = vsub.f32 %v1902, %v1257
        %1909 = vset.pattern.permute.xlu0 0
        %1910 = vperm.xlu0 %1909, %v1906
        %v1911 = vpop.permute.xlu0 %1910
        %v1913 = vmul.f32 %v1911, %v1907
        %v1914 = vadd.f32 %v1257, %v1913
        %v1915 = vmul.f32 %v1911, %v1902
        %s1916 = sadd.s32 %s1256, 3
        %v1917 = vadd.f32 %v1873, %v1819
        %v1918 = vxor.u32 %v1917, 2147483648
        %v1919 = vmul.f32 %v1918, 1.442695
        %v1920 = vpow.pop %v1919
        %v1921 = vadd.f32 %v1920, 1.0
        %v1922 = vrcp.pop %v1921
        %v1923 = vmul.f32 1.0, %v1922
        %v1924 = vadd.f32 %v1874, %v1858
        %v1925 = vxor.u32 %v1924, 2147483648
        %v1926 = vmul.f32 %v1925, 1.442695
        %v1927 = vpow.pop %v1926
        %v1928 = vadd.f32 %v1927, 1.0
        %v1929 = vrcp.pop %v1928
        %v1930 = vmul.f32 1.0, %v1929
        %v1932 = vlaneseq
        %v1933 = vshrl.u32 %v1932, 7
        %v1934 = vsub.s32 0, %v1933
        %v1935 = vrot.slane %v1252, %v1934
        %v1937 = vadd.f32 %v1860, %v1935
        %v1938 = vmul.f32 %v1923, %v1937
        %v1939 = vadd.f32 %v1875, %v1938
        %v1940 = vtanh.pop %v1939
        %v1941 = vsub.f32 %v1258, %v1940
        %v1942 = vmul.f32 %v1930, %v1941
        %v1943 = vadd.f32 %v1940, %v1942
        %v1944 = vstv %s1916
        %vm1945 = vcmp.lt.s32.totalorder %v1944, %v1253
        %v1946 = vsel %vm1945, 1, 0
        %v1947 = vcvt.s32.f32 %v1946
        %v1948 = vsub.f32 %v1943, %v1258
        %1950 = vset.pattern.permute.xlu0 0
        %1951 = vperm.xlu0 %1950, %v1947
        %v1952 = vpop.permute.xlu0 %1951
        %v1954 = vmul.f32 %v1952, %v1948
        %v1955 = vadd.f32 %v1258, %v1954
        %v1956 = vmul.f32 %v1952, %v1943
        %1957 = vst [vmem:[%s518] sm:$0xff] %v1915
        %s1958 = scalar_lea.vmem %s525, 24 [#allocation15]
        %1959 = vst [vmem:[%s1958] sm:$0xff] %v1956
        %v1960 = vpack.c.bf16 %v1914, %v1914
        %v1961 = vpack.c.bf16 %v1955, %v1955
        %1962 = vmatprep.subr.bf16.mxu0 %v1550
        %1963 = vmatpush1.bf16.msra.mxu0 %v1549
        %1964 = vmatprep.subr.bf16.mxu0 %v1556
        %1965 = vmatpush1.bf16.msra.mxu0 %v1555
        %1966 = vmatprep.subr.bf16.mxu0 %v1562
        %1967 = vmatpush1.bf16.msra.mxu0 %v1561
        %1968 = vmatprep.subr.bf16.mxu0 %v1568
        %1969 = vmatpush1.bf16.msra.mxu0 %v1567
        %1970 = vmatprep.subr.bf16.mxu0 %v1574
        %1971 = vmatpush1.bf16.msra.mxu0 %v1573
        %1972 = vmatprep.subr.bf16.mxu0 %v1580
        %1973 = vmatpush1.bf16.msra.mxu0 %v1579
        %1974 = vmatprep.subr.bf16.mxu0 %v1586
        %1975 = vmatpush1.bf16.msra.mxu0 %v1585
        %1976 = vmatprep.subr.bf16.mxu0 %v1592
        %1977 = vmatpush1.bf16.msra.mxu0 %v1591
        %1978 = vmatprep.subr.bf16.mxu0 %v1598
        %1979 = vmatpush1.bf16.msra.mxu0 %v1597
        %1980 = vmatprep.subr.bf16.mxu0 %v1604
        %1981 = vmatpush1.bf16.msra.mxu0 %v1603
        %1982 = vmatprep.subr.bf16.mxu0 %v1610
        %1983 = vmatpush1.bf16.msra.mxu0 %v1609
        %1984 = vmatprep.subr.bf16.mxu0 %v1616
        %1985 = vmatpush1.bf16.msra.mxu0 %v1615
        %1986 = vmatprep.subr.bf16.mxu0 %v1622
        %1987 = vmatpush1.bf16.msra.mxu0 %v1621
        %1988 = vmatprep.subr.bf16.mxu0 %v1628
        %1989 = vmatpush1.bf16.msra.mxu0 %v1627
        %1990 = vmatprep.subr.bf16.mxu0 %v1634
        %1991 = vmatpush1.bf16.msra.mxu0 %v1633
        %1992 = vmatprep.subr.bf16.mxu0 %v1640
        %1993 = vmatpush1.bf16.msra.mxu0 %v1639
        %1994 = vmatprep.mubr.bf16.mxu0 %v1961
        %1995 = vmatmul.mubr.bf16.gmra.mrb[0].mxu0 %v1960
        %v1996 = vpop.f32.mrb[0].mxu0
        %v1997 = vadd.f32 0.0, %v1996
        %v1998 = vpop.f32.mrb[0].mxu0
        %v1999 = vadd.f32 0.0, %v1998
        %v2000 = vpop.f32.mrb[0].mxu0
        %v2001 = vpop.f32.mrb[0].mxu0
        %2002 = vdwg.mxu0
        %2003 = vmatprep.subr.bf16.mxu0 %v1552
        %2004 = vmatpush1.bf16.msra.mxu0 %v1551
        %2005 = vmatprep.subr.bf16.mxu0 %v1558
        %2006 = vmatpush1.bf16.msra.mxu0 %v1557
        %2007 = vmatprep.subr.bf16.mxu0 %v1564
        %2008 = vmatpush1.bf16.msra.mxu0 %v1563
        %2009 = vmatprep.subr.bf16.mxu0 %v1570
        %2010 = vmatpush1.bf16.msra.mxu0 %v1569
        %2011 = vmatprep.subr.bf16.mxu0 %v1576
        %2012 = vmatpush1.bf16.msra.mxu0 %v1575
        %2013 = vmatprep.subr.bf16.mxu0 %v1582
        %2014 = vmatpush1.bf16.msra.mxu0 %v1581
        %2015 = vmatprep.subr.bf16.mxu0 %v1588
        %2016 = vmatpush1.bf16.msra.mxu0 %v1587
        %2017 = vmatprep.subr.bf16.mxu0 %v1594
        %2018 = vmatpush1.bf16.msra.mxu0 %v1593
        %2019 = vmatprep.subr.bf16.mxu0 %v1600
        %2020 = vmatpush1.bf16.msra.mxu0 %v1599
        %2021 = vmatprep.subr.bf16.mxu0 %v1606
        %2022 = vmatpush1.bf16.msra.mxu0 %v1605
        %2023 = vmatprep.subr.bf16.mxu0 %v1612
        %2024 = vmatpush1.bf16.msra.mxu0 %v1611
        %2025 = vmatprep.subr.bf16.mxu0 %v1618
        %2026 = vmatpush1.bf16.msra.mxu0 %v1617
        %2027 = vmatprep.subr.bf16.mxu0 %v1624
        %2028 = vmatpush1.bf16.msra.mxu0 %v1623
        %2029 = vmatprep.subr.bf16.mxu0 %v1630
        %2030 = vmatpush1.bf16.msra.mxu0 %v1629
        %2031 = vmatprep.subr.bf16.mxu0 %v1636
        %2032 = vmatpush1.bf16.msra.mxu0 %v1635
        %2033 = vmatprep.subr.bf16.mxu0 %v1642
        %2034 = vmatpush1.bf16.msra.mxu0 %v1641
        %2035 = vmatprep.mubr.bf16.mxu0 %v1961
        %2036 = vmatmul.mubr.bf16.gmra.mrb[0].mxu0 %v1960
        %v2037 = vpop.f32.mrb[0].mxu0
        %v2038 = vadd.f32 0.0, %v2037
        %v2039 = vpop.f32.mrb[0].mxu0
        %v2040 = vadd.f32 0.0, %v2039
        %v2041 = vpop.f32.mrb[0].mxu0
        %v2042 = vpop.f32.mrb[0].mxu0
        %2043 = vdwg.mxu0
        %2044 = vmatprep.subr.bf16.mxu0 %v1554
        %2045 = vmatpush1.bf16.msra.mxu0 %v1553
        %2046 = vmatprep.subr.bf16.mxu0 %v1560
        %2047 = vmatpush1.bf16.msra.mxu0 %v1559
        %2048 = vmatprep.subr.bf16.mxu0 %v1566
        %2049 = vmatpush1.bf16.msra.mxu0 %v1565
        %2050 = vmatprep.subr.bf16.mxu0 %v1572
        %2051 = vmatpush1.bf16.msra.mxu0 %v1571
        %2052 = vmatprep.subr.bf16.mxu0 %v1578
        %2053 = vmatpush1.bf16.msra.mxu0 %v1577
        %2054 = vmatprep.subr.bf16.mxu0 %v1584
        %2055 = vmatpush1.bf16.msra.mxu0 %v1583
        %2056 = vmatprep.subr.bf16.mxu0 %v1590
        %2057 = vmatpush1.bf16.msra.mxu0 %v1589
        %2058 = vmatprep.subr.bf16.mxu0 %v1596
        %2059 = vmatpush1.bf16.msra.mxu0 %v1595
        %2060 = vmatprep.subr.bf16.mxu0 %v1602
        %2061 = vmatpush1.bf16.msra.mxu0 %v1601
        %2062 = vmatprep.subr.bf16.mxu0 %v1608
        %2063 = vmatpush1.bf16.msra.mxu0 %v1607
        %2064 = vmatprep.subr.bf16.mxu0 %v1614
        %2065 = vmatpush1.bf16.msra.mxu0 %v1613
        %2066 = vmatprep.subr.bf16.mxu0 %v1620
        %2067 = vmatpush1.bf16.msra.mxu0 %v1619
        %2068 = vmatprep.subr.bf16.mxu0 %v1626
        %2069 = vmatpush1.bf16.msra.mxu0 %v1625
        %2070 = vmatprep.subr.bf16.mxu0 %v1632
        %2071 = vmatpush1.bf16.msra.mxu0 %v1631
        %2072 = vmatprep.subr.bf16.mxu0 %v1638
        %2073 = vmatpush1.bf16.msra.mxu0 %v1637
        %2074 = vmatprep.subr.bf16.mxu0 %v1644
        %2075 = vmatpush1.bf16.msra.mxu0 %v1643
        %2076 = vmatprep.mubr.bf16.mxu0 %v1961
        %2077 = vmatmul.mubr.bf16.gmra.mrb[0].mxu0 %v1960
        %v2078 = vpop.f32.mrb[0].mxu0
        %v2079 = vadd.f32 0.0, %v2078
        %v2080 = vpop.f32.mrb[0].mxu0
        %v2081 = vadd.f32 0.0, %v2080
        %v2082 = vpop.f32.mrb[0].mxu0
        %v2083 = vpop.f32.mrb[0].mxu0
        %2084 = vdwg.mxu0
        %s2085 = smul.u32 1, 3
        %s2086 = smul.addr %s2085, 8
        %s2087 = scalar_lea.vmem [#allocation2], %s2086
        %v2088 = vld [vmem:[%s2087] sm:$0xff]
        %v2089 = vld [vmem:[%s2087 + $0x8] sm:$0xff]
        %v2090 = vld [vmem:[%s2087 + $0x10] sm:$0xff]
        %s2091 = smul.u32 2, 3
        %s2092 = smul.addr %s2091, 8
        %s2093 = scalar_lea.vmem [#allocation3], %s2092
        %v2094 = vld [vmem:[%s2093] sm:$0xff]
        %v2095 = vld [vmem:[%s2093 + $0x8] sm:$0xff]
        %v2096 = vld [vmem:[%s2093 + $0x10] sm:$0xff]
        %s2097 = sadd.s32 %s1254, 1
        %v2098 = vadd.f32 %v2088, %v1997
        %v2099 = vxor.u32 %v2098, 2147483648
        %v2100 = vmul.f32 %v2099, 1.442695
        %v2101 = vpow.pop %v2100
        %v2102 = vadd.f32 %v2101, 1.0
        %v2103 = vrcp.pop %v2102
        %v2104 = vmul.f32 1.0, %v2103
        %v2105 = vadd.f32 %v2089, %v1999
        %v2106 = vxor.u32 %v2105, 2147483648
        %v2107 = vmul.f32 %v2106, 1.442695
        %v2108 = vpow.pop %v2107
        %v2109 = vadd.f32 %v2108, 1.0
        %v2110 = vrcp.pop %v2109
        %v2111 = vmul.f32 1.0, %v2110
        %v2112 = vadd.f32 %v2038, %v1894
        %v2113 = vmul.f32 %v2104, %v2112
        %v2114 = vadd.f32 %v2090, %v2113
        %v2115 = vtanh.pop %v2114
        %v2116 = vsub.f32 %v1914, %v2115
        %v2117 = vmul.f32 %v2111, %v2116
        %v2118 = vadd.f32 %v2115, %v2117
        %v2119 = vstv %s2097
        %vm2120 = vcmp.lt.s32.totalorder %v2119, %v1253
        %v2121 = vsel %vm2120, 1, 0
        %v2122 = vcvt.s32.f32 %v2121
        %v2123 = vsub.f32 %v2118, %v1914
        %2125 = vset.pattern.permute.xlu0 0
        %2126 = vperm.xlu0 %2125, %v2122
        %v2127 = vpop.permute.xlu0 %2126
        %v2129 = vmul.f32 %v2127, %v2123
        %v2130 = vadd.f32 %v1914, %v2129
        %v2131 = vmul.f32 %v2127, %v2118
        %s2132 = sadd.s32 %s1256, 2
        %v2133 = vadd.f32 %v2094, %v2040
        %v2134 = vxor.u32 %v2133, 2147483648
        %v2135 = vmul.f32 %v2134, 1.442695
        %v2136 = vpow.pop %v2135
        %v2137 = vadd.f32 %v2136, 1.0
        %v2138 = vrcp.pop %v2137
        %v2139 = vmul.f32 1.0, %v2138
        %v2140 = vadd.f32 %v2095, %v2079
        %v2141 = vxor.u32 %v2140, 2147483648
        %v2142 = vmul.f32 %v2141, 1.442695
        %v2143 = vpow.pop %v2142
        %v2144 = vadd.f32 %v2143, 1.0
        %v2145 = vrcp.pop %v2144
        %v2146 = vmul.f32 1.0, %v2145
        %v2147 = vadd.f32 %v2081, %v1935
        %v2148 = vmul.f32 %v2139, %v2147
        %v2149 = vadd.f32 %v2096, %v2148
        %v2150 = vtanh.pop %v2149
        %v2151 = vsub.f32 %v1955, %v2150
        %v2152 = vmul.f32 %v2146, %v2151
        %v2153 = vadd.f32 %v2150, %v2152
        %v2154 = vstv %s2132
        %vm2155 = vcmp.lt.s32.totalorder %v2154, %v1253
        %v2156 = vsel %vm2155, 1, 0
        %v2157 = vcvt.s32.f32 %v2156
        %v2158 = vsub.f32 %v2153, %v1955
        %2160 = vset.pattern.permute.xlu0 0
        %2161 = vperm.xlu0 %2160, %v2157
        %v2162 = vpop.permute.xlu0 %2161
        %v2164 = vmul.f32 %v2162, %v2158
        %v2165 = vadd.f32 %v1955, %v2164
        %v2166 = vmul.f32 %v2162, %v2153
        %s2167 = scalar_lea.vmem %s518, 8 [#allocation14]
        %2168 = vst [vmem:[%s2167] sm:$0xff] %v2131
        %s2169 = scalar_lea.vmem %s525, 16 [#allocation15]
        %2170 = vst [vmem:[%s2169] sm:$0xff] %v2166
        %v2171 = vpack.c.bf16 %v2130, %v2130
        %v2172 = vpack.c.bf16 %v2165, %v2165
        %2173 = vmatprep.subr.bf16.mxu0 %v1550
        %2174 = vmatpush1.bf16.msra.mxu0 %v1549
        %2175 = vmatprep.subr.bf16.mxu0 %v1556
        %2176 = vmatpush1.bf16.msra.mxu0 %v1555
        %2177 = vmatprep.subr.bf16.mxu0 %v1562
        %2178 = vmatpush1.bf16.msra.mxu0 %v1561
        %2179 = vmatprep.subr.bf16.mxu0 %v1568
        %2180 = vmatpush1.bf16.msra.mxu0 %v1567
        %2181 = vmatprep.subr.bf16.mxu0 %v1574
        %2182 = vmatpush1.bf16.msra.mxu0 %v1573
        %2183 = vmatprep.subr.bf16.mxu0 %v1580
        %2184 = vmatpush1.bf16.msra.mxu0 %v1579
        %2185 = vmatprep.subr.bf16.mxu0 %v1586
        %2186 = vmatpush1.bf16.msra.mxu0 %v1585
        %2187 = vmatprep.subr.bf16.mxu0 %v1592
        %2188 = vmatpush1.bf16.msra.mxu0 %v1591
        %2189 = vmatprep.subr.bf16.mxu0 %v1598
        %2190 = vmatpush1.bf16.msra.mxu0 %v1597
        %2191 = vmatprep.subr.bf16.mxu0 %v1604
        %2192 = vmatpush1.bf16.msra.mxu0 %v1603
        %2193 = vmatprep.subr.bf16.mxu0 %v1610
        %2194 = vmatpush1.bf16.msra.mxu0 %v1609
        %2195 = vmatprep.subr.bf16.mxu0 %v1616
        %2196 = vmatpush1.bf16.msra.mxu0 %v1615
        %2197 = vmatprep.subr.bf16.mxu0 %v1622
        %2198 = vmatpush1.bf16.msra.mxu0 %v1621
        %2199 = vmatprep.subr.bf16.mxu0 %v1628
        %2200 = vmatpush1.bf16.msra.mxu0 %v1627
        %2201 = vmatprep.subr.bf16.mxu0 %v1634
        %2202 = vmatpush1.bf16.msra.mxu0 %v1633
        %2203 = vmatprep.subr.bf16.mxu0 %v1640
        %2204 = vmatpush1.bf16.msra.mxu0 %v1639
        %2205 = vmatprep.mubr.bf16.mxu0 %v2172
        %2206 = vmatmul.mubr.bf16.gmra.mrb[0].mxu0 %v2171
        %v2207 = vpop.f32.mrb[0].mxu0
        %v2208 = vadd.f32 0.0, %v2207
        %v2209 = vpop.f32.mrb[0].mxu0
        %v2210 = vadd.f32 0.0, %v2209
        %v2211 = vpop.f32.mrb[0].mxu0
        %v2212 = vpop.f32.mrb[0].mxu0
        %2213 = vdwg.mxu0
        %2214 = vmatprep.subr.bf16.mxu0 %v1552
        %2215 = vmatpush1.bf16.msra.mxu0 %v1551
        %2216 = vmatprep.subr.bf16.mxu0 %v1558
        %2217 = vmatpush1.bf16.msra.mxu0 %v1557
        %2218 = vmatprep.subr.bf16.mxu0 %v1564
        %2219 = vmatpush1.bf16.msra.mxu0 %v1563
        %2220 = vmatprep.subr.bf16.mxu0 %v1570
        %2221 = vmatpush1.bf16.msra.mxu0 %v1569
        %2222 = vmatprep.subr.bf16.mxu0 %v1576
        %2223 = vmatpush1.bf16.msra.mxu0 %v1575
        %2224 = vmatprep.subr.bf16.mxu0 %v1582
        %2225 = vmatpush1.bf16.msra.mxu0 %v1581
        %2226 = vmatprep.subr.bf16.mxu0 %v1588
        %2227 = vmatpush1.bf16.msra.mxu0 %v1587
        %2228 = vmatprep.subr.bf16.mxu0 %v1594
        %2229 = vmatpush1.bf16.msra.mxu0 %v1593
        %2230 = vmatprep.subr.bf16.mxu0 %v1600
        %2231 = vmatpush1.bf16.msra.mxu0 %v1599
        %2232 = vmatprep.subr.bf16.mxu0 %v1606
        %2233 = vmatpush1.bf16.msra.mxu0 %v1605
        %2234 = vmatprep.subr.bf16.mxu0 %v1612
        %2235 = vmatpush1.bf16.msra.mxu0 %v1611
        %2236 = vmatprep.subr.bf16.mxu0 %v1618
        %2237 = vmatpush1.bf16.msra.mxu0 %v1617
        %2238 = vmatprep.subr.bf16.mxu0 %v1624
        %2239 = vmatpush1.bf16.msra.mxu0 %v1623
        %2240 = vmatprep.subr.bf16.mxu0 %v1630
        %2241 = vmatpush1.bf16.msra.mxu0 %v1629
        %2242 = vmatprep.subr.bf16.mxu0 %v1636
        %2243 = vmatpush1.bf16.msra.mxu0 %v1635
        %2244 = vmatprep.subr.bf16.mxu0 %v1642
        %2245 = vmatpush1.bf16.msra.mxu0 %v1641
        %2246 = vmatprep.mubr.bf16.mxu0 %v2172
        %2247 = vmatmul.mubr.bf16.gmra.mrb[0].mxu0 %v2171
        %v2248 = vpop.f32.mrb[0].mxu0
        %v2249 = vadd.f32 0.0, %v2248
        %v2250 = vpop.f32.mrb[0].mxu0
        %v2251 = vadd.f32 0.0, %v2250
        %v2252 = vpop.f32.mrb[0].mxu0
        %v2253 = vpop.f32.mrb[0].mxu0
        %2254 = vdwg.mxu0
        %2255 = vmatprep.subr.bf16.mxu0 %v1554
        %2256 = vmatpush1.bf16.msra.mxu0 %v1553
        %2257 = vmatprep.subr.bf16.mxu0 %v1560
        %2258 = vmatpush1.bf16.msra.mxu0 %v1559
        %2259 = vmatprep.subr.bf16.mxu0 %v1566
        %2260 = vmatpush1.bf16.msra.mxu0 %v1565
        %2261 = vmatprep.subr.bf16.mxu0 %v1572
        %2262 = vmatpush1.bf16.msra.mxu0 %v1571
        %2263 = vmatprep.subr.bf16.mxu0 %v1578
        %2264 = vmatpush1.bf16.msra.mxu0 %v1577
        %2265 = vmatprep.subr.bf16.mxu0 %v1584
        %2266 = vmatpush1.bf16.msra.mxu0 %v1583
        %2267 = vmatprep.subr.bf16.mxu0 %v1590
        %2268 = vmatpush1.bf16.msra.mxu0 %v1589
        %2269 = vmatprep.subr.bf16.mxu0 %v1596
        %2270 = vmatpush1.bf16.msra.mxu0 %v1595
        %2271 = vmatprep.subr.bf16.mxu0 %v1602
        %2272 = vmatpush1.bf16.msra.mxu0 %v1601
        %2273 = vmatprep.subr.bf16.mxu0 %v1608
        %2274 = vmatpush1.bf16.msra.mxu0 %v1607
        %2275 = vmatprep.subr.bf16.mxu0 %v1614
        %2276 = vmatpush1.bf16.msra.mxu0 %v1613
        %2277 = vmatprep.subr.bf16.mxu0 %v1620
        %2278 = vmatpush1.bf16.msra.mxu0 %v1619
        %2279 = vmatprep.subr.bf16.mxu0 %v1626
        %2280 = vmatpush1.bf16.msra.mxu0 %v1625
        %2281 = vmatprep.subr.bf16.mxu0 %v1632
        %2282 = vmatpush1.bf16.msra.mxu0 %v1631
        %2283 = vmatprep.subr.bf16.mxu0 %v1638
        %2284 = vmatpush1.bf16.msra.mxu0 %v1637
        %2285 = vmatprep.subr.bf16.mxu0 %v1644
        %2286 = vmatpush1.bf16.msra.mxu0 %v1643
        %2287 = vmatprep.mubr.bf16.mxu0 %v2172
        %2288 = vmatmul.mubr.bf16.gmra.mrb[0].mxu0 %v2171
        %v2289 = vpop.f32.mrb[0].mxu0
        %v2290 = vadd.f32 0.0, %v2289
        %v2291 = vpop.f32.mrb[0].mxu0
        %v2292 = vadd.f32 0.0, %v2291
        %v2293 = vpop.f32.mrb[0].mxu0
        %v2294 = vpop.f32.mrb[0].mxu0
        %2295 = vdwg.mxu0
        %s2296 = smul.addr %s2091, 8
        %s2297 = scalar_lea.vmem [#allocation2], %s2296
        %v2298 = vld [vmem:[%s2297] sm:$0xff]
        %v2299 = vld [vmem:[%s2297 + $0x8] sm:$0xff]
        %v2300 = vld [vmem:[%s2297 + $0x10] sm:$0xff]
        %s2301 = smul.addr %s2085, 8
        %s2302 = scalar_lea.vmem [#allocation3], %s2301
        %v2303 = vld [vmem:[%s2302] sm:$0xff]
        %v2304 = vld [vmem:[%s2302 + $0x8] sm:$0xff]
        %v2305 = vld [vmem:[%s2302 + $0x10] sm:$0xff]
        %s2306 = sadd.s32 %s1254, 2
        %v2307 = vadd.f32 %v2298, %v2208
        %v2308 = vxor.u32 %v2307, 2147483648
        %v2309 = vmul.f32 %v2308, 1.442695
        %v2310 = vpow.pop %v2309
        %v2311 = vadd.f32 %v2310, 1.0
        %v2312 = vrcp.pop %v2311
        %v2313 = vmul.f32 1.0, %v2312
        %v2314 = vadd.f32 %v2299, %v2210
        %v2315 = vxor.u32 %v2314, 2147483648
        %v2316 = vmul.f32 %v2315, 1.442695
        %v2317 = vpow.pop %v2316
        %v2318 = vadd.f32 %v2317, 1.0
        %v2319 = vrcp.pop %v2318
        %v2320 = vmul.f32 1.0, %v2319
        %v2321 = vadd.f32 %v2249, %v1894
        %v2322 = vmul.f32 %v2313, %v2321
        %v2323 = vadd.f32 %v2300, %v2322
        %v2324 = vtanh.pop %v2323
        %v2325 = vsub.f32 %v2130, %v2324
        %v2326 = vmul.f32 %v2320, %v2325
        %v2327 = vadd.f32 %v2324, %v2326
        %v2328 = vstv %s2306
        %vm2329 = vcmp.lt.s32.totalorder %v2328, %v1253
        %v2330 = vsel %vm2329, 1, 0
        %v2331 = vcvt.s32.f32 %v2330
        %v2332 = vsub.f32 %v2327, %v2130
        %2334 = vset.pattern.permute.xlu0 0
        %2335 = vperm.xlu0 %2334, %v2331
        %v2336 = vpop.permute.xlu0 %2335
        %v2338 = vmul.f32 %v2336, %v2332
        %v2339 = vadd.f32 %v2130, %v2338
        %v2340 = vmul.f32 %v2336, %v2327
        %s2341 = sadd.s32 %s1256, 1
        %v2342 = vadd.f32 %v2303, %v2251
        %v2343 = vxor.u32 %v2342, 2147483648
        %v2344 = vmul.f32 %v2343, 1.442695
        %v2345 = vpow.pop %v2344
        %v2346 = vadd.f32 %v2345, 1.0
        %v2347 = vrcp.pop %v2346
        %v2348 = vmul.f32 1.0, %v2347
        %v2349 = vadd.f32 %v2304, %v2290
        %v2350 = vxor.u32 %v2349, 2147483648
        %v2351 = vmul.f32 %v2350, 1.442695
        %v2352 = vpow.pop %v2351
        %v2353 = vadd.f32 %v2352, 1.0
        %v2354 = vrcp.pop %v2353
        %v2355 = vmul.f32 1.0, %v2354
        %v2356 = vadd.f32 %v2292, %v1935
        %v2357 = vmul.f32 %v2348, %v2356
        %v2358 = vadd.f32 %v2305, %v2357
        %v2359 = vtanh.pop %v2358
        %v2360 = vsub.f32 %v2165, %v2359
        %v2361 = vmul.f32 %v2355, %v2360
        %v2362 = vadd.f32 %v2359, %v2361
        %v2363 = vstv %s2341
        %vm2364 = vcmp.lt.s32.totalorder %v2363, %v1253
        %v2365 = vsel %vm2364, 1, 0
        %v2366 = vcvt.s32.f32 %v2365
        %v2367 = vsub.f32 %v2362, %v2165
        %2369 = vset.pattern.permute.xlu0 0
        %2370 = vperm.xlu0 %2369, %v2366
        %v2371 = vpop.permute.xlu0 %2370
        %v2373 = vmul.f32 %v2371, %v2367
        %v2374 = vadd.f32 %v2165, %v2373
        %v2375 = vmul.f32 %v2371, %v2362
        %s2376 = scalar_lea.vmem %s518, 16 [#allocation14]
        %2377 = vst [vmem:[%s2376] sm:$0xff] %v2340
        %s2378 = scalar_lea.vmem %s525, 8 [#allocation15]
        %2379 = vst [vmem:[%s2378] sm:$0xff] %v2375
        %v2380 = vpack.c.bf16 %v2339, %v2339
        %v2381 = vpack.c.bf16 %v2374, %v2374
        %2382 = vmatprep.subr.bf16.mxu0 %v1550
        %2383 = vmatpush1.bf16.msra.mxu0 %v1549
        %2384 = vmatprep.subr.bf16.mxu0 %v1556
        %2385 = vmatpush1.bf16.msra.mxu0 %v1555
        %2386 = vmatprep.subr.bf16.mxu0 %v1562
        %2387 = vmatpush1.bf16.msra.mxu0 %v1561
        %2388 = vmatprep.subr.bf16.mxu0 %v1568
        %2389 = vmatpush1.bf16.msra.mxu0 %v1567
        %2390 = vmatprep.subr.bf16.mxu0 %v1574
        %2391 = vmatpush1.bf16.msra.mxu0 %v1573
        %2392 = vmatprep.subr.bf16.mxu0 %v1580
        %2393 = vmatpush1.bf16.msra.mxu0 %v1579
        %2394 = vmatprep.subr.bf16.mxu0 %v1586
        %2395 = vmatpush1.bf16.msra.mxu0 %v1585
        %2396 = vmatprep.subr.bf16.mxu0 %v1592
        %2397 = vmatpush1.bf16.msra.mxu0 %v1591
        %2398 = vmatprep.subr.bf16.mxu0 %v1598
        %2399 = vmatpush1.bf16.msra.mxu0 %v1597
        %2400 = vmatprep.subr.bf16.mxu0 %v1604
        %2401 = vmatpush1.bf16.msra.mxu0 %v1603
        %2402 = vmatprep.subr.bf16.mxu0 %v1610
        %2403 = vmatpush1.bf16.msra.mxu0 %v1609
        %2404 = vmatprep.subr.bf16.mxu0 %v1616
        %2405 = vmatpush1.bf16.msra.mxu0 %v1615
        %2406 = vmatprep.subr.bf16.mxu0 %v1622
        %2407 = vmatpush1.bf16.msra.mxu0 %v1621
        %2408 = vmatprep.subr.bf16.mxu0 %v1628
        %2409 = vmatpush1.bf16.msra.mxu0 %v1627
        %2410 = vmatprep.subr.bf16.mxu0 %v1634
        %2411 = vmatpush1.bf16.msra.mxu0 %v1633
        %2412 = vmatprep.subr.bf16.mxu0 %v1640
        %2413 = vmatpush1.bf16.msra.mxu0 %v1639
        %2414 = vmatprep.mubr.bf16.mxu0 %v2381
        %2415 = vmatmul.mubr.bf16.gmra.mrb[0].mxu0 %v2380
        %v2416 = vpop.f32.mrb[0].mxu0
        %v2417 = vadd.f32 0.0, %v2416
        %v2418 = vpop.f32.mrb[0].mxu0
        %v2419 = vadd.f32 0.0, %v2418
        %v2420 = vpop.f32.mrb[0].mxu0
        %v2421 = vpop.f32.mrb[0].mxu0
        %2422 = vdwg.mxu0
        %2423 = vmatprep.subr.bf16.mxu0 %v1552
        %2424 = vmatpush1.bf16.msra.mxu0 %v1551
        %2425 = vmatprep.subr.bf16.mxu0 %v1558
        %2426 = vmatpush1.bf16.msra.mxu0 %v1557
        %2427 = vmatprep.subr.bf16.mxu0 %v1564
        %2428 = vmatpush1.bf16.msra.mxu0 %v1563
        %2429 = vmatprep.subr.bf16.mxu0 %v1570
        %2430 = vmatpush1.bf16.msra.mxu0 %v1569
        %2431 = vmatprep.subr.bf16.mxu0 %v1576
        %2432 = vmatpush1.bf16.msra.mxu0 %v1575
        %2433 = vmatprep.subr.bf16.mxu0 %v1582
        %2434 = vmatpush1.bf16.msra.mxu0 %v1581
        %2435 = vmatprep.subr.bf16.mxu0 %v1588
        %2436 = vmatpush1.bf16.msra.mxu0 %v1587
        %2437 = vmatprep.subr.bf16.mxu0 %v1594
        %2438 = vmatpush1.bf16.msra.mxu0 %v1593
        %2439 = vmatprep.subr.bf16.mxu0 %v1600
        %2440 = vmatpush1.bf16.msra.mxu0 %v1599
        %2441 = vmatprep.subr.bf16.mxu0 %v1606
        %2442 = vmatpush1.bf16.msra.mxu0 %v1605
        %2443 = vmatprep.subr.bf16.mxu0 %v1612
        %2444 = vmatpush1.bf16.msra.mxu0 %v1611
        %2445 = vmatprep.subr.bf16.mxu0 %v1618
        %2446 = vmatpush1.bf16.msra.mxu0 %v1617
        %2447 = vmatprep.subr.bf16.mxu0 %v1624
        %2448 = vmatpush1.bf16.msra.mxu0 %v1623
        %2449 = vmatprep.subr.bf16.mxu0 %v1630
        %2450 = vmatpush1.bf16.msra.mxu0 %v1629
        %2451 = vmatprep.subr.bf16.mxu0 %v1636
        %2452 = vmatpush1.bf16.msra.mxu0 %v1635
        %2453 = vmatprep.subr.bf16.mxu0 %v1642
        %2454 = vmatpush1.bf16.msra.mxu0 %v1641
        %2455 = vmatprep.mubr.bf16.mxu0 %v2381
        %2456 = vmatmul.mubr.bf16.gmra.mrb[0].mxu0 %v2380
        %v2457 = vpop.f32.mrb[0].mxu0
        %v2458 = vadd.f32 0.0, %v2457
        %v2459 = vpop.f32.mrb[0].mxu0
        %v2460 = vadd.f32 0.0, %v2459
        %v2461 = vpop.f32.mrb[0].mxu0
        %v2462 = vpop.f32.mrb[0].mxu0
        %2463 = vdwg.mxu0
        %2464 = vmatprep.subr.bf16.mxu0 %v1554
        %2465 = vmatpush1.bf16.msra.mxu0 %v1553
        %2466 = vmatprep.subr.bf16.mxu0 %v1560
        %2467 = vmatpush1.bf16.msra.mxu0 %v1559
        %2468 = vmatprep.subr.bf16.mxu0 %v1566
        %2469 = vmatpush1.bf16.msra.mxu0 %v1565
        %2470 = vmatprep.subr.bf16.mxu0 %v1572
        %2471 = vmatpush1.bf16.msra.mxu0 %v1571
        %2472 = vmatprep.subr.bf16.mxu0 %v1578
        %2473 = vmatpush1.bf16.msra.mxu0 %v1577
        %2474 = vmatprep.subr.bf16.mxu0 %v1584
        %2475 = vmatpush1.bf16.msra.mxu0 %v1583
        %2476 = vmatprep.subr.bf16.mxu0 %v1590
        %2477 = vmatpush1.bf16.msra.mxu0 %v1589
        %2478 = vmatprep.subr.bf16.mxu0 %v1596
        %2479 = vmatpush1.bf16.msra.mxu0 %v1595
        %2480 = vmatprep.subr.bf16.mxu0 %v1602
        %2481 = vmatpush1.bf16.msra.mxu0 %v1601
        %2482 = vmatprep.subr.bf16.mxu0 %v1608
        %2483 = vmatpush1.bf16.msra.mxu0 %v1607
        %2484 = vmatprep.subr.bf16.mxu0 %v1614
        %2485 = vmatpush1.bf16.msra.mxu0 %v1613
        %2486 = vmatprep.subr.bf16.mxu0 %v1620
        %2487 = vmatpush1.bf16.msra.mxu0 %v1619
        %2488 = vmatprep.subr.bf16.mxu0 %v1626
        %2489 = vmatpush1.bf16.msra.mxu0 %v1625
        %2490 = vmatprep.subr.bf16.mxu0 %v1632
        %2491 = vmatpush1.bf16.msra.mxu0 %v1631
        %2492 = vmatprep.subr.bf16.mxu0 %v1638
        %2493 = vmatpush1.bf16.msra.mxu0 %v1637
        %2494 = vmatprep.subr.bf16.mxu0 %v1644
        %2495 = vmatpush1.bf16.msra.mxu0 %v1643
        %2496 = vmatprep.mubr.bf16.mxu0 %v2381
        %2497 = vmatmul.mubr.bf16.gmra.mrb[0].mxu0 %v2380
        %v2498 = vpop.f32.mrb[0].mxu0
        %v2499 = vadd.f32 0.0, %v2498
        %v2500 = vpop.f32.mrb[0].mxu0
        %v2501 = vadd.f32 0.0, %v2500
        %v2502 = vpop.f32.mrb[0].mxu0
        %v2503 = vpop.f32.mrb[0].mxu0
        %2504 = vdwg.mxu0
        %s2505 = smul.addr %s1870, 8
        %s2506 = scalar_lea.vmem [#allocation2], %s2505
        %v2507 = vld [vmem:[%s2506] sm:$0xff]
        %v2508 = vld [vmem:[%s2506 + $0x8] sm:$0xff]
        %v2509 = vld [vmem:[%s2506 + $0x10] sm:$0xff]
        %s2510 = smul.addr %s1864, 8
        %s2511 = scalar_lea.vmem [#allocation3], %s2510
        %v2512 = vld [vmem:[%s2511] sm:$0xff]
        %v2513 = vld [vmem:[%s2511 + $0x8] sm:$0xff]
        %v2514 = vld [vmem:[%s2511 + $0x10] sm:$0xff]
        %s2515 = sadd.s32 %s1254, 3
        %v2516 = vadd.f32 %v2507, %v2417
        %v2517 = vxor.u32 %v2516, 2147483648
        %v2518 = vmul.f32 %v2517, 1.442695
        %v2519 = vpow.pop %v2518
        %v2520 = vadd.f32 %v2519, 1.0
        %v2521 = vrcp.pop %v2520
        %v2522 = vmul.f32 1.0, %v2521
        %v2523 = vadd.f32 %v2508, %v2419
        %v2524 = vxor.u32 %v2523, 2147483648
        %v2525 = vmul.f32 %v2524, 1.442695
        %v2526 = vpow.pop %v2525
        %v2527 = vadd.f32 %v2526, 1.0
        %v2528 = vrcp.pop %v2527
        %v2529 = vmul.f32 1.0, %v2528
        %v2530 = vadd.f32 %v2458, %v1894
        %v2531 = vmul.f32 %v2522, %v2530
        %v2532 = vadd.f32 %v2509, %v2531
        %v2533 = vtanh.pop %v2532
        %v2534 = vsub.f32 %v2339, %v2533
        %v2535 = vmul.f32 %v2529, %v2534
        %v2536 = vadd.f32 %v2533, %v2535
        %v2537 = vstv %s2515
        %vm2538 = vcmp.lt.s32.totalorder %v2537, %v1253
        %v2539 = vsel %vm2538, 1, 0
        %v2540 = vcvt.s32.f32 %v2539
        %v2541 = vsub.f32 %v2536, %v2339
        %2543 = vset.pattern.permute.xlu0 0
        %2544 = vperm.xlu0 %2543, %v2540
        %v2545 = vpop.permute.xlu0 %2544
        %v2547 = vmul.f32 %v2545, %v2541
        %v2548 = vadd.f32 %v2339, %v2547
        %v2549 = vmul.f32 %v2545, %v2536
        %v2550 = vadd.f32 %v2512, %v2460
        %v2551 = vxor.u32 %v2550, 2147483648
        %v2552 = vmul.f32 %v2551, 1.442695
        %v2553 = vpow.pop %v2552
        %v2554 = vadd.f32 %v2553, 1.0
        %v2555 = vrcp.pop %v2554
        %v2556 = vmul.f32 1.0, %v2555
        %v2557 = vadd.f32 %v2513, %v2499
        %v2558 = vxor.u32 %v2557, 2147483648
        %v2559 = vmul.f32 %v2558, 1.442695
        %v2560 = vpow.pop %v2559
        %v2561 = vadd.f32 %v2560, 1.0
        %v2562 = vrcp.pop %v2561
        %v2563 = vmul.f32 1.0, %v2562
        %v2564 = vadd.f32 %v2501, %v1935
        %v2565 = vmul.f32 %v2556, %v2564
        %v2566 = vadd.f32 %v2514, %v2565
        %v2567 = vtanh.pop %v2566
        %v2568 = vsub.f32 %v2374, %v2567
        %v2569 = vmul.f32 %v2563, %v2568
        %v2570 = vadd.f32 %v2567, %v2569
        %v2571 = vstv %s1256
        %vm2572 = vcmp.lt.s32.totalorder %v2571, %v1253
        %v2573 = vsel %vm2572, 1, 0
        %v2574 = vcvt.s32.f32 %v2573
        %v2575 = vsub.f32 %v2570, %v2374
        %2577 = vset.pattern.permute.xlu0 0
        %2578 = vperm.xlu0 %2577, %v2574
        %v2579 = vpop.permute.xlu0 %2578
        %v2581 = vmul.f32 %v2579, %v2575
        %v2582 = vadd.f32 %v2374, %v2581
        %v2583 = vmul.f32 %v2579, %v2570
        %s2584 = scalar_lea.vmem %s518, 24 [#allocation14]
        %2585 = vst [vmem:[%s2584] sm:$0xff] %v2549
        %2586 = vst [vmem:[%s525] sm:$0xff] %v2583
        %2587 = vst [vmem:[#allocation4] sm:$0xff] %v2548
        %2588 = vst [vmem:[#allocation4 + $0x8] sm:$0xff] %v2582
        %p2589 = scmp.eq.s32.totalorder %s37, 1
        // Predicated region
        $region85: #{tpu_custom_call.1} parent=59 // pred_check
          %p2590 = pneg %p2589
        $region86: #{tpu_custom_call.1} parent=59 // pred_check_branch
          %2592 = sbr.rel (%p2590) target = $region88
        $region87: #{tpu_custom_call.1} parent=59 // pred_region
          %2593 = vst [vmem:[#allocation17] sm:$0xff] %v2548
          %s2594 = scalar_lea.vmem [#allocation17], 8
          %2595 = vst [vmem:[%s2594] sm:$0xff] %v2582
        $region88: #{tpu_custom_call.1} parent=59 // pred_fallthru
          _
        %s2596 = sand.u32 %s267, 1
        %s2597 = scalar_lea.sflag [#allocation7], %s2596
        %s2598 = sand.u32 %s267, 1
        %s2599 = smul.addr %s2598, 32
        %s2600 = scalar_lea.vmem [#allocation14], %s2599
        %s2601 = sand.u32 %s37, 1
        %s2602 = scalar_lea.sflag [#allocation16], %s2601
        %s2603 = sand.u32 %s295, 1
        %s2604 = smul.addr %s2603, 32
        %s2605 = scalar_lea.vmem [#allocation15], %s2604
        // Predicated region
        $region89: #{tpu_custom_call.1} parent=59 // pred_check
          %p2606 = pneg %p277
        $region90: #{tpu_custom_call.1} parent=59 // pred_check_branch
          %2608 = sbr.rel (%p2606) target = $region92
        $region91: #{tpu_custom_call.1} parent=59 // pred_region
          %s2609 = smul.u32 4, %s37
          %s2611 = ssub.s32 512, 512
          %2612 = vsyncadd %s2597, %s2611
          %s2613 = smul.addr %s2609, 128
          %s2614 = scalar_lea.hbm %s10, %s2613
          %s2615 = sshll.u32 %s2600, 4
          %s2616 = int_to_ptr.vmem [resolvable:$true] %s2615
          %2621 = dma.vmem_to_hbm [thread:$0]  %s2616, 512, %s2614, %s2597, 128, 128, 8
        $region92: #{tpu_custom_call.1} parent=59 // pred_fallthru
          _
        // Predicated region
        $region93: #{tpu_custom_call.1} parent=59 // pred_check
          %p2622 = pneg %p305
        $region94: #{tpu_custom_call.1} parent=59 // pred_check_branch
          %2624 = sbr.rel (%p2622) target = $region96
        $region95: #{tpu_custom_call.1} parent=59 // pred_region
          %s2625 = ssub.s32 1, %s37
          %s2626 = smul.u32 4, %s2625
          %s2628 = ssub.s32 512, 512
          %2629 = vsyncadd %s2602, %s2628
          %s2630 = smul.addr %s2626, 128
          %s2631 = scalar_lea.hbm %s11, %s2630
          %s2632 = sshll.u32 %s2605, 4
          %s2633 = int_to_ptr.vmem [resolvable:$true] %s2632
          %2638 = dma.vmem_to_hbm [thread:$0]  %s2633, 512, %s2631, %s2602, 128, 128, 8
        $region96: #{tpu_custom_call.1} parent=59 // pred_fallthru
          _
        // Predicated region
        $region97: #{tpu_custom_call.1} parent=59 // pred_check
          %p2639 = pneg %p326
        $region98: #{tpu_custom_call.1} parent=59 // pred_check_branch
          %2641 = sbr.rel (%p2639) target = $region100
        $region99: #{tpu_custom_call.1} parent=59 // pred_region
          %s2643 = ssub.s32 256, 256
          %2644 = vsyncadd [#allocation16], %s2643
          %s2645 = sshll.u32 [#allocation17], 4
          %s2646 = int_to_ptr.vmem [resolvable:$true] %s2645
          %2651 = dma.vmem_to_hbm [thread:$0]  %s2646, 256, %s12, [#allocation16], 128, 128, 8
        $region100: #{tpu_custom_call.1} parent=59 // pred_fallthru
          _
        // Predicated region
        $region101: #{tpu_custom_call.1} parent=59 // pred_check
          %p2652 = pneg %p326
        $region102: #{tpu_custom_call.1} parent=59 // pred_check_branch
          %2654 = sbr.rel (%p2652) target = $region104
        $region103: #{tpu_custom_call.1} parent=59 // pred_region
          %2655 = dma.done [#allocation16], 256
        $region104: #{tpu_custom_call.1} parent=59 // pred_fallthru
          _
      $region60: #{tpu_custom_call.1} parent=5 // pred_fallthru
        _
      %p2656 = scmp.le.s32.totalorder 2, %s32
      // Predicated region
      $region105: #{tpu_custom_call.1} parent=5 // pred_check
        %p2657 = pneg %p2656
      $region106: #{tpu_custom_call.1} parent=5 // pred_check_branch
        %2659 = sbr.rel (%p2657) target = $region108
      $region107: #{tpu_custom_call.1} parent=5 // pred_region
        %s2660 = ssub.s32 %s32, 2
        // Predicated region
        $region109: #{tpu_custom_call.1} parent=107 // pred_check
          %p2661 = pneg %p283
        $region110: #{tpu_custom_call.1} parent=107 // pred_check_branch
          %2663 = sbr.rel (%p2661) target = $region112
        $region111: #{tpu_custom_call.1} parent=107 // pred_region
          %s2664 = sand.u32 %s268, 1
          %s2665 = scalar_lea.sflag [#allocation7], %s2664
          %s2666 = sand.u32 %s268, 1
          %s2667 = smul.addr %s2666, 32
          %s2668 = scalar_lea.vmem [#allocation14], %s2667
          %2669 = dma.done %s2665, 512
        $region112: #{tpu_custom_call.1} parent=107 // pred_fallthru
          _
        // Predicated region
        $region113: #{tpu_custom_call.1} parent=107 // pred_check
          %p2670 = pneg %p311
        $region114: #{tpu_custom_call.1} parent=107 // pred_check_branch
          %2672 = sbr.rel (%p2670) target = $region116
        $region115: #{tpu_custom_call.1} parent=107 // pred_region
          %s2673 = sand.u32 %s38, 1
          %s2674 = scalar_lea.sflag [#allocation16], %s2673
          %s2675 = sand.u32 %s296, 1
          %s2676 = smul.addr %s2675, 32
          %s2677 = scalar_lea.vmem [#allocation15], %s2676
          %2678 = dma.done %s2674, 512
        $region116: #{tpu_custom_call.1} parent=107 // pred_fallthru
          _
      $region108: #{tpu_custom_call.1} parent=5 // pred_fallthru
        _
    $region6: #{tpu_custom_call.1} parent=1 // loop_footer
      %s36 = sadd.s32 1, %s32
    $region7: #{tpu_custom_call.1} parent=1 // loop_footer_branch
      %31 = sbr.rel target = $region3
    $region8: #{tpu_custom_call.1} parent=1 // loop_exit
      _
    %2679 = vsyncpa [#allocation6], 1
    %s2680 = scalar_lea.sflag [#allocation6], 1
    %2681 = vsyncpa %s2680, 1
    %2682 = vsyncpa [#allocation9], 1
    %s2683 = scalar_lea.sflag [#allocation9], 1
    %2684 = vsyncpa %s2683, 1
    %2685 = vsyncpa [#allocation12], 1
    %2686 = vsyncpa [#allocation7], 1
    %s2687 = scalar_lea.sflag [#allocation7], 1
    %2688 = vsyncpa %s2687, 1
    %2689 = vsyncpa [#allocation16], 1
    %s2690 = scalar_lea.sflag [#allocation16], 1
    %2691 = vsyncpa %s2690, 1

</llo_original>
